<compile_context>
chip_gen: v5e
topology: v5e:2x2
jax: 0.10.0
libtpu: 0.0.40
codegen_flags: <defaults>
</compile_context>

<pallas_src>
import functools

import jax
import jax.numpy as jnp
from jax import lax
from jax.experimental import pallas as pl
from jax.experimental.pallas import tpu as pltpu

C = 96              # in_channels fixed by Layer4
CP = 128            # channel dim zero-padded to one full lane width
DC_NUM_LAYERS = 2   # config.DC_NUM_LAYERS (external) -- chosen here
SE_RED = 16
C_RED = C // SE_RED
RED_P = 128         # SE bottleneck dim padded to lane width
EPS = 1e-5
KMAX = 7            # largest branch kernel size (branch kernels: 7, 5, 3)
PAD_MAX = KMAX // 2
NUM_BRANCH = 3
SPAD = 8            # scratch halo / aligned store offset (>= PAD_MAX, multiple of 8)


# ------------------------------- Pallas kernel --------------------------------

def _layer4_kernel(x_ref, rowmask_ref, bnaff_ref, convw_ref, convb_ref,
                   se_c1_ref, se_bn1_ref, se_c2_ref, se_bn2_ref,
                   fc1_ref, fc2_ref, o_ref, s_ref, *, l_real):
    """One branch per grid step; all (pre-padded) batch rows folded into the matmul M dim."""
    rows = x_ref.shape[0]                                   # N * LP (pad rows included)
    n = o_ref.shape[1]
    lp = rows // n
    bf = jnp.bfloat16

    # Zero the scratch halo rows once (only pad-row outputs read them, but they must be finite).
    zhalo = jnp.zeros((PAD_MAX, CP), bf)
    s_ref[pl.ds(SPAD - PAD_MAX, PAD_MAX), :] = zhalo
    s_ref[pl.ds(SPAD + rows, PAD_MAX), :] = zhalo

    # Hoisted lane-broadcast of the row mask (1 at real rows, 0 at per-sample pad rows).
    rmask = jnp.broadcast_to(rowmask_ref[...], (rows, CP))

    # ---- DC_NUM_LAYERS x BNActConv: BN affine -> ReLU -> mask -> ONE im2col matmul ----
    h = x_ref[...]                                          # (rows, CP) f32
    for layer in range(DC_NUM_LAYERS):
        aff = bnaff_ref[0, layer]                           # (2, CP) = [scale, shift]
        a = jnp.maximum(h * aff[0:1, :] + aff[1:2, :], 0.0) * rmask
        s_ref[pl.ds(SPAD, rows), :] = a.astype(bf)          # aligned store into scratch
        win = jnp.concatenate(
            [s_ref[pl.ds(SPAD - PAD_MAX + t, rows), :] for t in range(KMAX)], axis=1)
        h = jnp.dot(win, convw_ref[0, layer],
                    preferred_element_type=jnp.float32)     # (rows, CP) f32

    # ---- AdaptiveAvgPool1d(1): masked per-sample mean (no pooling matmul) ----
    hm = h * rmask                                          # zero the junk pad-row outputs
    r = jnp.sum(hm.reshape(n, lp, CP), axis=1) * (1.0 / l_real) + convb_ref[0]   # (N, CP)

    # ---- SEBasicBlock on the length-1 sequence (batched over N) ----
    h1 = jnp.dot(r.astype(bf), se_c1_ref[0], preferred_element_type=jnp.float32)
    a1 = se_bn1_ref[0]
    h1 = jnp.maximum(h1 * a1[0:1, :] + a1[1:2, :], 0.0)
    h2 = jnp.dot(h1.astype(bf), se_c2_ref[0], preferred_element_type=jnp.float32)
    a2 = se_bn2_ref[0]
    h2 = h2 * a2[0:1, :] + a2[1:2, :]
    s = jnp.maximum(jnp.dot(h2.astype(bf), fc1_ref[0],
                            preferred_element_type=jnp.float32), 0.0)
    s = jax.nn.sigmoid(jnp.dot(s.astype(bf), fc2_ref[0],
                               preferred_element_type=jnp.float32))
    o_ref[0] = jnp.maximum(h2 * s + r, 0.0)                 # (N, CP)


# --------------------------- wrapper / parameter packing ---------------------------

def _bn_affine(bnp):
    """(..., 4, C)=[gamma,beta,mean,var] -> (..., 2, C)=[scale, shift] (eval-mode BN)."""
    gamma, beta = bnp[..., 0, :], bnp[..., 1, :]
    mean, var = bnp[..., 2, :], bnp[..., 3, :]
    scale = gamma * lax.rsqrt(var + EPS)
    shift = beta - mean * scale
    return jnp.stack([scale, shift], axis=-2)


def _pad_last(x, target):
    pad = [(0, 0)] * (x.ndim - 1) + [(0, target - x.shape[-1])]
    return jnp.pad(x, pad)


def pack_branch(K, bnp, convw, convb):
    """BN -> affine, fold intermediate conv biases, pad channels & taps to (KMAX, CP), bf16 weights."""
    aff = _bn_affine(bnp)                                   # (NL, 2, C)
    scale, shift = aff[:, 0, :], aff[:, 1, :]
    # conv bias of layer l feeds the BN of layer l+1: fold it into that shift.
    shift = shift.at[1:].add(convb[:-1, 0, :] * scale[1:])
    aff = _pad_last(jnp.stack([scale, shift], axis=1), CP)  # (NL, 2, CP) f32

    pad = K // 2                                            # odd K only ('same' padding)
    off = PAD_MAX - pad                                     # center-align taps inside KMAX
    w = jnp.pad(convw, ((0, 0), (off, KMAX - K - off),
                        (0, CP - C), (0, CP - C)))          # (NL, KMAX, CP, CP)
    w = w.reshape(DC_NUM_LAYERS, KMAX * CP, CP).astype(jnp.bfloat16)   # im2col weight, bf16
    b_last = _pad_last(convb[-1], CP)                       # (1, CP) f32
    return aff, w, b_last


def pack_se(se):
    c1, bn1, c2, bn2, fc1, fc2 = se
    bf = jnp.bfloat16
    return (jnp.pad(c1, ((0, CP - C), (0, CP - C))).astype(bf),
            _pad_last(_bn_affine(bn1), CP),
            jnp.pad(c2, ((0, CP - C), (0, CP - C))).astype(bf),
            _pad_last(_bn_affine(bn2), CP),
            jnp.pad(fc1, ((0, CP - C), (0, RED_P - C_RED))).astype(bf),
            jnp.pad(fc2, ((0, RED_P - C_RED), (0, CP - C))).astype(bf))


def pack_all(raw):
    bnaff, convw, convb = [], [], []
    se_lists = [[] for _ in range(6)]
    for (K, bnp, cw, cb, se) in raw:
        a, w, b = pack_branch(K, bnp, cw, cb)
        bnaff.append(a); convw.append(w); convb.append(b)
        for i, p in enumerate(pack_se(se)):
            se_lists[i].append(p)
    return (jnp.stack(bnaff), jnp.stack(convw), jnp.stack(convb),
            tuple(jnp.stack(lst) for lst in se_lists))


@jax.jit
def layer4_forward(x_ncl, packed):
    """x_ncl: (N, C, L) f32 -> (N, 3*C, 1) (branch+pool+SE, concat, final avgpool=identity)."""
    bnaff, convw, convb, se = packed
    se_c1, se_bn1, se_c2, se_bn2, fc1, fc2 = se
    N, _, L = x_ncl.shape

    # Per-sample slab: PAD_MAX leading zero rows + L data rows + trailing zeros, rounded to 8.
    LP = ((L + 2 * PAD_MAX + 7) // 8) * 8
    ROWS_P = N * LP

    x_nlc = jnp.transpose(x_ncl, (0, 2, 1))                      # (N, L, C)
    x_pad = jnp.zeros((N, LP, CP), jnp.float32)
    x_pad = x_pad.at[:, PAD_MAX:PAD_MAX + L, :C].set(x_nlc)
    x_rows = x_pad.reshape(ROWS_P, CP)                           # (ROWS_P, CP), lane-dense

    pos = jnp.arange(ROWS_P) % LP
    rowmask = ((pos >= PAD_MAX) & (pos < PAD_MAX + L)).astype(jnp.float32)[:, None]  # (ROWS_P,1)

    kernel = functools.partial(_layer4_kernel, l_real=float(L))

    out = pl.pallas_call(
        kernel,
        out_shape=jax.ShapeDtypeStruct((NUM_BRANCH, N, CP), jnp.float32),
        grid=(NUM_BRANCH,),
        in_specs=[
            pl.BlockSpec((ROWS_P, CP), lambda b: (0, 0)),                          # x (shared)
            pl.BlockSpec((ROWS_P, 1), lambda b: (0, 0)),                           # row mask
            pl.BlockSpec((1, DC_NUM_LAYERS, 2, CP), lambda b: (b, 0, 0, 0)),       # BN affine
            pl.BlockSpec((1, DC_NUM_LAYERS, KMAX * CP, CP), lambda b: (b, 0, 0, 0)),  # conv W (bf16)
            pl.BlockSpec((1, 1, CP), lambda b: (b, 0, 0)),                         # last conv bias
            pl.BlockSpec((1, CP, CP), lambda b: (b, 0, 0)),                        # SE conv1 (bf16)
            pl.BlockSpec((1, 2, CP), lambda b: (b, 0, 0)),                         # SE bn1
            pl.BlockSpec((1, CP, CP), lambda b: (b, 0, 0)),                        # SE conv2 (bf16)
            pl.BlockSpec((1, 2, CP), lambda b: (b, 0, 0)),                         # SE bn2
            pl.BlockSpec((1, CP, RED_P), lambda b: (b, 0, 0)),                     # SE fc1 (bf16)
            pl.BlockSpec((1, RED_P, CP), lambda b: (b, 0, 0)),                     # SE fc2 (bf16)
        ],
        out_specs=pl.BlockSpec((1, N, CP), lambda b: (b, 0, 0)),
        scratch_shapes=[pltpu.VMEM((ROWS_P + 2 * SPAD, CP), jnp.bfloat16)],        # padded activations
        compiler_params=pltpu.CompilerParams(
            dimension_semantics=("parallel",)),
    )(x_rows, rowmask, bnaff, convw, convb,
      se_c1, se_bn1, se_c2, se_bn2, fc1, fc2)

    # Slice the real channels back out and lay out like torch.cat([x1,x2,x3], dim=1).
    y = jnp.transpose(out[:, :, :C], (1, 0, 2)).reshape(N, NUM_BRANCH * C)
    return y[:, :, None]                                          # final avgpool(len=1) = identity


# --------------------------- parameter construction ---------------------------

def make_bn(key, leading=()):
    k = jax.random.split(key, 4)
    gamma = 1.0 + 0.1 * jax.random.normal(k[0], leading + (C,), jnp.float32)
    beta = 0.1 * jax.random.normal(k[1], leading + (C,), jnp.float32)
    mean = 0.1 * jax.random.normal(k[2], leading + (C,), jnp.float32)
    var = 0.5 + jnp.abs(jax.random.normal(k[3], leading + (C,), jnp.float32))
    return jnp.stack([gamma, beta, mean, var], axis=len(leading))  # leading + (4, C)


def make_branch_params(key, K):
    k = jax.random.split(key, 3)
    bnp = make_bn(k[0], (DC_NUM_LAYERS,))                                   # (NL, 4, C)
    convw = (jax.random.normal(k[1], (DC_NUM_LAYERS, K, C, C), jnp.float32)
             / jnp.sqrt(float(C * K)))                                      # (NL, K, Cin, Cout)
    convb = 0.05 * jax.random.normal(k[2], (DC_NUM_LAYERS, 1, C), jnp.float32)
    return bnp, convw, convb


def make_se_params(key):
    k = jax.random.split(key, 6)
    c1 = jax.random.normal(k[0], (C, C), jnp.float32) / jnp.sqrt(float(C))  # center tap only
    bn1 = make_bn(k[1])
    c2 = jax.random.normal(k[2], (C, C), jnp.float32) / jnp.sqrt(float(C))
    bn2 = make_bn(k[3])
    fc1 = jax.random.normal(k[4], (C, C_RED), jnp.float32) / jnp.sqrt(float(C))
    fc2 = jax.random.normal(k[5], (C_RED, C), jnp.float32) / jnp.sqrt(float(C_RED))
    return c1, bn1, c2, bn2, fc1, fc2


# ------------------------------ pure-JAX reference -----------------------------

def branch_ref(x_ncl, K, bnp, convw, convb, se):
    def bn_ncl(x, p):
        g, b, m, v = p[0], p[1], p[2], p[3]
        return (x - m[None, :, None]) * (g * lax.rsqrt(v + EPS))[None, :, None] + b[None, :, None]

    def bn_nc(x, p):
        g, b, m, v = p[0], p[1], p[2], p[3]
        return (x - m[None, :]) * (g * lax.rsqrt(v + EPS))[None, :] + b[None, :]

    h = x_ncl
    for l in range(DC_NUM_LAYERS):
        h = jax.nn.relu(bn_ncl(h, bnp[l]))
        w_oik = jnp.transpose(convw[l], (2, 1, 0))   # (Cout, Cin, K) torch layout
        h = lax.conv_general_dilated(h, w_oik, (1,), 'SAME',
                                     dimension_numbers=('NCH', 'OIH', 'NCH'))
        h = h + convb[l][0][None, :, None]
    r = jnp.mean(h, axis=2)                          # (N, C)
    c1, bn1, c2, bn2, fc1, fc2 = se
    h1 = jax.nn.relu(bn_nc(r @ c1, bn1))
    h2 = bn_nc(h1 @ c2, bn2)
    s = jax.nn.sigmoid(jax.nn.relu(h2 @ fc1) @ fc2)
    return jax.nn.relu(h2 * s + r)                   # (N, C)


# ------------------------------------ main -------------------------------------

if __name__ == "__main__":
    N, L = 2, 32
    key = jax.random.PRNGKey(0)
    kx, k1, k2, k3, ks1, ks2, ks3 = jax.random.split(key, 7)

    x_ncl = jax.random.normal(kx, (N, C, L), jnp.float32)   # PyTorch NCL input

    branch_cfg = [(7, k1, ks1), (5, k2, ks2), (3, k3, ks3)]
    raw = []
    for K, bkey, skey in branch_cfg:
        bnp, convw, convb = make_branch_params(bkey, K)
        se = make_se_params(skey)
        raw.append((K, bnp, convw, convb, se))

    packed = pack_all(raw)
    y_cat = layer4_forward(x_ncl, packed)                    # (N, 3*C, 1)
    jax.block_until_ready(y_cat)

    refs = [branch_ref(x_ncl, K, bnp, convw, convb, se)
            for (K, bnp, convw, convb, se) in raw]
    y_ref = jnp.concatenate(refs, axis=1)[:, :, None]

    assert y_cat.shape == (N, 3 * C, 1)
    max_err = float(jnp.max(jnp.abs(y_cat - y_ref)))
    # bf16 MXU operands vs f32 reference -> loosened tolerance (per review).
    assert jnp.allclose(y_cat, y_ref, rtol=5e-2, atol=5e-2), max_err
    print("KERNEL_OK")
</pallas_src>

<mosaic_0001>
module attributes {stable_mosaic.version = 11 : i64} {
  func.func @_layer4_kernel(%arg0: i32, %arg1: memref<80x128xf32, #tpu.memory_space<vmem>>, %arg2: memref<80x1xf32, #tpu.memory_space<vmem>>, %arg3: memref<1x2x2x128xf32, #tpu.memory_space<vmem>>, %arg4: memref<1x2x896x128xbf16, #tpu.memory_space<vmem>>, %arg5: memref<1x1x128xf32, #tpu.memory_space<vmem>>, %arg6: memref<1x128x128xbf16, #tpu.memory_space<vmem>>, %arg7: memref<1x2x128xf32, #tpu.memory_space<vmem>>, %arg8: memref<1x128x128xbf16, #tpu.memory_space<vmem>>, %arg9: memref<1x2x128xf32, #tpu.memory_space<vmem>>, %arg10: memref<1x128x128xbf16, #tpu.memory_space<vmem>>, %arg11: memref<1x128x128xbf16, #tpu.memory_space<vmem>>, %arg12: memref<1x2x128xf32, #tpu.memory_space<vmem>>, %arg13: memref<96x128xbf16, #tpu.memory_space<vmem>>) attributes {dimension_semantics = [#tpu.dimension_semantics<parallel>], iteration_bounds = array<i64: 3>, scalar_prefetch = 0 : i64, scratch_operands = 1 : i64, tpu.core_type = #tpu.core_type<tc>, window_params = [{pipeline_mode = #tpu.pipeline_mode<synchronous>, transform_indices = @transform_0, window_bounds = array<i64: 80, 128>}, {pipeline_mode = #tpu.pipeline_mode<synchronous>, transform_indices = @transform_1, window_bounds = array<i64: 80, 1>}, {transform_indices = @transform_2, window_bounds = array<i64: 1, 2, 2, 128>}, {transform_indices = @transform_3, window_bounds = array<i64: 1, 2, 896, 128>}, {transform_indices = @transform_4, window_bounds = array<i64: 1, 1, 128>}, {transform_indices = @transform_5, window_bounds = array<i64: 1, 128, 128>}, {transform_indices = @transform_6, window_bounds = array<i64: 1, 2, 128>}, {transform_indices = @transform_7, window_bounds = array<i64: 1, 128, 128>}, {transform_indices = @transform_8, window_bounds = array<i64: 1, 2, 128>}, {transform_indices = @transform_9, window_bounds = array<i64: 1, 128, 128>}, {transform_indices = @transform_10, window_bounds = array<i64: 1, 128, 128>}, {transform_indices = @transform_11, window_bounds = array<i64: 1, 2, 128>}]} {
    %cst = arith.constant 0.000000e+00 : bf16
    %0 = vector.broadcast %cst : bf16 to vector<3x128xbf16>
    %c5 = arith.constant 5 : index
    %c0 = arith.constant 0 : index
    %1 = vector.load %arg13[%c5, %c0] : memref<96x128xbf16, #tpu.memory_space<vmem>>, vector<3x128xbf16>
    tpu.vector_store %arg13[%c5, %c0], %0 {strides = array<i32>} : memref<96x128xbf16, #tpu.memory_space<vmem>>, vector<3x128xbf16>,
    %c88 = arith.constant 88 : index
    %c0_0 = arith.constant 0 : index
    %2 = vector.load %arg13[%c88, %c0_0] : memref<96x128xbf16, #tpu.memory_space<vmem>>, vector<3x128xbf16>
    tpu.vector_store %arg13[%c88, %c0_0], %0 {strides = array<i32>} : memref<96x128xbf16, #tpu.memory_space<vmem>>, vector<3x128xbf16>,
    %c0_1 = arith.constant 0 : index
    %c0_2 = arith.constant 0 : index
    %3 = vector.load %arg2[%c0_1, %c0_2] : memref<80x1xf32, #tpu.memory_space<vmem>>, vector<80x1xf32>
    %4 = vector.shape_cast %3 : vector<80x1xf32> to vector<80x1xf32>
    %5 = vector.broadcast %4 : vector<80x1xf32> to vector<80x128xf32>
    %c0_3 = arith.constant 0 : index
    %c0_4 = arith.constant 0 : index
    %6 = vector.load %arg1[%c0_3, %c0_4] : memref<80x128xf32, #tpu.memory_space<vmem>>, vector<80x128xf32>
    %c0_5 = arith.constant 0 : index
    %c0_6 = arith.constant 0 : index
    %c0_7 = arith.constant 0 : index
    %c0_8 = arith.constant 0 : index
    %7 = vector.load %arg3[%c0_5, %c0_6, %c0_7, %c0_8] : memref<1x2x2x128xf32, #tpu.memory_space<vmem>>, vector<1x1x2x128xf32>
    %8 = vector.shape_cast %7 : vector<1x1x2x128xf32> to vector<2x128xf32>
    %9 = vector.extract_strided_slice %8 {offsets = [0, 0], sizes = [1, 128], strides = [1, 1]} : vector<2x128xf32> to vector<1x128xf32>
    %10 = vector.broadcast %9 : vector<1x128xf32> to vector<80x128xf32>
    %11 = arith.mulf %6, %10 : vector<80x128xf32>
    %12 = vector.extract_strided_slice %8 {offsets = [1, 0], sizes = [1, 128], strides = [1, 1]} : vector<2x128xf32> to vector<1x128xf32>
    %13 = vector.broadcast %12 : vector<1x128xf32> to vector<80x128xf32>
    %14 = arith.addf %11, %13 : vector<80x128xf32>
    %cst_9 = arith.constant 0.000000e+00 : f32
    %15 = vector.broadcast %cst_9 : f32 to vector<80x128xf32>
    %16 = arith.maximumf %14, %15 : vector<80x128xf32>
    %17 = arith.mulf %16, %5 : vector<80x128xf32>
    %18 = arith.truncf %17 : vector<80x128xf32> to vector<80x128xbf16>
    %c8 = arith.constant 8 : index
    %c0_10 = arith.constant 0 : index
    %19 = vector.load %arg13[%c8, %c0_10] : memref<96x128xbf16, #tpu.memory_space<vmem>>, vector<80x128xbf16>
    tpu.vector_store %arg13[%c8, %c0_10], %18 {strides = array<i32>} : memref<96x128xbf16, #tpu.memory_space<vmem>>, vector<80x128xbf16>,
    %c5_11 = arith.constant 5 : index
    %c0_12 = arith.constant 0 : index
    %20 = vector.load %arg13[%c5_11, %c0_12] : memref<96x128xbf16, #tpu.memory_space<vmem>>, vector<80x128xbf16>
    %c6 = arith.constant 6 : index
    %c0_13 = arith.constant 0 : index
    %21 = vector.load %arg13[%c6, %c0_13] : memref<96x128xbf16, #tpu.memory_space<vmem>>, vector<80x128xbf16>
    %c7 = arith.constant 7 : index
    %c0_14 = arith.constant 0 : index
    %22 = vector.load %arg13[%c7, %c0_14] : memref<96x128xbf16, #tpu.memory_space<vmem>>, vector<80x128xbf16>
    %c8_15 = arith.constant 8 : index
    %c0_16 = arith.constant 0 : index
    %23 = vector.load %arg13[%c8_15, %c0_16] : memref<96x128xbf16, #tpu.memory_space<vmem>>, vector<80x128xbf16>
    %c9 = arith.constant 9 : index
    %c0_17 = arith.constant 0 : index
    %24 = vector.load %arg13[%c9, %c0_17] : memref<96x128xbf16, #tpu.memory_space<vmem>>, vector<80x128xbf16>
    %c10 = arith.constant 10 : index
    %c0_18 = arith.constant 0 : index
    %25 = vector.load %arg13[%c10, %c0_18] : memref<96x128xbf16, #tpu.memory_space<vmem>>, vector<80x128xbf16>
    %c11 = arith.constant 11 : index
    %c0_19 = arith.constant 0 : index
    %26 = vector.load %arg13[%c11, %c0_19] : memref<96x128xbf16, #tpu.memory_space<vmem>>, vector<80x128xbf16>
    %27 = tpu.concatenate %20, %21, %22, %23, %24, %25, %26 in 1 : vector<80x128xbf16>, vector<80x128xbf16>, vector<80x128xbf16>, vector<80x128xbf16>, vector<80x128xbf16>, vector<80x128xbf16>, vector<80x128xbf16> -> vector<80x896xbf16>
    %c0_20 = arith.constant 0 : index
    %c0_21 = arith.constant 0 : index
    %c0_22 = arith.constant 0 : index
    %c0_23 = arith.constant 0 : index
    %28 = vector.load %arg4[%c0_20, %c0_21, %c0_22, %c0_23] : memref<1x2x896x128xbf16, #tpu.memory_space<vmem>>, vector<1x1x896x128xbf16>
    %29 = vector.shape_cast %28 : vector<1x1x896x128xbf16> to vector<896x128xbf16>
    %cst_24 = arith.constant dense<0.000000e+00> : vector<80x128xf32>
    %30 = tpu.matmul %27, %29, %cst_24 {dimension_numbers = #tpu.dot_dimension_numbers<[1], [0], [0], [1], [0, 0, 1, 1], [], []>} : vector<80x896xbf16>, vector<896x128xbf16>, vector<80x128xf32> -> vector<80x128xf32>
    %c0_25 = arith.constant 0 : index
    %c1 = arith.constant 1 : index
    %c0_26 = arith.constant 0 : index
    %c0_27 = arith.constant 0 : index
    %31 = vector.load %arg3[%c0_25, %c1, %c0_26, %c0_27] : memref<1x2x2x128xf32, #tpu.memory_space<vmem>>, vector<1x1x2x128xf32>
    %32 = vector.shape_cast %31 : vector<1x1x2x128xf32> to vector<2x128xf32>
    %33 = vector.extract_strided_slice %32 {offsets = [0, 0], sizes = [1, 128], strides = [1, 1]} : vector<2x128xf32> to vector<1x128xf32>
    %34 = vector.broadcast %33 : vector<1x128xf32> to vector<80x128xf32>
    %35 = arith.mulf %30, %34 : vector<80x128xf32>
    %36 = vector.extract_strided_slice %32 {offsets = [1, 0], sizes = [1, 128], strides = [1, 1]} : vector<2x128xf32> to vector<1x128xf32>
    %37 = vector.broadcast %36 : vector<1x128xf32> to vector<80x128xf32>
    %38 = arith.addf %35, %37 : vector<80x128xf32>
    %cst_28 = arith.constant 0.000000e+00 : f32
    %39 = vector.broadcast %cst_28 : f32 to vector<80x128xf32>
    %40 = arith.maximumf %38, %39 : vector<80x128xf32>
    %41 = arith.mulf %40, %5 : vector<80x128xf32>
    %42 = arith.truncf %41 : vector<80x128xf32> to vector<80x128xbf16>
    %c8_29 = arith.constant 8 : index
    %c0_30 = arith.constant 0 : index
    %43 = vector.load %arg13[%c8_29, %c0_30] : memref<96x128xbf16, #tpu.memory_space<vmem>>, vector<80x128xbf16>
    tpu.vector_store %arg13[%c8_29, %c0_30], %42 {strides = array<i32>} : memref<96x128xbf16, #tpu.memory_space<vmem>>, vector<80x128xbf16>,
    %c5_31 = arith.constant 5 : index
    %c0_32 = arith.constant 0 : index
    %44 = vector.load %arg13[%c5_31, %c0_32] : memref<96x128xbf16, #tpu.memory_space<vmem>>, vector<80x128xbf16>
    %c6_33 = arith.constant 6 : index
    %c0_34 = arith.constant 0 : index
    %45 = vector.load %arg13[%c6_33, %c0_34] : memref<96x128xbf16, #tpu.memory_space<vmem>>, vector<80x128xbf16>
    %c7_35 = arith.constant 7 : index
    %c0_36 = arith.constant 0 : index
    %46 = vector.load %arg13[%c7_35, %c0_36] : memref<96x128xbf16, #tpu.memory_space<vmem>>, vector<80x128xbf16>
    %c8_37 = arith.constant 8 : index
    %c0_38 = arith.constant 0 : index
    %47 = vector.load %arg13[%c8_37, %c0_38] : memref<96x128xbf16, #tpu.memory_space<vmem>>, vector<80x128xbf16>
    %c9_39 = arith.constant 9 : index
    %c0_40 = arith.constant 0 : index
    %48 = vector.load %arg13[%c9_39, %c0_40] : memref<96x128xbf16, #tpu.memory_space<vmem>>, vector<80x128xbf16>
    %c10_41 = arith.constant 10 : index
    %c0_42 = arith.constant 0 : index
    %49 = vector.load %arg13[%c10_41, %c0_42] : memref<96x128xbf16, #tpu.memory_space<vmem>>, vector<80x128xbf16>
    %c11_43 = arith.constant 11 : index
    %c0_44 = arith.constant 0 : index
    %50 = vector.load %arg13[%c11_43, %c0_44] : memref<96x128xbf16, #tpu.memory_space<vmem>>, vector<80x128xbf16>
    %51 = tpu.concatenate %44, %45, %46, %47, %48, %49, %50 in 1 : vector<80x128xbf16>, vector<80x128xbf16>, vector<80x128xbf16>, vector<80x128xbf16>, vector<80x128xbf16>, vector<80x128xbf16>, vector<80x128xbf16> -> vector<80x896xbf16>
    %c0_45 = arith.constant 0 : index
    %c1_46 = arith.constant 1 : index
    %c0_47 = arith.constant 0 : index
    %c0_48 = arith.constant 0 : index
    %52 = vector.load %arg4[%c0_45, %c1_46, %c0_47, %c0_48] : memref<1x2x896x128xbf16, #tpu.memory_space<vmem>>, vector<1x1x896x128xbf16>
    %53 = vector.shape_cast %52 : vector<1x1x896x128xbf16> to vector<896x128xbf16>
    %cst_49 = arith.constant dense<0.000000e+00> : vector<80x128xf32>
    %54 = tpu.matmul %51, %53, %cst_49 {dimension_numbers = #tpu.dot_dimension_numbers<[1], [0], [0], [1], [0, 0, 1, 1], [], []>} : vector<80x896xbf16>, vector<896x128xbf16>, vector<80x128xf32> -> vector<80x128xf32>
    %55 = arith.mulf %54, %5 : vector<80x128xf32>
    %56 = vector.shape_cast %55 : vector<80x128xf32> to vector<2x40x128xf32>
    %cst_50 = arith.constant dense<0.000000e+00> : vector<2x128xf32>
    %57 = vector.multi_reduction <add>, %56, %cst_50 [1] : vector<2x40x128xf32> to vector<2x128xf32>
    %cst_51 = arith.constant 3.125000e-02 : f32
    %58 = vector.broadcast %cst_51 : f32 to vector<2x128xf32>
    %59 = arith.mulf %57, %58 : vector<2x128xf32>
    %c0_52 = arith.constant 0 : index
    %c0_53 = arith.constant 0 : index
    %c0_54 = arith.constant 0 : index
    %60 = vector.load %arg5[%c0_52, %c0_53, %c0_54] : memref<1x1x128xf32, #tpu.memory_space<vmem>>, vector<1x1x128xf32>
    %61 = vector.shape_cast %60 : vector<1x1x128xf32> to vector<1x128xf32>
    %62 = vector.broadcast %61 : vector<1x128xf32> to vector<2x128xf32>
    %63 = arith.addf %59, %62 : vector<2x128xf32>
    %64 = arith.truncf %63 : vector<2x128xf32> to vector<2x128xbf16>
    %c0_55 = arith.constant 0 : index
    %c0_56 = arith.constant 0 : index
    %c0_57 = arith.constant 0 : index
    %65 = vector.load %arg6[%c0_55, %c0_56, %c0_57] : memref<1x128x128xbf16, #tpu.memory_space<vmem>>, vector<1x128x128xbf16>
    %66 = vector.shape_cast %65 : vector<1x128x128xbf16> to vector<128x128xbf16>
    %cst_58 = arith.constant dense<0.000000e+00> : vector<2x128xf32>
    %67 = tpu.matmul %64, %66, %cst_58 {dimension_numbers = #tpu.dot_dimension_numbers<[1], [0], [0], [1], [0, 0, 1, 1], [], []>} : vector<2x128xbf16>, vector<128x128xbf16>, vector<2x128xf32> -> vector<2x128xf32>
    %c0_59 = arith.constant 0 : index
    %c0_60 = arith.constant 0 : index
    %c0_61 = arith.constant 0 : index
    %68 = vector.load %arg7[%c0_59, %c0_60, %c0_61] : memref<1x2x128xf32, #tpu.memory_space<vmem>>, vector<1x2x128xf32>
    %69 = vector.shape_cast %68 : vector<1x2x128xf32> to vector<2x128xf32>
    %70 = vector.extract_strided_slice %69 {offsets = [0, 0], sizes = [1, 128], strides = [1, 1]} : vector<2x128xf32> to vector<1x128xf32>
    %71 = vector.broadcast %70 : vector<1x128xf32> to vector<2x128xf32>
    %72 = arith.mulf %67, %71 : vector<2x128xf32>
    %73 = vector.extract_strided_slice %69 {offsets = [1, 0], sizes = [1, 128], strides = [1, 1]} : vector<2x128xf32> to vector<1x128xf32>
    %74 = vector.broadcast %73 : vector<1x128xf32> to vector<2x128xf32>
    %75 = arith.addf %72, %74 : vector<2x128xf32>
    %cst_62 = arith.constant 0.000000e+00 : f32
    %76 = vector.broadcast %cst_62 : f32 to vector<2x128xf32>
    %77 = arith.maximumf %75, %76 : vector<2x128xf32>
    %78 = arith.truncf %77 : vector<2x128xf32> to vector<2x128xbf16>
    %c0_63 = arith.constant 0 : index
    %c0_64 = arith.constant 0 : index
    %c0_65 = arith.constant 0 : index
    %79 = vector.load %arg8[%c0_63, %c0_64, %c0_65] : memref<1x128x128xbf16, #tpu.memory_space<vmem>>, vector<1x128x128xbf16>
    %80 = vector.shape_cast %79 : vector<1x128x128xbf16> to vector<128x128xbf16>
    %cst_66 = arith.constant dense<0.000000e+00> : vector<2x128xf32>
    %81 = tpu.matmul %78, %80, %cst_66 {dimension_numbers = #tpu.dot_dimension_numbers<[1], [0], [0], [1], [0, 0, 1, 1], [], []>} : vector<2x128xbf16>, vector<128x128xbf16>, vector<2x128xf32> -> vector<2x128xf32>
    %c0_67 = arith.constant 0 : index
    %c0_68 = arith.constant 0 : index
    %c0_69 = arith.constant 0 : index
    %82 = vector.load %arg9[%c0_67, %c0_68, %c0_69] : memref<1x2x128xf32, #tpu.memory_space<vmem>>, vector<1x2x128xf32>
    %83 = vector.shape_cast %82 : vector<1x2x128xf32> to vector<2x128xf32>
    %84 = vector.extract_strided_slice %83 {offsets = [0, 0], sizes = [1, 128], strides = [1, 1]} : vector<2x128xf32> to vector<1x128xf32>
    %85 = vector.broadcast %84 : vector<1x128xf32> to vector<2x128xf32>
    %86 = arith.mulf %81, %85 : vector<2x128xf32>
    %87 = vector.extract_strided_slice %83 {offsets = [1, 0], sizes = [1, 128], strides = [1, 1]} : vector<2x128xf32> to vector<1x128xf32>
    %88 = vector.broadcast %87 : vector<1x128xf32> to vector<2x128xf32>
    %89 = arith.addf %86, %88 : vector<2x128xf32>
    %90 = arith.truncf %89 : vector<2x128xf32> to vector<2x128xbf16>
    %c0_70 = arith.constant 0 : index
    %c0_71 = arith.constant 0 : index
    %c0_72 = arith.constant 0 : index
    %91 = vector.load %arg10[%c0_70, %c0_71, %c0_72] : memref<1x128x128xbf16, #tpu.memory_space<vmem>>, vector<1x128x128xbf16>
    %92 = vector.shape_cast %91 : vector<1x128x128xbf16> to vector<128x128xbf16>
    %cst_73 = arith.constant dense<0.000000e+00> : vector<2x128xf32>
    %93 = tpu.matmul %90, %92, %cst_73 {dimension_numbers = #tpu.dot_dimension_numbers<[1], [0], [0], [1], [0, 0, 1, 1], [], []>} : vector<2x128xbf16>, vector<128x128xbf16>, vector<2x128xf32> -> vector<2x128xf32>
    %cst_74 = arith.constant 0.000000e+00 : f32
    %94 = vector.broadcast %cst_74 : f32 to vector<2x128xf32>
    %95 = arith.maximumf %93, %94 : vector<2x128xf32>
    %96 = arith.truncf %95 : vector<2x128xf32> to vector<2x128xbf16>
    %c0_75 = arith.constant 0 : index
    %c0_76 = arith.constant 0 : index
    %c0_77 = arith.constant 0 : index
    %97 = vector.load %arg11[%c0_75, %c0_76, %c0_77] : memref<1x128x128xbf16, #tpu.memory_space<vmem>>, vector<1x128x128xbf16>
    %98 = vector.shape_cast %97 : vector<1x128x128xbf16> to vector<128x128xbf16>
    %cst_78 = arith.constant dense<0.000000e+00> : vector<2x128xf32>
    %99 = tpu.matmul %96, %98, %cst_78 {dimension_numbers = #tpu.dot_dimension_numbers<[1], [0], [0], [1], [0, 0, 1, 1], [], []>} : vector<2x128xbf16>, vector<128x128xbf16>, vector<2x128xf32> -> vector<2x128xf32>
    %100 = arith.negf %99 : vector<2x128xf32>
    %101 = math.exp %100 : vector<2x128xf32>
    %cst_79 = arith.constant 1.000000e+00 : f32
    %102 = vector.broadcast %cst_79 : f32 to vector<2x128xf32>
    %103 = arith.addf %102, %101 : vector<2x128xf32>
    %104 = arith.divf %102, %103 : vector<2x128xf32>
    %105 = arith.mulf %89, %104 : vector<2x128xf32>
    %106 = arith.addf %105, %63 : vector<2x128xf32>
    %cst_80 = arith.constant 0.000000e+00 : f32
    %107 = vector.broadcast %cst_80 : f32 to vector<2x128xf32>
    %108 = arith.maximumf %106, %107 : vector<2x128xf32>
    %c0_81 = arith.constant 0 : index
    %c0_82 = arith.constant 0 : index
    %c0_83 = arith.constant 0 : index
    %109 = vector.load %arg12[%c0_81, %c0_82, %c0_83] : memref<1x2x128xf32, #tpu.memory_space<vmem>>, vector<1x2x128xf32>
    %110 = vector.shape_cast %109 : vector<1x2x128xf32> to vector<2x128xf32>
    %111 = vector.shape_cast %108 : vector<2x128xf32> to vector<1x2x128xf32>
    tpu.vector_store %arg12[%c0_81, %c0_82, %c0_83], %111 {strides = array<i32>} : memref<1x2x128xf32, #tpu.memory_space<vmem>>, vector<1x2x128xf32>,
    return
  }
  func.func @transform_0(%arg0: i32) -> (i32, i32) {
    %c0_i32 = arith.constant 0 : i32
    %c0_i32_0 = arith.constant 0 : i32
    %c0_i32_1 = arith.constant 0 : i32
    return %c0_i32, %c0_i32_0 : i32, i32
  }
  func.func @transform_1(%arg0: i32) -> (i32, i32) {
    %c0_i32 = arith.constant 0 : i32
    %c0_i32_0 = arith.constant 0 : i32
    %c0_i32_1 = arith.constant 0 : i32
    return %c0_i32, %c0_i32_0 : i32, i32
  }
  func.func @transform_2(%arg0: i32) -> (i32, i32, i32, i32) {
    %c0_i32 = arith.constant 0 : i32
    %c0_i32_0 = arith.constant 0 : i32
    %c0_i32_1 = arith.constant 0 : i32
    %c0_i32_2 = arith.constant 0 : i32
    return %arg0, %c0_i32, %c0_i32_0, %c0_i32_1 : i32, i32, i32, i32
  }
  func.func @transform_3(%arg0: i32) -> (i32, i32, i32, i32) {
    %c0_i32 = arith.constant 0 : i32
    %c0_i32_0 = arith.constant 0 : i32
    %c0_i32_1 = arith.constant 0 : i32
    %c0_i32_2 = arith.constant 0 : i32
    return %arg0, %c0_i32, %c0_i32_0, %c0_i32_1 : i32, i32, i32, i32
  }
  func.func @transform_4(%arg0: i32) -> (i32, i32, i32) {
    %c0_i32 = arith.constant 0 : i32
    %c0_i32_0 = arith.constant 0 : i32
    %c0_i32_1 = arith.constant 0 : i32
    return %arg0, %c0_i32, %c0_i32_0 : i32, i32, i32
  }
  func.func @transform_5(%arg0: i32) -> (i32, i32, i32) {
    %c0_i32 = arith.constant 0 : i32
    %c0_i32_0 = arith.constant 0 : i32
    %c0_i32_1 = arith.constant 0 : i32
    return %arg0, %c0_i32, %c0_i32_0 : i32, i32, i32
  }
  func.func @transform_6(%arg0: i32) -> (i32, i32, i32) {
    %c0_i32 = arith.constant 0 : i32
    %c0_i32_0 = arith.constant 0 : i32
    %c0_i32_1 = arith.constant 0 : i32
    return %arg0, %c0_i32, %c0_i32_0 : i32, i32, i32
  }
  func.func @transform_7(%arg0: i32) -> (i32, i32, i32) {
    %c0_i32 = arith.constant 0 : i32
    %c0_i32_0 = arith.constant 0 : i32
    %c0_i32_1 = arith.constant 0 : i32
    return %arg0, %c0_i32, %c0_i32_0 : i32, i32, i32
  }
  func.func @transform_8(%arg0: i32) -> (i32, i32, i32) {
    %c0_i32 = arith.constant 0 : i32
    %c0_i32_0 = arith.constant 0 : i32
    %c0_i32_1 = arith.constant 0 : i32
    return %arg0, %c0_i32, %c0_i32_0 : i32, i32, i32
  }
  func.func @transform_9(%arg0: i32) -> (i32, i32, i32) {
    %c0_i32 = arith.constant 0 : i32
    %c0_i32_0 = arith.constant 0 : i32
    %c0_i32_1 = arith.constant 0 : i32
    return %arg0, %c0_i32, %c0_i32_0 : i32, i32, i32
  }
  func.func @transform_10(%arg0: i32) -> (i32, i32, i32) {
    %c0_i32 = arith.constant 0 : i32
    %c0_i32_0 = arith.constant 0 : i32
    %c0_i32_1 = arith.constant 0 : i32
    return %arg0, %c0_i32, %c0_i32_0 : i32, i32, i32
  }
  func.func @transform_11(%arg0: i32) -> (i32, i32, i32) {
    %c0_i32 = arith.constant 0 : i32
    %c0_i32_0 = arith.constant 0 : i32
    %c0_i32_1 = arith.constant 0 : i32
    return %arg0, %c0_i32, %c0_i32_0 : i32, i32, i32
  }
}

</mosaic_0001>

<llo_original>
// kernel: layer4_forward.1
$region0: #{layer4_forward.1}
  #allocation0 [shape = 'u32[]', space=smem, size = 0x4, offset = 0x4, fixed_abs, tag = 'smem constant byte address 0x4 - core index']
  #allocation1 [shape = 'u32[72,128]{1,0:T(1,128)}', space=vmem, size = 0x9000, scoped, tag = 'internal scratch']
  #allocation2 [shape = 'bf16[96,128]{1,0:T(8,128)(2,1)}', space=vmem, size = 0x6000, scoped, tag = 'scratch operand']
  %s0 = inlined_call_operand.vmem [shape: f32[80,128], index: 0, kind: input, shape index: {}]
  %s1 = inlined_call_operand.vmem [shape: f32[80,1], index: 1, kind: input, shape index: {}]
  %s2 = inlined_call_operand.hbm [shape: f32[3,2,2,128], index: 2, kind: input, shape index: {}]
  %s3 = inlined_call_operand.hbm [shape: bf16[3,2,896,128], index: 3, kind: input, shape index: {}]
  %s4 = inlined_call_operand.hbm [shape: f32[3,1,128], index: 4, kind: input, shape index: {}]
  %s5 = inlined_call_operand.hbm [shape: bf16[3,128,128], index: 5, kind: input, shape index: {}]
  %s6 = inlined_call_operand.hbm [shape: f32[3,2,128], index: 6, kind: input, shape index: {}]
  %s7 = inlined_call_operand.hbm [shape: bf16[3,128,128], index: 7, kind: input, shape index: {}]
  %s8 = inlined_call_operand.hbm [shape: f32[3,2,128], index: 8, kind: input, shape index: {}]
  %s9 = inlined_call_operand.hbm [shape: bf16[3,128,128], index: 9, kind: input, shape index: {}]
  %s10 = inlined_call_operand.hbm [shape: bf16[3,128,128], index: 10, kind: input, shape index: {}]
  %s11 = inlined_call_operand.vmem [shape: f32[3,2,128], index: 11, kind: output, shape index: {}]
  %s12 = sld [smem:[#allocation0]]
  $region113: #{layer4_forward.1} parent=0
    _
  %s14 = ssub.s32 1, %s12
  %s15 = scalar_select 0, %s14, %s12
  $region1: #{layer4_forward.1} parent=0
    #allocation3 [shape = 'u8[4096]{0}', space=vmem, size = 0x1000, scoped, tag = 'input window, operand 2']
    #allocation4 [shape = 's32[2]{0}', space=sflag, size = 0x8, scoped, tag = 'scoped memory for layer4_forward.1']
    #allocation5 [shape = 'u8[917504]{0}', space=vmem, size = 0xe0000, scoped, tag = 'input window, operand 3']
    #allocation6 [shape = 's32[2]{0}', space=sflag, size = 0x8, scoped, tag = 'scoped memory for layer4_forward.1']
    #allocation7 [shape = 'u8[1024]{0}', space=vmem, size = 0x400, scoped, tag = 'input window, operand 4']
    #allocation8 [shape = 'u8[65536]{0}', space=vmem, size = 0x10000, scoped, tag = 'input window, operand 5']
    #allocation9 [shape = 's32[2]{0}', space=sflag, size = 0x8, scoped, tag = 'scoped memory for layer4_forward.1']
    #allocation10 [shape = 'u8[2048]{0}', space=vmem, size = 0x800, scoped, tag = 'input window, operand 6']
    #allocation11 [shape = 'u8[65536]{0}', space=vmem, size = 0x10000, scoped, tag = 'input window, operand 7']
    #allocation12 [shape = 's32[2]{0}', space=sflag, size = 0x8, scoped, tag = 'scoped memory for layer4_forward.1']
    #allocation13 [shape = 'u8[2048]{0}', space=vmem, size = 0x800, scoped, tag = 'input window, operand 8']
    #allocation14 [shape = 'u8[65536]{0}', space=vmem, size = 0x10000, scoped, tag = 'input window, operand 9']
    #allocation15 [shape = 's32[2]{0}', space=sflag, size = 0x8, scoped, tag = 'scoped memory for layer4_forward.1']
    #allocation16 [shape = 'u8[65536]{0}', space=vmem, size = 0x10000, scoped, tag = 'input window, operand 10']
    %16 = vsyncpa [#allocation4], 0
    %s17 = scalar_lea.sflag [#allocation4], 1
    %18 = vsyncpa %s17, 0
    %19 = vsyncpa [#allocation6], 0
    %s20 = scalar_lea.sflag [#allocation6], 1
    %21 = vsyncpa %s20, 0
    %22 = vsyncpa [#allocation9], 0
    %s23 = scalar_lea.sflag [#allocation9], 1
    %24 = vsyncpa %s23, 0
    %25 = vsyncpa [#allocation12], 0
    %s26 = scalar_lea.sflag [#allocation12], 1
    %27 = vsyncpa %s26, 0
    %28 = vsyncpa [#allocation15], 0
    %s29 = scalar_lea.sflag [#allocation15], 1
    %30 = vsyncpa %s29, 0
    loop: start=0, step=1, limit=5
    $region2: #{layer4_forward.1} parent=1 // loop_pre_header
      _
    $region3: #{layer4_forward.1} parent=1 // loop_header
      %s32 = sphi 0, %s36
      %p33 = scmp.ge.s32.totalorder %s32, 5
      %s40 = sphi 0, %s40
      %s42 = sphi 0, %s40
      %s43 = sphi 0, %s42
      %s57 = sphi 0, %s43
      %s61 = sphi 0, %s61
      %s63 = sphi 0, %s61
      %s64 = sphi 0, %s63
      %s78 = sphi 0, %s64
      %s84 = sphi 0, %s86
      %s87 = sphi 0, %s84
      %s88 = sphi 0, %s87
      %s104 = sphi 0, %s88
      %s110 = sphi 0, %s112
      %s113 = sphi 0, %s110
      %s114 = sphi 0, %s113
      %s130 = sphi 0, %s114
      %s136 = sphi 0, %s138
      %s139 = sphi 0, %s136
      %s140 = sphi 0, %s139
      %s156 = sphi 0, %s140
      %s162 = sphi 0, %s164
      %s165 = sphi 0, %s162
      %s166 = sphi 0, %s165
      %s182 = sphi 0, %s166
      %s188 = sphi 0, %s190
      %s191 = sphi 0, %s188
      %s192 = sphi 0, %s191
      %s208 = sphi 0, %s192
      %s214 = sphi 0, %s216
      %s217 = sphi 0, %s214
      %s218 = sphi 0, %s217
      %s234 = sphi 0, %s218
      %s240 = sphi 0, %s242
      %s243 = sphi 0, %s240
      %s244 = sphi 0, %s243
      %s260 = sphi 0, %s244
      %s266 = sphi 0, %s268
      %s269 = sphi 0, %s266
      %s270 = sphi 0, %s269
      %s286 = sphi 0, %s270
      %s292 = sphi 0, %s294
      %s295 = sphi 0, %s292
      %s296 = sphi 0, %s295
      %s312 = sphi 0, %s296
      %s318 = sphi 0, %s320
      %s321 = sphi 0, %s318
      %s322 = sphi 0, %s321
      %s338 = sphi 0, %s322
    $region4: #{layer4_forward.1} parent=1 // loop_header_branch
      %35 = sbr.rel (%p33) target = $region8
    $region5: #{layer4_forward.1} parent=1 // loop_body
      %s37 = ssub.s32 %s32, 1
      %s38 = ssub.s32 %s32, 2
      %s39 = sadd.s32 %s32, 1
      %s41 = sadd.s32 %s40, 1
      %p44 = scmp.eq.s32.totalorder %s32, 2
      %p45 = scmp.ne.s32.totalorder %s40, %s42
      %p46 = scmp.eq.s32.totalorder %s32, 0
      %p47 = por %p45, %p46
      %p48 = scmp.ne.s32.totalorder %s40, %s42
      %p49 = scmp.eq.s32.totalorder %s37, 2
      %p50 = por %p48, %p49
      %p51 = scmp.ne.s32.totalorder %s42, %s43
      %p52 = scmp.eq.s32.totalorder %s37, 0
      %p53 = por %p51, %p52
      %p54 = scmp.ne.s32.totalorder %s42, %s43
      %p55 = scmp.eq.s32.totalorder %s38, 2
      %p56 = por %p54, %p55
      %p58 = scmp.ne.s32.totalorder %s43, %s57
      %p59 = scmp.eq.s32.totalorder %s38, 0
      %p60 = por %p58, %p59
      %s62 = sadd.s32 %s61, 1
      %p65 = scmp.eq.s32.totalorder %s32, 2
      %p66 = scmp.ne.s32.totalorder %s61, %s63
      %p67 = scmp.eq.s32.totalorder %s32, 0
      %p68 = por %p66, %p67
      %p69 = scmp.ne.s32.totalorder %s61, %s63
      %p70 = scmp.eq.s32.totalorder %s37, 2
      %p71 = por %p69, %p70
      %p72 = scmp.ne.s32.totalorder %s63, %s64
      %p73 = scmp.eq.s32.totalorder %s37, 0
      %p74 = por %p72, %p73
      %p75 = scmp.ne.s32.totalorder %s63, %s64
      %p76 = scmp.eq.s32.totalorder %s38, 2
      %p77 = por %p75, %p76
      %p79 = scmp.ne.s32.totalorder %s64, %s78
      %p80 = scmp.eq.s32.totalorder %s38, 0
      %p81 = por %p79, %p80
      %s82 = ssub.s32 %s32, %s39
      %p83 = scmp.eq.s32.totalorder %s82, 0
      %s85 = sadd.s32 %s84, 1
      %s86 = scalar_select %p83, %s84, %s85
      %p89 = pneg %p83
      %p90 = scmp.eq.s32.totalorder %s32, 2
      %p91 = por %p89, %p90
      %p92 = scmp.ne.s32.totalorder %s84, %s87
      %p93 = scmp.eq.s32.totalorder %s32, 0
      %p94 = por %p92, %p93
      %p95 = scmp.ne.s32.totalorder %s84, %s87
      %p96 = scmp.eq.s32.totalorder %s37, 2
      %p97 = por %p95, %p96
      %p98 = scmp.ne.s32.totalorder %s87, %s88
      %p99 = scmp.eq.s32.totalorder %s37, 0
      %p100 = por %p98, %p99
      %p101 = scmp.ne.s32.totalorder %s87, %s88
      %p102 = scmp.eq.s32.totalorder %s38, 2
      %p103 = por %p101, %p102
      %p105 = scmp.ne.s32.totalorder %s88, %s104
      %p106 = scmp.eq.s32.totalorder %s38, 0
      %p107 = por %p105, %p106
      %s108 = ssub.s32 %s32, %s39
      %p109 = scmp.eq.s32.totalorder %s108, 0
      %s111 = sadd.s32 %s110, 1
      %s112 = scalar_select %p109, %s110, %s111
      %p115 = pneg %p109
      %p116 = scmp.eq.s32.totalorder %s32, 2
      %p117 = por %p115, %p116
      %p118 = scmp.ne.s32.totalorder %s110, %s113
      %p119 = scmp.eq.s32.totalorder %s32, 0
      %p120 = por %p118, %p119
      %p121 = scmp.ne.s32.totalorder %s110, %s113
      %p122 = scmp.eq.s32.totalorder %s37, 2
      %p123 = por %p121, %p122
      %p124 = scmp.ne.s32.totalorder %s113, %s114
      %p125 = scmp.eq.s32.totalorder %s37, 0
      %p126 = por %p124, %p125
      %p127 = scmp.ne.s32.totalorder %s113, %s114
      %p128 = scmp.eq.s32.totalorder %s38, 2
      %p129 = por %p127, %p128
      %p131 = scmp.ne.s32.totalorder %s114, %s130
      %p132 = scmp.eq.s32.totalorder %s38, 0
      %p133 = por %p131, %p132
      %s134 = ssub.s32 %s32, %s39
      %p135 = scmp.eq.s32.totalorder %s134, 0
      %s137 = sadd.s32 %s136, 1
      %s138 = scalar_select %p135, %s136, %s137
      %p141 = pneg %p135
      %p142 = scmp.eq.s32.totalorder %s32, 2
      %p143 = por %p141, %p142
      %p144 = scmp.ne.s32.totalorder %s136, %s139
      %p145 = scmp.eq.s32.totalorder %s32, 0
      %p146 = por %p144, %p145
      %p147 = scmp.ne.s32.totalorder %s136, %s139
      %p148 = scmp.eq.s32.totalorder %s37, 2
      %p149 = por %p147, %p148
      %p150 = scmp.ne.s32.totalorder %s139, %s140
      %p151 = scmp.eq.s32.totalorder %s37, 0
      %p152 = por %p150, %p151
      %p153 = scmp.ne.s32.totalorder %s139, %s140
      %p154 = scmp.eq.s32.totalorder %s38, 2
      %p155 = por %p153, %p154
      %p157 = scmp.ne.s32.totalorder %s140, %s156
      %p158 = scmp.eq.s32.totalorder %s38, 0
      %p159 = por %p157, %p158
      %s160 = ssub.s32 %s32, %s39
      %p161 = scmp.eq.s32.totalorder %s160, 0
      %s163 = sadd.s32 %s162, 1
      %s164 = scalar_select %p161, %s162, %s163
      %p167 = pneg %p161
      %p168 = scmp.eq.s32.totalorder %s32, 2
      %p169 = por %p167, %p168
      %p170 = scmp.ne.s32.totalorder %s162, %s165
      %p171 = scmp.eq.s32.totalorder %s32, 0
      %p172 = por %p170, %p171
      %p173 = scmp.ne.s32.totalorder %s162, %s165
      %p174 = scmp.eq.s32.totalorder %s37, 2
      %p175 = por %p173, %p174
      %p176 = scmp.ne.s32.totalorder %s165, %s166
      %p177 = scmp.eq.s32.totalorder %s37, 0
      %p178 = por %p176, %p177
      %p179 = scmp.ne.s32.totalorder %s165, %s166
      %p180 = scmp.eq.s32.totalorder %s38, 2
      %p181 = por %p179, %p180
      %p183 = scmp.ne.s32.totalorder %s166, %s182
      %p184 = scmp.eq.s32.totalorder %s38, 0
      %p185 = por %p183, %p184
      %s186 = ssub.s32 %s32, %s39
      %p187 = scmp.eq.s32.totalorder %s186, 0
      %s189 = sadd.s32 %s188, 1
      %s190 = scalar_select %p187, %s188, %s189
      %p193 = pneg %p187
      %p194 = scmp.eq.s32.totalorder %s32, 2
      %p195 = por %p193, %p194
      %p196 = scmp.ne.s32.totalorder %s188, %s191
      %p197 = scmp.eq.s32.totalorder %s32, 0
      %p198 = por %p196, %p197
      %p199 = scmp.ne.s32.totalorder %s188, %s191
      %p200 = scmp.eq.s32.totalorder %s37, 2
      %p201 = por %p199, %p200
      %p202 = scmp.ne.s32.totalorder %s191, %s192
      %p203 = scmp.eq.s32.totalorder %s37, 0
      %p204 = por %p202, %p203
      %p205 = scmp.ne.s32.totalorder %s191, %s192
      %p206 = scmp.eq.s32.totalorder %s38, 2
      %p207 = por %p205, %p206
      %p209 = scmp.ne.s32.totalorder %s192, %s208
      %p210 = scmp.eq.s32.totalorder %s38, 0
      %p211 = por %p209, %p210
      %s212 = ssub.s32 %s32, %s39
      %p213 = scmp.eq.s32.totalorder %s212, 0
      %s215 = sadd.s32 %s214, 1
      %s216 = scalar_select %p213, %s214, %s215
      %p219 = pneg %p213
      %p220 = scmp.eq.s32.totalorder %s32, 2
      %p221 = por %p219, %p220
      %p222 = scmp.ne.s32.totalorder %s214, %s217
      %p223 = scmp.eq.s32.totalorder %s32, 0
      %p224 = por %p222, %p223
      %p225 = scmp.ne.s32.totalorder %s214, %s217
      %p226 = scmp.eq.s32.totalorder %s37, 2
      %p227 = por %p225, %p226
      %p228 = scmp.ne.s32.totalorder %s217, %s218
      %p229 = scmp.eq.s32.totalorder %s37, 0
      %p230 = por %p228, %p229
      %p231 = scmp.ne.s32.totalorder %s217, %s218
      %p232 = scmp.eq.s32.totalorder %s38, 2
      %p233 = por %p231, %p232
      %p235 = scmp.ne.s32.totalorder %s218, %s234
      %p236 = scmp.eq.s32.totalorder %s38, 0
      %p237 = por %p235, %p236
      %s238 = ssub.s32 %s32, %s39
      %p239 = scmp.eq.s32.totalorder %s238, 0
      %s241 = sadd.s32 %s240, 1
      %s242 = scalar_select %p239, %s240, %s241
      %p245 = pneg %p239
      %p246 = scmp.eq.s32.totalorder %s32, 2
      %p247 = por %p245, %p246
      %p248 = scmp.ne.s32.totalorder %s240, %s243
      %p249 = scmp.eq.s32.totalorder %s32, 0
      %p250 = por %p248, %p249
      %p251 = scmp.ne.s32.totalorder %s240, %s243
      %p252 = scmp.eq.s32.totalorder %s37, 2
      %p253 = por %p251, %p252
      %p254 = scmp.ne.s32.totalorder %s243, %s244
      %p255 = scmp.eq.s32.totalorder %s37, 0
      %p256 = por %p254, %p255
      %p257 = scmp.ne.s32.totalorder %s243, %s244
      %p258 = scmp.eq.s32.totalorder %s38, 2
      %p259 = por %p257, %p258
      %p261 = scmp.ne.s32.totalorder %s244, %s260
      %p262 = scmp.eq.s32.totalorder %s38, 0
      %p263 = por %p261, %p262
      %s264 = ssub.s32 %s32, %s39
      %p265 = scmp.eq.s32.totalorder %s264, 0
      %s267 = sadd.s32 %s266, 1
      %s268 = scalar_select %p265, %s266, %s267
      %p271 = pneg %p265
      %p272 = scmp.eq.s32.totalorder %s32, 2
      %p273 = por %p271, %p272
      %p274 = scmp.ne.s32.totalorder %s266, %s269
      %p275 = scmp.eq.s32.totalorder %s32, 0
      %p276 = por %p274, %p275
      %p277 = scmp.ne.s32.totalorder %s266, %s269
      %p278 = scmp.eq.s32.totalorder %s37, 2
      %p279 = por %p277, %p278
      %p280 = scmp.ne.s32.totalorder %s269, %s270
      %p281 = scmp.eq.s32.totalorder %s37, 0
      %p282 = por %p280, %p281
      %p283 = scmp.ne.s32.totalorder %s269, %s270
      %p284 = scmp.eq.s32.totalorder %s38, 2
      %p285 = por %p283, %p284
      %p287 = scmp.ne.s32.totalorder %s270, %s286
      %p288 = scmp.eq.s32.totalorder %s38, 0
      %p289 = por %p287, %p288
      %s290 = ssub.s32 %s32, %s39
      %p291 = scmp.eq.s32.totalorder %s290, 0
      %s293 = sadd.s32 %s292, 1
      %s294 = scalar_select %p291, %s292, %s293
      %p297 = pneg %p291
      %p298 = scmp.eq.s32.totalorder %s32, 2
      %p299 = por %p297, %p298
      %p300 = scmp.ne.s32.totalorder %s292, %s295
      %p301 = scmp.eq.s32.totalorder %s32, 0
      %p302 = por %p300, %p301
      %p303 = scmp.ne.s32.totalorder %s292, %s295
      %p304 = scmp.eq.s32.totalorder %s37, 2
      %p305 = por %p303, %p304
      %p306 = scmp.ne.s32.totalorder %s295, %s296
      %p307 = scmp.eq.s32.totalorder %s37, 0
      %p308 = por %p306, %p307
      %p309 = scmp.ne.s32.totalorder %s295, %s296
      %p310 = scmp.eq.s32.totalorder %s38, 2
      %p311 = por %p309, %p310
      %p313 = scmp.ne.s32.totalorder %s296, %s312
      %p314 = scmp.eq.s32.totalorder %s38, 0
      %p315 = por %p313, %p314
      %s316 = ssub.s32 %s32, %s39
      %p317 = scmp.eq.s32.totalorder %s316, 0
      %s319 = sadd.s32 %s318, 1
      %s320 = scalar_select %p317, %s318, %s319
      %p323 = pneg %p317
      %p324 = scmp.eq.s32.totalorder %s32, 2
      %p325 = por %p323, %p324
      %p326 = scmp.ne.s32.totalorder %s318, %s321
      %p327 = scmp.eq.s32.totalorder %s32, 0
      %p328 = por %p326, %p327
      %p329 = scmp.ne.s32.totalorder %s318, %s321
      %p330 = scmp.eq.s32.totalorder %s37, 2
      %p331 = por %p329, %p330
      %p332 = scmp.ne.s32.totalorder %s321, %s322
      %p333 = scmp.eq.s32.totalorder %s37, 0
      %p334 = por %p332, %p333
      %p335 = scmp.ne.s32.totalorder %s321, %s322
      %p336 = scmp.eq.s32.totalorder %s38, 2
      %p337 = por %p335, %p336
      %p339 = scmp.ne.s32.totalorder %s322, %s338
      %p340 = scmp.eq.s32.totalorder %s38, 0
      %p341 = por %p339, %p340
      %p342 = scmp.le.s32.totalorder 1, %s32
      %p343 = scmp.lt.s32.totalorder %s32, 4
      %p344 = pnand %p342, %p343
      %p345 = pneg %p344
      // Predicated region
      $region9: #{layer4_forward.1} parent=5 // pred_check
        _
      $region10: #{layer4_forward.1} parent=5 // pred_check_branch
        %347 = sbr.rel (%p344) target = $region12
      $region11: #{layer4_forward.1} parent=5 // pred_region
        %s348 = ssub.s32 %s32, 1
        // Predicated region
        $region13: #{layer4_forward.1} parent=11 // pred_check
          %p349 = pneg %p53
        $region14: #{layer4_forward.1} parent=11 // pred_check_branch
          %351 = sbr.rel (%p349) target = $region16
        $region15: #{layer4_forward.1} parent=11 // pred_region
          _
        $region16: #{layer4_forward.1} parent=11 // pred_fallthru
          _
        // Predicated region
        $region17: #{layer4_forward.1} parent=11 // pred_check
          %p352 = pneg %p74
        $region18: #{layer4_forward.1} parent=11 // pred_check_branch
          %354 = sbr.rel (%p352) target = $region20
        $region19: #{layer4_forward.1} parent=11 // pred_region
          _
        $region20: #{layer4_forward.1} parent=11 // pred_fallthru
          _
      $region12: #{layer4_forward.1} parent=5 // pred_fallthru
        _
      %p355 = scmp.lt.s32.totalorder %s32, 3
      // Predicated region
      $region21: #{layer4_forward.1} parent=5 // pred_check
        %p356 = pneg %p355
      $region22: #{layer4_forward.1} parent=5 // pred_check_branch
        %358 = sbr.rel (%p356) target = $region24
      $region23: #{layer4_forward.1} parent=5 // pred_region
        // Predicated region
        $region25: #{layer4_forward.1} parent=23 // pred_check
          %p359 = pneg %p94
        $region26: #{layer4_forward.1} parent=23 // pred_check_branch
          %361 = sbr.rel (%p359) target = $region28
        $region27: #{layer4_forward.1} parent=23 // pred_region
          %s362 = sand.u32 %s84, 1
          %s363 = scalar_lea.sflag [#allocation4], %s362
          %s364 = sand.u32 %s84, 1
          %s365 = smul.addr %s364, 4
          %s366 = scalar_lea.vmem [#allocation3], %s365
          %368 = vsyncadd %s363, 0
          %s369 = smul.addr %s32, 2
          %s370 = smul.addr %s369, 2
          %s371 = scalar_lea.hbm %s2, %s370
          %s372 = sshll.u32 %s371, 4
          %s373 = int_to_ptr.hbm [resolvable:$true] %s372
          %s374 = sshll.u32 %s366, 4
          %s375 = int_to_ptr.vmem [resolvable:$true] %s374
          %380 = dma.hbm_to_vmem [thread:$0]  %s373, 64, %s375, %s363, 32, 32, 2
        $region28: #{layer4_forward.1} parent=23 // pred_fallthru
          _
        // Predicated region
        $region29: #{layer4_forward.1} parent=23 // pred_check
          %p381 = pneg %p120
        $region30: #{layer4_forward.1} parent=23 // pred_check_branch
          %383 = sbr.rel (%p381) target = $region32
        $region31: #{layer4_forward.1} parent=23 // pred_region
          %s384 = sand.u32 %s32, 1
          %s385 = scalar_lea.sflag [#allocation6], %s384
          %s386 = sand.u32 %s110, 1
          %s387 = smul.addr %s386, 896
          %s388 = scalar_lea.vmem [#allocation5], %s387
          %390 = vsyncadd %s385, 0
          %s391 = smul.addr %s32, 224
          %s392 = smul.addr %s391, 4
          %s393 = scalar_lea.hbm %s3, %s392
          %s394 = sshll.u32 %s393, 4
          %s395 = int_to_ptr.hbm [resolvable:$true] %s394
          %s396 = sshll.u32 %s388, 4
          %s397 = int_to_ptr.vmem [resolvable:$true] %s396
          %402 = dma.hbm_to_vmem [thread:$0]  %s395, 14336, %s397, %s385, 64, 64, 4
        $region32: #{layer4_forward.1} parent=23 // pred_fallthru
          _
        // Predicated region
        $region33: #{layer4_forward.1} parent=23 // pred_check
          %p403 = pneg %p146
        $region34: #{layer4_forward.1} parent=23 // pred_check_branch
          %405 = sbr.rel (%p403) target = $region36
        $region35: #{layer4_forward.1} parent=23 // pred_region
          %s406 = sand.u32 %s32, 1
          %s407 = scalar_lea.sflag [#allocation6], %s406
          %s408 = sand.u32 %s136, 1
          %s409 = scalar_lea.vmem [#allocation7], %s408
          %411 = vsyncadd %s407, 0
          %s412 = scalar_lea.hbm %s4, %s32
          %s414 = sshll.u32 %s412, 4
          %s415 = int_to_ptr.hbm [resolvable:$true] %s414
          %s416 = sshll.u32 %s409, 4
          %s417 = int_to_ptr.vmem [resolvable:$true] %s416
          %419 = dma.hbm_to_vmem [thread:$0]  %s415, 16, %s417, %s407
        $region36: #{layer4_forward.1} parent=23 // pred_fallthru
          _
        // Predicated region
        $region37: #{layer4_forward.1} parent=23 // pred_check
          %p420 = pneg %p172
        $region38: #{layer4_forward.1} parent=23 // pred_check_branch
          %422 = sbr.rel (%p420) target = $region40
        $region39: #{layer4_forward.1} parent=23 // pred_region
          %s423 = sand.u32 %s32, 1
          %s424 = scalar_lea.sflag [#allocation9], %s423
          %s425 = sand.u32 %s162, 1
          %s426 = smul.addr %s425, 64
          %s427 = scalar_lea.vmem [#allocation8], %s426
          %429 = vsyncadd %s424, 0
          %s430 = smul.addr %s32, 16
          %s431 = smul.addr %s430, 4
          %s432 = scalar_lea.hbm %s5, %s431
          %s433 = sshll.u32 %s432, 4
          %s434 = int_to_ptr.hbm [resolvable:$true] %s433
          %s435 = sshll.u32 %s427, 4
          %s436 = int_to_ptr.vmem [resolvable:$true] %s435
          %441 = dma.hbm_to_vmem [thread:$0]  %s434, 1024, %s436, %s424, 64, 64, 4
        $region40: #{layer4_forward.1} parent=23 // pred_fallthru
          _
        // Predicated region
        $region41: #{layer4_forward.1} parent=23 // pred_check
          %p442 = pneg %p198
        $region42: #{layer4_forward.1} parent=23 // pred_check_branch
          %444 = sbr.rel (%p442) target = $region44
        $region43: #{layer4_forward.1} parent=23 // pred_region
          %s445 = sand.u32 %s32, 1
          %s446 = scalar_lea.sflag [#allocation9], %s445
          %s447 = sand.u32 %s188, 1
          %s448 = smul.addr %s447, 2
          %s449 = scalar_lea.vmem [#allocation10], %s448
          %451 = vsyncadd %s446, 0
          %s452 = smul.addr %s32, 2
          %s453 = scalar_lea.hbm %s6, %s452
          %s455 = sshll.u32 %s453, 4
          %s456 = int_to_ptr.hbm [resolvable:$true] %s455
          %s457 = sshll.u32 %s449, 4
          %s458 = int_to_ptr.vmem [resolvable:$true] %s457
          %460 = dma.hbm_to_vmem [thread:$0]  %s456, 32, %s458, %s446
        $region44: #{layer4_forward.1} parent=23 // pred_fallthru
          _
        // Predicated region
        $region45: #{layer4_forward.1} parent=23 // pred_check
          %p461 = pneg %p224
        $region46: #{layer4_forward.1} parent=23 // pred_check_branch
          %463 = sbr.rel (%p461) target = $region48
        $region47: #{layer4_forward.1} parent=23 // pred_region
          %s464 = sand.u32 %s32, 1
          %s465 = scalar_lea.sflag [#allocation12], %s464
          %s466 = sand.u32 %s214, 1
          %s467 = smul.addr %s466, 64
          %s468 = scalar_lea.vmem [#allocation11], %s467
          %470 = vsyncadd %s465, 0
          %s471 = smul.addr %s32, 16
          %s472 = smul.addr %s471, 4
          %s473 = scalar_lea.hbm %s7, %s472
          %s474 = sshll.u32 %s473, 4
          %s475 = int_to_ptr.hbm [resolvable:$true] %s474
          %s476 = sshll.u32 %s468, 4
          %s477 = int_to_ptr.vmem [resolvable:$true] %s476
          %482 = dma.hbm_to_vmem [thread:$0]  %s475, 1024, %s477, %s465, 64, 64, 4
        $region48: #{layer4_forward.1} parent=23 // pred_fallthru
          _
        // Predicated region
        $region49: #{layer4_forward.1} parent=23 // pred_check
          %p483 = pneg %p250
        $region50: #{layer4_forward.1} parent=23 // pred_check_branch
          %485 = sbr.rel (%p483) target = $region52
        $region51: #{layer4_forward.1} parent=23 // pred_region
          %s486 = sand.u32 %s32, 1
          %s487 = scalar_lea.sflag [#allocation12], %s486
          %s488 = sand.u32 %s240, 1
          %s489 = smul.addr %s488, 2
          %s490 = scalar_lea.vmem [#allocation13], %s489
          %492 = vsyncadd %s487, 0
          %s493 = smul.addr %s32, 2
          %s494 = scalar_lea.hbm %s8, %s493
          %s496 = sshll.u32 %s494, 4
          %s497 = int_to_ptr.hbm [resolvable:$true] %s496
          %s498 = sshll.u32 %s490, 4
          %s499 = int_to_ptr.vmem [resolvable:$true] %s498
          %501 = dma.hbm_to_vmem [thread:$0]  %s497, 32, %s499, %s487
        $region52: #{layer4_forward.1} parent=23 // pred_fallthru
          _
        // Predicated region
        $region53: #{layer4_forward.1} parent=23 // pred_check
          %p502 = pneg %p276
        $region54: #{layer4_forward.1} parent=23 // pred_check_branch
          %504 = sbr.rel (%p502) target = $region56
        $region55: #{layer4_forward.1} parent=23 // pred_region
          %s505 = sand.u32 %s32, 1
          %s506 = scalar_lea.sflag [#allocation15], %s505
          %s507 = sand.u32 %s266, 1
          %s508 = smul.addr %s507, 64
          %s509 = scalar_lea.vmem [#allocation14], %s508
          %511 = vsyncadd %s506, 0
          %s512 = smul.addr %s32, 16
          %s513 = smul.addr %s512, 4
          %s514 = scalar_lea.hbm %s9, %s513
          %s515 = sshll.u32 %s514, 4
          %s516 = int_to_ptr.hbm [resolvable:$true] %s515
          %s517 = sshll.u32 %s509, 4
          %s518 = int_to_ptr.vmem [resolvable:$true] %s517
          %523 = dma.hbm_to_vmem [thread:$0]  %s516, 1024, %s518, %s506, 64, 64, 4
        $region56: #{layer4_forward.1} parent=23 // pred_fallthru
          _
        // Predicated region
        $region57: #{layer4_forward.1} parent=23 // pred_check
          %p524 = pneg %p302
        $region58: #{layer4_forward.1} parent=23 // pred_check_branch
          %526 = sbr.rel (%p524) target = $region60
        $region59: #{layer4_forward.1} parent=23 // pred_region
          %s527 = sand.u32 %s32, 1
          %s528 = scalar_lea.sflag [#allocation15], %s527
          %s529 = sand.u32 %s292, 1
          %s530 = smul.addr %s529, 64
          %s531 = scalar_lea.vmem [#allocation16], %s530
          %533 = vsyncadd %s528, 0
          %s534 = smul.addr %s32, 16
          %s535 = smul.addr %s534, 4
          %s536 = scalar_lea.hbm %s10, %s535
          %s537 = sshll.u32 %s536, 4
          %s538 = int_to_ptr.hbm [resolvable:$true] %s537
          %s539 = sshll.u32 %s531, 4
          %s540 = int_to_ptr.vmem [resolvable:$true] %s539
          %545 = dma.hbm_to_vmem [thread:$0]  %s538, 1024, %s540, %s528, 64, 64, 4
        $region60: #{layer4_forward.1} parent=23 // pred_fallthru
          _
      $region24: #{layer4_forward.1} parent=5 // pred_fallthru
        _
      %p546 = scmp.le.s32.totalorder 1, %s32
      %p547 = scmp.lt.s32.totalorder %s32, 4
      %p548 = pnand %p546, %p547
      %p549 = pneg %p548
      // Predicated region
      $region61: #{layer4_forward.1} parent=5 // pred_check
        _
      $region62: #{layer4_forward.1} parent=5 // pred_check_branch
        %551 = sbr.rel (%p548) target = $region64
      $region63: #{layer4_forward.1} parent=5 // pred_region
        %s552 = ssub.s32 %s32, 1
        %s553 = sand.u32 %s87, 1
        %s554 = scalar_lea.sflag [#allocation4], %s553
        %s555 = sand.u32 %s87, 1
        %s556 = smul.addr %s555, 4
        %s557 = scalar_lea.vmem [#allocation3], %s556
        // Predicated region
        $region65: #{layer4_forward.1} parent=63 // pred_check
          %p558 = pneg %p100
        $region66: #{layer4_forward.1} parent=63 // pred_check_branch
          %560 = sbr.rel (%p558) target = $region68
        $region67: #{layer4_forward.1} parent=63 // pred_region
          %562 = dma.done %s554, 64
        $region68: #{layer4_forward.1} parent=63 // pred_fallthru
          _
        %s563 = sand.u32 %s37, 1
        %s564 = scalar_lea.sflag [#allocation6], %s563
        %s565 = sand.u32 %s113, 1
        %s566 = smul.addr %s565, 896
        %s567 = scalar_lea.vmem [#allocation5], %s566
        // Predicated region
        $region69: #{layer4_forward.1} parent=63 // pred_check
          %p568 = pneg %p126
        $region70: #{layer4_forward.1} parent=63 // pred_check_branch
          %570 = sbr.rel (%p568) target = $region72
        $region71: #{layer4_forward.1} parent=63 // pred_region
          %572 = dma.done %s564, 14336
        $region72: #{layer4_forward.1} parent=63 // pred_fallthru
          _
        %s573 = sand.u32 %s37, 1
        %s574 = scalar_lea.sflag [#allocation6], %s573
        %s575 = sand.u32 %s139, 1
        %s576 = scalar_lea.vmem [#allocation7], %s575
        // Predicated region
        $region73: #{layer4_forward.1} parent=63 // pred_check
          %p577 = pneg %p152
        $region74: #{layer4_forward.1} parent=63 // pred_check_branch
          %579 = sbr.rel (%p577) target = $region76
        $region75: #{layer4_forward.1} parent=63 // pred_region
          %581 = dma.done %s574, 16
        $region76: #{layer4_forward.1} parent=63 // pred_fallthru
          _
        %s582 = sand.u32 %s37, 1
        %s583 = scalar_lea.sflag [#allocation9], %s582
        %s584 = sand.u32 %s165, 1
        %s585 = smul.addr %s584, 64
        %s586 = scalar_lea.vmem [#allocation8], %s585
        // Predicated region
        $region77: #{layer4_forward.1} parent=63 // pred_check
          %p587 = pneg %p178
        $region78: #{layer4_forward.1} parent=63 // pred_check_branch
          %589 = sbr.rel (%p587) target = $region80
        $region79: #{layer4_forward.1} parent=63 // pred_region
          %591 = dma.done %s583, 1024
        $region80: #{layer4_forward.1} parent=63 // pred_fallthru
          _
        %s592 = sand.u32 %s37, 1
        %s593 = scalar_lea.sflag [#allocation9], %s592
        %s594 = sand.u32 %s191, 1
        %s595 = smul.addr %s594, 2
        %s596 = scalar_lea.vmem [#allocation10], %s595
        // Predicated region
        $region81: #{layer4_forward.1} parent=63 // pred_check
          %p597 = pneg %p204
        $region82: #{layer4_forward.1} parent=63 // pred_check_branch
          %599 = sbr.rel (%p597) target = $region84
        $region83: #{layer4_forward.1} parent=63 // pred_region
          %601 = dma.done %s593, 32
        $region84: #{layer4_forward.1} parent=63 // pred_fallthru
          _
        %s602 = sand.u32 %s37, 1
        %s603 = scalar_lea.sflag [#allocation12], %s602
        %s604 = sand.u32 %s217, 1
        %s605 = smul.addr %s604, 64
        %s606 = scalar_lea.vmem [#allocation11], %s605
        // Predicated region
        $region85: #{layer4_forward.1} parent=63 // pred_check
          %p607 = pneg %p230
        $region86: #{layer4_forward.1} parent=63 // pred_check_branch
          %609 = sbr.rel (%p607) target = $region88
        $region87: #{layer4_forward.1} parent=63 // pred_region
          %611 = dma.done %s603, 1024
        $region88: #{layer4_forward.1} parent=63 // pred_fallthru
          _
        %s612 = sand.u32 %s37, 1
        %s613 = scalar_lea.sflag [#allocation12], %s612
        %s614 = sand.u32 %s243, 1
        %s615 = smul.addr %s614, 2
        %s616 = scalar_lea.vmem [#allocation13], %s615
        // Predicated region
        $region89: #{layer4_forward.1} parent=63 // pred_check
          %p617 = pneg %p256
        $region90: #{layer4_forward.1} parent=63 // pred_check_branch
          %619 = sbr.rel (%p617) target = $region92
        $region91: #{layer4_forward.1} parent=63 // pred_region
          %621 = dma.done %s613, 32
        $region92: #{layer4_forward.1} parent=63 // pred_fallthru
          _
        %s622 = sand.u32 %s37, 1
        %s623 = scalar_lea.sflag [#allocation15], %s622
        %s624 = sand.u32 %s269, 1
        %s625 = smul.addr %s624, 64
        %s626 = scalar_lea.vmem [#allocation14], %s625
        // Predicated region
        $region93: #{layer4_forward.1} parent=63 // pred_check
          %p627 = pneg %p282
        $region94: #{layer4_forward.1} parent=63 // pred_check_branch
          %629 = sbr.rel (%p627) target = $region96
        $region95: #{layer4_forward.1} parent=63 // pred_region
          %631 = dma.done %s623, 1024
        $region96: #{layer4_forward.1} parent=63 // pred_fallthru
          _
        %s632 = sand.u32 %s37, 1
        %s633 = scalar_lea.sflag [#allocation15], %s632
        %s634 = sand.u32 %s295, 1
        %s635 = smul.addr %s634, 64
        %s636 = scalar_lea.vmem [#allocation16], %s635
        // Predicated region
        $region97: #{layer4_forward.1} parent=63 // pred_check
          %p637 = pneg %p308
        $region98: #{layer4_forward.1} parent=63 // pred_check_branch
          %639 = sbr.rel (%p637) target = $region100
        $region99: #{layer4_forward.1} parent=63 // pred_region
          %641 = dma.done %s633, 1024
        $region100: #{layer4_forward.1} parent=63 // pred_fallthru
          _
        %p642 = pneg %p53
        %p643 = pneg %p50
        %p644 = pneg %p74
        %p645 = pneg %p71
        %s646 = sand.u32 %s87, 1
        %s647 = scalar_lea.sflag [#allocation4], %s646
        %s648 = sand.u32 %s87, 1
        %s649 = smul.addr %s648, 4
        %s650 = scalar_lea.vmem [#allocation3], %s649
        %p651 = pneg %p100
        %p652 = pneg %p97
        %s653 = sand.u32 %s37, 1
        %s654 = scalar_lea.sflag [#allocation6], %s653
        %s655 = sand.u32 %s113, 1
        %s656 = smul.addr %s655, 896
        %s657 = scalar_lea.vmem [#allocation5], %s656
        %p658 = pneg %p126
        %p659 = pneg %p123
        %s660 = sand.u32 %s37, 1
        %s661 = scalar_lea.sflag [#allocation6], %s660
        %s662 = sand.u32 %s139, 1
        %s663 = scalar_lea.vmem [#allocation7], %s662
        %p664 = pneg %p152
        %p665 = pneg %p149
        %s666 = sand.u32 %s37, 1
        %s667 = scalar_lea.sflag [#allocation9], %s666
        %s668 = sand.u32 %s165, 1
        %s669 = smul.addr %s668, 64
        %s670 = scalar_lea.vmem [#allocation8], %s669
        %p671 = pneg %p178
        %p672 = pneg %p175
        %s673 = sand.u32 %s37, 1
        %s674 = scalar_lea.sflag [#allocation9], %s673
        %s675 = sand.u32 %s191, 1
        %s676 = smul.addr %s675, 2
        %s677 = scalar_lea.vmem [#allocation10], %s676
        %p678 = pneg %p204
        %p679 = pneg %p201
        %s680 = sand.u32 %s37, 1
        %s681 = scalar_lea.sflag [#allocation12], %s680
        %s682 = sand.u32 %s217, 1
        %s683 = smul.addr %s682, 64
        %s684 = scalar_lea.vmem [#allocation11], %s683
        %p685 = pneg %p230
        %p686 = pneg %p227
        %s687 = sand.u32 %s37, 1
        %s688 = scalar_lea.sflag [#allocation12], %s687
        %s689 = sand.u32 %s243, 1
        %s690 = smul.addr %s689, 2
        %s691 = scalar_lea.vmem [#allocation13], %s690
        %p692 = pneg %p256
        %p693 = pneg %p253
        %s694 = sand.u32 %s37, 1
        %s695 = scalar_lea.sflag [#allocation15], %s694
        %s696 = sand.u32 %s269, 1
        %s697 = smul.addr %s696, 64
        %s698 = scalar_lea.vmem [#allocation14], %s697
        %p699 = pneg %p282
        %p700 = pneg %p279
        %s701 = sand.u32 %s37, 1
        %s702 = scalar_lea.sflag [#allocation15], %s701
        %s703 = sand.u32 %s295, 1
        %s704 = smul.addr %s703, 64
        %s705 = scalar_lea.vmem [#allocation16], %s704
        %p706 = pneg %p308
        %p707 = pneg %p305
        %p708 = pneg %p334
        %p709 = pneg %p331
        %p710 = scmp.lt.s32.totalorder %s37, 2
        %s711 = scalar_select %p710, %s37, 2
        %s712 = smul.addr %s711, 2
        %s713 = scalar_lea.vmem %s11, %s712
        %p714 = scmp.lt.s32.totalorder %s37, 2
        %s715 = scalar_select %p714, %s37, 2
        %s716 = smul.addr %s715, 2
        %s717 = scalar_lea.vmem %s11, %s716
        %vm719 = vcmask 1043458
        %vm720 = vsmask.f32 7946
        %vm721 = vmand %vm719, %vm720
        %v722 = vld [vmem:[#allocation2] sm:$0xc]
        %v723 = vsel %vm721, 0, %v722
        %724 = vst [vmem:[#allocation2] sm:$0xc] %v723
        %vm725 = vcmask 1041408
        %vm726 = vsmask.f32 1280
        %vm727 = vmand %vm725, %vm726
        %v728 = vld [vmem:[#allocation2 + $0x2c] sm:$0x3]
        %v729 = vsel %vm727, 0, %v728
        %730 = vst [vmem:[#allocation2 + $0x2c] sm:$0x3] %v729
        %v731 = vld [vmem:[%s1] sm:$0xff]
        %v732 = vld [vmem:[%s1 + $0x8] sm:$0xff]
        %v733 = vld [vmem:[%s1 + $0x10] sm:$0xff]
        %v734 = vld [vmem:[%s1 + $0x18] sm:$0xff]
        %v735 = vld [vmem:[%s1 + $0x20] sm:$0xff]
        %v736 = vld [vmem:[%s1 + $0x28] sm:$0xff]
        %v737 = vld [vmem:[%s1 + $0x30] sm:$0xff]
        %v738 = vld [vmem:[%s1 + $0x38] sm:$0xff]
        %v739 = vld [vmem:[%s1 + $0x40] sm:$0xff]
        %v740 = vld [vmem:[%s1 + $0x48] sm:$0xff]
        %742 = vset.pattern.permute.xlu0 0
        %743 = vperm.xlu0 %742, %v731
        %v744 = vpop.permute.xlu0 %743
        %747 = vset.pattern.permute.xlu0 0
        %748 = vperm.xlu0 %747, %v732
        %v749 = vpop.permute.xlu0 %748
        %752 = vset.pattern.permute.xlu0 0
        %753 = vperm.xlu0 %752, %v733
        %v754 = vpop.permute.xlu0 %753
        %757 = vset.pattern.permute.xlu0 0
        %758 = vperm.xlu0 %757, %v734
        %v759 = vpop.permute.xlu0 %758
        %762 = vset.pattern.permute.xlu0 0
        %763 = vperm.xlu0 %762, %v735
        %v764 = vpop.permute.xlu0 %763
        %767 = vset.pattern.permute.xlu0 0
        %768 = vperm.xlu0 %767, %v736
        %v769 = vpop.permute.xlu0 %768
        %772 = vset.pattern.permute.xlu0 0
        %773 = vperm.xlu0 %772, %v737
        %v774 = vpop.permute.xlu0 %773
        %777 = vset.pattern.permute.xlu0 0
        %778 = vperm.xlu0 %777, %v738
        %v779 = vpop.permute.xlu0 %778
        %782 = vset.pattern.permute.xlu0 0
        %783 = vperm.xlu0 %782, %v739
        %v784 = vpop.permute.xlu0 %783
        %787 = vset.pattern.permute.xlu0 0
        %788 = vperm.xlu0 %787, %v740
        %v789 = vpop.permute.xlu0 %788
        %v791 = vld [vmem:[%s0] sm:$0xff]
        %v792 = vld [vmem:[%s0 + $0x8] sm:$0xff]
        %v793 = vld [vmem:[%s0 + $0x10] sm:$0xff]
        %v794 = vld [vmem:[%s0 + $0x18] sm:$0xff]
        %v795 = vld [vmem:[%s0 + $0x20] sm:$0xff]
        %v796 = vld [vmem:[%s0 + $0x28] sm:$0xff]
        %v797 = vld [vmem:[%s0 + $0x30] sm:$0xff]
        %v798 = vld [vmem:[%s0 + $0x38] sm:$0xff]
        %v799 = vld [vmem:[%s0 + $0x40] sm:$0xff]
        %v800 = vld [vmem:[%s0 + $0x48] sm:$0xff]
        %v801 = vld [vmem:[%s557] sm:$0x3]
        %v802 = vperm.slane %v801, 0
        %v803 = vmul.f32 %v791, %v802
        %v804 = vmul.f32 %v792, %v802
        %v805 = vmul.f32 %v793, %v802
        %v806 = vmul.f32 %v794, %v802
        %v807 = vmul.f32 %v795, %v802
        %v808 = vmul.f32 %v796, %v802
        %v809 = vmul.f32 %v797, %v802
        %v810 = vmul.f32 %v798, %v802
        %v811 = vmul.f32 %v799, %v802
        %v812 = vmul.f32 %v800, %v802
        %v813 = vperm.slane %v801, 1
        %v814 = vadd.f32 %v803, %v813
        %v815 = vadd.f32 %v804, %v813
        %v816 = vadd.f32 %v805, %v813
        %v817 = vadd.f32 %v806, %v813
        %v818 = vadd.f32 %v807, %v813
        %v819 = vadd.f32 %v808, %v813
        %v820 = vadd.f32 %v809, %v813
        %v821 = vadd.f32 %v810, %v813
        %v822 = vadd.f32 %v811, %v813
        %v823 = vadd.f32 %v812, %v813
        %v824 = vmax.f32 %v814, 0.0
        %v825 = vmax.f32 %v815, 0.0
        %v826 = vmax.f32 %v816, 0.0
        %v827 = vmax.f32 %v817, 0.0
        %v828 = vmax.f32 %v818, 0.0
        %v829 = vmax.f32 %v819, 0.0
        %v830 = vmax.f32 %v820, 0.0
        %v831 = vmax.f32 %v821, 0.0
        %v832 = vmax.f32 %v822, 0.0
        %v833 = vmax.f32 %v823, 0.0
        %v834 = vmul.f32 %v824, %v744
        %v835 = vmul.f32 %v825, %v749
        %v836 = vmul.f32 %v826, %v754
        %v837 = vmul.f32 %v827, %v759
        %v838 = vmul.f32 %v828, %v764
        %v839 = vmul.f32 %v829, %v769
        %v840 = vmul.f32 %v830, %v774
        %v841 = vmul.f32 %v831, %v779
        %v842 = vmul.f32 %v832, %v784
        %v843 = vmul.f32 %v833, %v789
        %v844 = vpack.c.bf16 %v834, %v834
        %v845 = vpack.c.bf16 %v835, %v835
        %v846 = vpack.c.bf16 %v836, %v836
        %v847 = vpack.c.bf16 %v837, %v837
        %v848 = vpack.c.bf16 %v838, %v838
        %v849 = vpack.c.bf16 %v839, %v839
        %v850 = vpack.c.bf16 %v840, %v840
        %v851 = vpack.c.bf16 %v841, %v841
        %v852 = vpack.c.bf16 %v842, %v842
        %v853 = vpack.c.bf16 %v843, %v843
        %854 = vst [vmem:[#allocation2 + $0x4] sm:$0xf] %v844
        %855 = vst [vmem:[#allocation2 + $0x8] sm:$0xf] %v845
        %856 = vst [vmem:[#allocation2 + $0xc] sm:$0xf] %v846
        %857 = vst [vmem:[#allocation2 + $0x10] sm:$0xf] %v847
        %858 = vst [vmem:[#allocation2 + $0x14] sm:$0xf] %v848
        %859 = vst [vmem:[#allocation2 + $0x18] sm:$0xf] %v849
        %860 = vst [vmem:[#allocation2 + $0x1c] sm:$0xf] %v850
        %861 = vst [vmem:[#allocation2 + $0x20] sm:$0xf] %v851
        %862 = vst [vmem:[#allocation2 + $0x24] sm:$0xf] %v852
        %863 = vst [vmem:[#allocation2 + $0x28] sm:$0xf] %v853
        %v864 = vld [vmem:[#allocation2] sm:$0xc]
        %v865 = vld [vmem:[#allocation2 + $0x4] sm:$0xf]
        %v866 = vld [vmem:[#allocation2 + $0x8] sm:$0xf]
        %v867 = vld [vmem:[#allocation2 + $0xc] sm:$0xf]
        %v868 = vld [vmem:[#allocation2 + $0x10] sm:$0xf]
        %v869 = vld [vmem:[#allocation2 + $0x14] sm:$0xf]
        %v870 = vld [vmem:[#allocation2 + $0x18] sm:$0xf]
        %v871 = vld [vmem:[#allocation2 + $0x1c] sm:$0xf]
        %v872 = vld [vmem:[#allocation2 + $0x20] sm:$0xf]
        %v873 = vld [vmem:[#allocation2 + $0x24] sm:$0xf]
        %v874 = vld [vmem:[#allocation2 + $0x28] sm:$0x7]
        %v875 = vld [vmem:[#allocation2] sm:$0x8]
        %v876 = vld [vmem:[#allocation2 + $0x28] sm:$0xf]
        %v877 = vld [vmem:[#allocation2 + $0x4] sm:$0xf]
        %v878 = vld [vmem:[#allocation2 + $0x8] sm:$0xf]
        %v879 = vld [vmem:[#allocation2 + $0xc] sm:$0xf]
        %v880 = vld [vmem:[#allocation2 + $0x10] sm:$0xf]
        %v881 = vld [vmem:[#allocation2 + $0x14] sm:$0xf]
        %v882 = vld [vmem:[#allocation2 + $0x18] sm:$0xf]
        %v883 = vld [vmem:[#allocation2 + $0x1c] sm:$0xf]
        %v884 = vld [vmem:[#allocation2 + $0x20] sm:$0xf]
        %v885 = vld [vmem:[#allocation2 + $0x24] sm:$0xf]
        %v886 = vld [vmem:[#allocation2 + $0x28] sm:$0xf]
        %v887 = vld [vmem:[#allocation2 + $0x2c] sm:$0x1]
        %v888 = vld [vmem:[#allocation2 + $0x4] sm:$0xe]
        %v889 = vld [vmem:[#allocation2 + $0x2c] sm:$0x3]
        %v901 = vunpack.c.l.b16 %v864
        %v902 = vunpack.c.l.b16 %v865
        %v903 = vunpack.c.l.b16 %v866
        %v904 = vunpack.c.l.b16 %v867
        %v905 = vunpack.c.l.b16 %v868
        %v906 = vunpack.c.l.b16 %v869
        %v907 = vunpack.c.l.b16 %v870
        %v908 = vunpack.c.l.b16 %v871
        %v909 = vunpack.c.l.b16 %v872
        %v910 = vunpack.c.l.b16 %v873
        %v911 = vunpack.c.l.b16 %v874
        %v912 = vpack.c.b16 %v902, %v901
        %v913 = vpack.c.b16 %v904, %v903
        %v914 = vpack.c.b16 %v906, %v905
        %v915 = vpack.c.b16 %v908, %v907
        %v916 = vpack.c.b16 %v910, %v909
        %v917 = vpack.c.b16 %v911, %v911
        %v919 = vunpack.c.l.b16 %v875
        %v920 = vpack.c.b16 %v902, %v919
        %vm921 = vsmask.f32 7424
        %v923 = vshrl.u32 %v920, 16
        %v925 = vshll.u32 %v920, 16
        %v927 = vrot.slane %v925, 1
        %v928 = vor.u32 %v923, %v927
        %v930 = vshll.u32 %v913, 16
        %v932 = vrot.slane %v930, 1
        %v933 = vsel %vm921, %v928, %v932
        %v934 = vshrl.u32 %v913, 16
        %v936 = vor.u32 %v934, %v932
        %v938 = vshll.u32 %v914, 16
        %v940 = vrot.slane %v938, 1
        %v941 = vsel %vm921, %v936, %v940
        %v942 = vshrl.u32 %v914, 16
        %v944 = vor.u32 %v942, %v940
        %v946 = vshll.u32 %v915, 16
        %v948 = vrot.slane %v946, 1
        %v949 = vsel %vm921, %v944, %v948
        %v950 = vshrl.u32 %v915, 16
        %v952 = vor.u32 %v950, %v948
        %v954 = vshll.u32 %v916, 16
        %v956 = vrot.slane %v954, 1
        %v957 = vsel %vm921, %v952, %v956
        %v958 = vshrl.u32 %v916, 16
        %v960 = vor.u32 %v958, %v956
        %v962 = vshll.u32 %v917, 16
        %v964 = vrot.slane %v962, 1
        %v965 = vsel %vm921, %v960, %v964
        %v966 = vshrl.u32 %v917, 16
        %v968 = vor.u32 %v966, %v964
        %v970 = vunpack.c.l.b16 %v876
        %v971 = vpack.c.b16 %v970, %v970
        %vm972 = vcmask 1046528
        %v973 = vrot.slane %v920, 1
        %v974 = vrot.slane %v913, 1
        %v975 = vsel %vm972, %v973, %v974
        %v976 = vrot.slane %v914, 1
        %v977 = vsel %vm972, %v974, %v976
        %v978 = vrot.slane %v915, 1
        %v979 = vsel %vm972, %v976, %v978
        %v980 = vrot.slane %v916, 1
        %v981 = vsel %vm972, %v978, %v980
        %v982 = vrot.slane %v971, 1
        %v983 = vsel %vm972, %v980, %v982
        %v984 = vpack.c.b16 %v903, %v902
        %v985 = vpack.c.b16 %v905, %v904
        %v986 = vpack.c.b16 %v907, %v906
        %v987 = vpack.c.b16 %v909, %v908
        %v988 = vpack.c.b16 %v970, %v910
        %vm989 = vsmask.f32 2304
        %v991 = vshrl.u32 %v984, 16
        %v993 = vrot.slane %v991, 5
        %v994 = vshll.u32 %v984, 16
        %v996 = vrot.slane %v994, 6
        %v997 = vor.u32 %v993, %v996
        %v999 = vshrl.u32 %v985, 16
        %v1001 = vrot.slane %v999, 5
        %v1002 = vshll.u32 %v985, 16
        %v1004 = vrot.slane %v1002, 6
        %v1005 = vor.u32 %v1001, %v1004
        %v1006 = vsel %vm989, %v997, %v1005
        %v1008 = vshrl.u32 %v986, 16
        %v1010 = vrot.slane %v1008, 5
        %v1011 = vshll.u32 %v986, 16
        %v1013 = vrot.slane %v1011, 6
        %v1014 = vor.u32 %v1010, %v1013
        %v1015 = vsel %vm989, %v1005, %v1014
        %v1017 = vshrl.u32 %v987, 16
        %v1019 = vrot.slane %v1017, 5
        %v1020 = vshll.u32 %v987, 16
        %v1022 = vrot.slane %v1020, 6
        %v1023 = vor.u32 %v1019, %v1022
        %v1024 = vsel %vm989, %v1014, %v1023
        %v1026 = vshrl.u32 %v988, 16
        %v1028 = vrot.slane %v1026, 5
        %v1029 = vshll.u32 %v988, 16
        %v1031 = vrot.slane %v1029, 6
        %v1032 = vor.u32 %v1028, %v1031
        %v1033 = vsel %vm989, %v1023, %v1032
        %v1045 = vunpack.c.l.b16 %v877
        %v1046 = vunpack.c.l.b16 %v878
        %v1047 = vunpack.c.l.b16 %v879
        %v1048 = vunpack.c.l.b16 %v880
        %v1049 = vunpack.c.l.b16 %v881
        %v1050 = vunpack.c.l.b16 %v882
        %v1051 = vunpack.c.l.b16 %v883
        %v1052 = vunpack.c.l.b16 %v884
        %v1053 = vunpack.c.l.b16 %v885
        %v1054 = vunpack.c.l.b16 %v886
        %v1055 = vunpack.c.l.b16 %v887
        %v1056 = vpack.c.b16 %v1046, %v1045
        %v1057 = vpack.c.b16 %v1048, %v1047
        %v1058 = vpack.c.b16 %v1050, %v1049
        %v1059 = vpack.c.b16 %v1052, %v1051
        %v1060 = vpack.c.b16 %v1054, %v1053
        %v1061 = vpack.c.b16 %v1055, %v1055
        %v1062 = vrot.slane %v1056, 6
        %v1063 = vrot.slane %v1057, 6
        %v1064 = vsel %vm725, %v1062, %v1063
        %v1065 = vrot.slane %v1058, 6
        %v1066 = vsel %vm725, %v1063, %v1065
        %v1067 = vrot.slane %v1059, 6
        %v1068 = vsel %vm725, %v1065, %v1067
        %v1069 = vrot.slane %v1060, 6
        %v1070 = vsel %vm725, %v1067, %v1069
        %v1071 = vrot.slane %v1061, 6
        %v1072 = vsel %vm725, %v1069, %v1071
        %v1074 = vunpack.c.l.b16 %v888
        %v1075 = vpack.c.b16 %v1046, %v1074
        %v1077 = vshrl.u32 %v1075, 16
        %v1079 = vrot.slane %v1077, 6
        %v1080 = vshll.u32 %v1075, 16
        %v1082 = vrot.slane %v1080, 7
        %v1083 = vor.u32 %v1079, %v1082
        %v1085 = vshrl.u32 %v1057, 16
        %v1087 = vrot.slane %v1085, 6
        %v1088 = vshll.u32 %v1057, 16
        %v1090 = vrot.slane %v1088, 7
        %v1091 = vor.u32 %v1087, %v1090
        %v1092 = vsel %vm726, %v1083, %v1091
        %v1094 = vshrl.u32 %v1058, 16
        %v1096 = vrot.slane %v1094, 6
        %v1097 = vshll.u32 %v1058, 16
        %v1099 = vrot.slane %v1097, 7
        %v1100 = vor.u32 %v1096, %v1099
        %v1101 = vsel %vm726, %v1091, %v1100
        %v1103 = vshrl.u32 %v1059, 16
        %v1105 = vrot.slane %v1103, 6
        %v1106 = vshll.u32 %v1059, 16
        %v1108 = vrot.slane %v1106, 7
        %v1109 = vor.u32 %v1105, %v1108
        %v1110 = vsel %vm726, %v1100, %v1109
        %v1112 = vshrl.u32 %v1060, 16
        %v1114 = vrot.slane %v1112, 6
        %v1115 = vshll.u32 %v1060, 16
        %v1117 = vrot.slane %v1115, 7
        %v1118 = vor.u32 %v1114, %v1117
        %v1119 = vsel %vm726, %v1109, %v1118
        %v1121 = vshrl.u32 %v1061, 16
        %v1123 = vrot.slane %v1121, 6
        %v1124 = vshll.u32 %v1061, 16
        %v1126 = vrot.slane %v1124, 7
        %v1127 = vor.u32 %v1123, %v1126
        %v1128 = vsel %vm726, %v1118, %v1127
        %v1130 = vunpack.c.l.b16 %v889
        %v1131 = vpack.c.b16 %v1130, %v1130
        %vm1132 = vcmask 1040384
        %v1133 = vrot.slane %v1075, 7
        %v1134 = vrot.slane %v1057, 7
        %v1135 = vsel %vm1132, %v1133, %v1134
        %v1136 = vrot.slane %v1058, 7
        %v1137 = vsel %vm1132, %v1134, %v1136
        %v1138 = vrot.slane %v1059, 7
        %v1139 = vsel %vm1132, %v1136, %v1138
        %v1140 = vrot.slane %v1060, 7
        %v1141 = vsel %vm1132, %v1138, %v1140
        %v1142 = vrot.slane %v1131, 7
        %v1143 = vsel %vm1132, %v1140, %v1142
        %v1144 = vld [vmem:[%s567] sm:$0xf]
        %v1145 = vld [vmem:[%s567 + $0x4] sm:$0xf]
        %v1146 = vld [vmem:[%s567 + $0x8] sm:$0xf]
        %v1147 = vld [vmem:[%s567 + $0xc] sm:$0xf]
        %v1148 = vld [vmem:[%s567 + $0x10] sm:$0xf]
        %v1149 = vld [vmem:[%s567 + $0x14] sm:$0xf]
        %v1150 = vld [vmem:[%s567 + $0x18] sm:$0xf]
        %v1151 = vld [vmem:[%s567 + $0x1c] sm:$0xf]
        %v1152 = vld [vmem:[%s567 + $0x20] sm:$0xf]
        %v1153 = vld [vmem:[%s567 + $0x24] sm:$0xf]
        %v1154 = vld [vmem:[%s567 + $0x28] sm:$0xf]
        %v1155 = vld [vmem:[%s567 + $0x2c] sm:$0xf]
        %v1156 = vld [vmem:[%s567 + $0x30] sm:$0xf]
        %v1157 = vld [vmem:[%s567 + $0x34] sm:$0xf]
        %v1158 = vld [vmem:[%s567 + $0x38] sm:$0xf]
        %v1159 = vld [vmem:[%s567 + $0x3c] sm:$0xf]
        %v1160 = vld [vmem:[%s567 + $0x40] sm:$0xf]
        %v1161 = vld [vmem:[%s567 + $0x44] sm:$0xf]
        %v1162 = vld [vmem:[%s567 + $0x48] sm:$0xf]
        %v1163 = vld [vmem:[%s567 + $0x4c] sm:$0xf]
        %v1164 = vld [vmem:[%s567 + $0x50] sm:$0xf]
        %v1165 = vld [vmem:[%s567 + $0x54] sm:$0xf]
        %v1166 = vld [vmem:[%s567 + $0x58] sm:$0xf]
        %v1167 = vld [vmem:[%s567 + $0x5c] sm:$0xf]
        %v1168 = vld [vmem:[%s567 + $0x60] sm:$0xf]
        %v1169 = vld [vmem:[%s567 + $0x64] sm:$0xf]
        %v1170 = vld [vmem:[%s567 + $0x68] sm:$0xf]
        %v1171 = vld [vmem:[%s567 + $0x6c] sm:$0xf]
        %v1172 = vld [vmem:[%s567 + $0x70] sm:$0xf]
        %v1173 = vld [vmem:[%s567 + $0x74] sm:$0xf]
        %v1174 = vld [vmem:[%s567 + $0x78] sm:$0xf]
        %v1175 = vld [vmem:[%s567 + $0x7c] sm:$0xf]
        %v1176 = vld [vmem:[%s567 + $0x80] sm:$0xf]
        %v1177 = vld [vmem:[%s567 + $0x84] sm:$0xf]
        %v1178 = vld [vmem:[%s567 + $0x88] sm:$0xf]
        %v1179 = vld [vmem:[%s567 + $0x8c] sm:$0xf]
        %v1180 = vld [vmem:[%s567 + $0x90] sm:$0xf]
        %v1181 = vld [vmem:[%s567 + $0x94] sm:$0xf]
        %v1182 = vld [vmem:[%s567 + $0x98] sm:$0xf]
        %v1183 = vld [vmem:[%s567 + $0x9c] sm:$0xf]
        %v1184 = vld [vmem:[%s567 + $0xa0] sm:$0xf]
        %v1185 = vld [vmem:[%s567 + $0xa4] sm:$0xf]
        %v1186 = vld [vmem:[%s567 + $0xa8] sm:$0xf]
        %v1187 = vld [vmem:[%s567 + $0xac] sm:$0xf]
        %v1188 = vld [vmem:[%s567 + $0xb0] sm:$0xf]
        %v1189 = vld [vmem:[%s567 + $0xb4] sm:$0xf]
        %v1190 = vld [vmem:[%s567 + $0xb8] sm:$0xf]
        %v1191 = vld [vmem:[%s567 + $0xbc] sm:$0xf]
        %v1192 = vld [vmem:[%s567 + $0xc0] sm:$0xf]
        %v1193 = vld [vmem:[%s567 + $0xc4] sm:$0xf]
        %v1194 = vld [vmem:[%s567 + $0xc8] sm:$0xf]
        %v1195 = vld [vmem:[%s567 + $0xcc] sm:$0xf]
        %v1196 = vld [vmem:[%s567 + $0xd0] sm:$0xf]
        %v1197 = vld [vmem:[%s567 + $0xd4] sm:$0xf]
        %v1198 = vld [vmem:[%s567 + $0xd8] sm:$0xf]
        %v1199 = vld [vmem:[%s567 + $0xdc] sm:$0xf]
        %v1200 = vld [vmem:[%s567 + $0xe0] sm:$0xf]
        %v1201 = vld [vmem:[%s567 + $0xe4] sm:$0xf]
        %v1202 = vld [vmem:[%s567 + $0xe8] sm:$0xf]
        %v1203 = vld [vmem:[%s567 + $0xec] sm:$0xf]
        %v1204 = vld [vmem:[%s567 + $0xf0] sm:$0xf]
        %v1205 = vld [vmem:[%s567 + $0xf4] sm:$0xf]
        %v1206 = vld [vmem:[%s567 + $0xf8] sm:$0xf]
        %v1207 = vld [vmem:[%s567 + $0xfc] sm:$0xf]
        %v1208 = vld [vmem:[%s567 + $0x100] sm:$0xf]
        %v1209 = vld [vmem:[%s567 + $0x104] sm:$0xf]
        %v1210 = vld [vmem:[%s567 + $0x108] sm:$0xf]
        %v1211 = vld [vmem:[%s567 + $0x10c] sm:$0xf]
        %v1212 = vld [vmem:[%s567 + $0x110] sm:$0xf]
        %v1213 = vld [vmem:[%s567 + $0x114] sm:$0xf]
        %v1214 = vld [vmem:[%s567 + $0x118] sm:$0xf]
        %v1215 = vld [vmem:[%s567 + $0x11c] sm:$0xf]
        %v1216 = vld [vmem:[%s567 + $0x120] sm:$0xf]
        %v1217 = vld [vmem:[%s567 + $0x124] sm:$0xf]
        %v1218 = vld [vmem:[%s567 + $0x128] sm:$0xf]
        %v1219 = vld [vmem:[%s567 + $0x12c] sm:$0xf]
        %v1220 = vld [vmem:[%s567 + $0x130] sm:$0xf]
        %v1221 = vld [vmem:[%s567 + $0x134] sm:$0xf]
        %v1222 = vld [vmem:[%s567 + $0x138] sm:$0xf]
        %v1223 = vld [vmem:[%s567 + $0x13c] sm:$0xf]
        %v1224 = vld [vmem:[%s567 + $0x140] sm:$0xf]
        %v1225 = vld [vmem:[%s567 + $0x144] sm:$0xf]
        %v1226 = vld [vmem:[%s567 + $0x148] sm:$0xf]
        %v1227 = vld [vmem:[%s567 + $0x14c] sm:$0xf]
        %v1228 = vld [vmem:[%s567 + $0x150] sm:$0xf]
        %v1229 = vld [vmem:[%s567 + $0x154] sm:$0xf]
        %v1230 = vld [vmem:[%s567 + $0x158] sm:$0xf]
        %v1231 = vld [vmem:[%s567 + $0x15c] sm:$0xf]
        %v1232 = vld [vmem:[%s567 + $0x160] sm:$0xf]
        %v1233 = vld [vmem:[%s567 + $0x164] sm:$0xf]
        %v1234 = vld [vmem:[%s567 + $0x168] sm:$0xf]
        %v1235 = vld [vmem:[%s567 + $0x16c] sm:$0xf]
        %v1236 = vld [vmem:[%s567 + $0x170] sm:$0xf]
        %v1237 = vld [vmem:[%s567 + $0x174] sm:$0xf]
        %v1238 = vld [vmem:[%s567 + $0x178] sm:$0xf]
        %v1239 = vld [vmem:[%s567 + $0x17c] sm:$0xf]
        %v1240 = vld [vmem:[%s567 + $0x180] sm:$0xf]
        %v1241 = vld [vmem:[%s567 + $0x184] sm:$0xf]
        %v1242 = vld [vmem:[%s567 + $0x188] sm:$0xf]
        %v1243 = vld [vmem:[%s567 + $0x18c] sm:$0xf]
        %v1244 = vld [vmem:[%s567 + $0x190] sm:$0xf]
        %v1245 = vld [vmem:[%s567 + $0x194] sm:$0xf]
        %v1246 = vld [vmem:[%s567 + $0x198] sm:$0xf]
        %v1247 = vld [vmem:[%s567 + $0x19c] sm:$0xf]
        %v1248 = vld [vmem:[%s567 + $0x1a0] sm:$0xf]
        %v1249 = vld [vmem:[%s567 + $0x1a4] sm:$0xf]
        %v1250 = vld [vmem:[%s567 + $0x1a8] sm:$0xf]
        %v1251 = vld [vmem:[%s567 + $0x1ac] sm:$0xf]
        %v1252 = vld [vmem:[%s567 + $0x1b0] sm:$0xf]
        %v1253 = vld [vmem:[%s567 + $0x1b4] sm:$0xf]
        %v1254 = vld [vmem:[%s567 + $0x1b8] sm:$0xf]
        %v1255 = vld [vmem:[%s567 + $0x1bc] sm:$0xf]
        %vm1256 = vsmask.f32 5376
        %v1258 = vshrl.u32 %v912, 16
        %v1260 = vrot.slane %v1258, 2
        %v1261 = vshll.u32 %v912, 16
        %v1263 = vrot.slane %v1261, 3
        %v1264 = vor.u32 %v1260, %v1263
        %v1265 = vrot.slane %v934, 2
        %v1266 = vrot.slane %v930, 3
        %v1267 = vor.u32 %v1265, %v1266
        %v1268 = vsel %vm1256, %v1264, %v1267
        %v1270 = vshrl.u32 %v933, 16
        %v1272 = vrot.slane %v1270, 2
        %v1273 = vshll.u32 %v933, 16
        %v1275 = vrot.slane %v1273, 3
        %v1276 = vor.u32 %v1272, %v1275
        %v1278 = vshrl.u32 %v941, 16
        %v1280 = vrot.slane %v1278, 2
        %v1281 = vshll.u32 %v941, 16
        %v1283 = vrot.slane %v1281, 3
        %v1284 = vor.u32 %v1280, %v1283
        %v1285 = vsel %vm1256, %v1276, %v1284
        %v1287 = vshrl.u32 %v975, 16
        %v1289 = vrot.slane %v1287, 2
        %v1290 = vshll.u32 %v975, 16
        %v1292 = vrot.slane %v1290, 3
        %v1293 = vor.u32 %v1289, %v1292
        %v1295 = vshrl.u32 %v977, 16
        %v1297 = vrot.slane %v1295, 2
        %v1298 = vshll.u32 %v977, 16
        %v1300 = vrot.slane %v1298, 3
        %v1301 = vor.u32 %v1297, %v1300
        %v1302 = vsel %vm1256, %v1293, %v1301
        %v1304 = vshrl.u32 %v997, 16
        %v1306 = vrot.slane %v1304, 2
        %v1307 = vshll.u32 %v997, 16
        %v1309 = vrot.slane %v1307, 3
        %v1310 = vor.u32 %v1306, %v1309
        %v1312 = vshrl.u32 %v1006, 16
        %v1314 = vrot.slane %v1312, 2
        %v1315 = vshll.u32 %v1006, 16
        %v1317 = vrot.slane %v1315, 3
        %v1318 = vor.u32 %v1314, %v1317
        %v1319 = vsel %vm1256, %v1310, %v1318
        %v1321 = vshrl.u32 %v1062, 16
        %v1323 = vrot.slane %v1321, 2
        %v1324 = vshll.u32 %v1062, 16
        %v1326 = vrot.slane %v1324, 3
        %v1327 = vor.u32 %v1323, %v1326
        %v1329 = vshrl.u32 %v1064, 16
        %v1331 = vrot.slane %v1329, 2
        %v1332 = vshll.u32 %v1064, 16
        %v1334 = vrot.slane %v1332, 3
        %v1335 = vor.u32 %v1331, %v1334
        %v1336 = vsel %vm1256, %v1327, %v1335
        %v1338 = vshrl.u32 %v1083, 16
        %v1340 = vrot.slane %v1338, 2
        %v1341 = vshll.u32 %v1083, 16
        %v1343 = vrot.slane %v1341, 3
        %v1344 = vor.u32 %v1340, %v1343
        %v1346 = vshrl.u32 %v1092, 16
        %v1348 = vrot.slane %v1346, 2
        %v1349 = vshll.u32 %v1092, 16
        %v1351 = vrot.slane %v1349, 3
        %v1352 = vor.u32 %v1348, %v1351
        %v1353 = vsel %vm1256, %v1344, %v1352
        %v1355 = vshrl.u32 %v1133, 16
        %v1357 = vrot.slane %v1355, 2
        %v1358 = vshll.u32 %v1133, 16
        %v1360 = vrot.slane %v1358, 3
        %v1361 = vor.u32 %v1357, %v1360
        %v1363 = vshrl.u32 %v1135, 16
        %v1365 = vrot.slane %v1363, 2
        %v1366 = vshll.u32 %v1135, 16
        %v1368 = vrot.slane %v1366, 3
        %v1369 = vor.u32 %v1365, %v1368
        %v1370 = vsel %vm1256, %v1361, %v1369
        %v1371 = vrot.slane %v942, 2
        %v1372 = vrot.slane %v938, 3
        %v1373 = vor.u32 %v1371, %v1372
        %v1374 = vsel %vm1256, %v1267, %v1373
        %v1376 = vshrl.u32 %v949, 16
        %v1378 = vrot.slane %v1376, 2
        %v1379 = vshll.u32 %v949, 16
        %v1381 = vrot.slane %v1379, 3
        %v1382 = vor.u32 %v1378, %v1381
        %v1383 = vsel %vm1256, %v1284, %v1382
        %v1385 = vshrl.u32 %v979, 16
        %v1387 = vrot.slane %v1385, 2
        %v1388 = vshll.u32 %v979, 16
        %v1390 = vrot.slane %v1388, 3
        %v1391 = vor.u32 %v1387, %v1390
        %v1392 = vsel %vm1256, %v1301, %v1391
        %v1394 = vshrl.u32 %v1015, 16
        %v1396 = vrot.slane %v1394, 2
        %v1397 = vshll.u32 %v1015, 16
        %v1399 = vrot.slane %v1397, 3
        %v1400 = vor.u32 %v1396, %v1399
        %v1401 = vsel %vm1256, %v1318, %v1400
        %v1403 = vshrl.u32 %v1066, 16
        %v1405 = vrot.slane %v1403, 2
        %v1406 = vshll.u32 %v1066, 16
        %v1408 = vrot.slane %v1406, 3
        %v1409 = vor.u32 %v1405, %v1408
        %v1410 = vsel %vm1256, %v1335, %v1409
        %v1412 = vshrl.u32 %v1101, 16
        %v1414 = vrot.slane %v1412, 2
        %v1415 = vshll.u32 %v1101, 16
        %v1417 = vrot.slane %v1415, 3
        %v1418 = vor.u32 %v1414, %v1417
        %v1419 = vsel %vm1256, %v1352, %v1418
        %v1421 = vshrl.u32 %v1137, 16
        %v1423 = vrot.slane %v1421, 2
        %v1424 = vshll.u32 %v1137, 16
        %v1426 = vrot.slane %v1424, 3
        %v1427 = vor.u32 %v1423, %v1426
        %v1428 = vsel %vm1256, %v1369, %v1427
        %v1429 = vrot.slane %v950, 2
        %v1430 = vrot.slane %v946, 3
        %v1431 = vor.u32 %v1429, %v1430
        %v1432 = vsel %vm1256, %v1373, %v1431
        %v1434 = vshrl.u32 %v957, 16
        %v1436 = vrot.slane %v1434, 2
        %v1437 = vshll.u32 %v957, 16
        %v1439 = vrot.slane %v1437, 3
        %v1440 = vor.u32 %v1436, %v1439
        %v1441 = vsel %vm1256, %v1382, %v1440
        %v1443 = vshrl.u32 %v981, 16
        %v1445 = vrot.slane %v1443, 2
        %v1446 = vshll.u32 %v981, 16
        %v1448 = vrot.slane %v1446, 3
        %v1449 = vor.u32 %v1445, %v1448
        %v1450 = vsel %vm1256, %v1391, %v1449
        %v1452 = vshrl.u32 %v1024, 16
        %v1454 = vrot.slane %v1452, 2
        %v1455 = vshll.u32 %v1024, 16
        %v1457 = vrot.slane %v1455, 3
        %v1458 = vor.u32 %v1454, %v1457
        %v1459 = vsel %vm1256, %v1400, %v1458
        %v1461 = vshrl.u32 %v1068, 16
        %v1463 = vrot.slane %v1461, 2
        %v1464 = vshll.u32 %v1068, 16
        %v1466 = vrot.slane %v1464, 3
        %v1467 = vor.u32 %v1463, %v1466
        %v1468 = vsel %vm1256, %v1409, %v1467
        %v1470 = vshrl.u32 %v1110, 16
        %v1472 = vrot.slane %v1470, 2
        %v1473 = vshll.u32 %v1110, 16
        %v1475 = vrot.slane %v1473, 3
        %v1476 = vor.u32 %v1472, %v1475
        %v1477 = vsel %vm1256, %v1418, %v1476
        %v1479 = vshrl.u32 %v1139, 16
        %v1481 = vrot.slane %v1479, 2
        %v1482 = vshll.u32 %v1139, 16
        %v1484 = vrot.slane %v1482, 3
        %v1485 = vor.u32 %v1481, %v1484
        %v1486 = vsel %vm1256, %v1427, %v1485
        %v1487 = vrot.slane %v958, 2
        %v1488 = vrot.slane %v954, 3
        %v1489 = vor.u32 %v1487, %v1488
        %v1490 = vsel %vm1256, %v1431, %v1489
        %v1492 = vshrl.u32 %v965, 16
        %v1494 = vrot.slane %v1492, 2
        %v1495 = vshll.u32 %v965, 16
        %v1497 = vrot.slane %v1495, 3
        %v1498 = vor.u32 %v1494, %v1497
        %v1499 = vsel %vm1256, %v1440, %v1498
        %v1501 = vshrl.u32 %v983, 16
        %v1503 = vrot.slane %v1501, 2
        %v1504 = vshll.u32 %v983, 16
        %v1506 = vrot.slane %v1504, 3
        %v1507 = vor.u32 %v1503, %v1506
        %v1508 = vsel %vm1256, %v1449, %v1507
        %v1510 = vshrl.u32 %v1033, 16
        %v1512 = vrot.slane %v1510, 2
        %v1513 = vshll.u32 %v1033, 16
        %v1515 = vrot.slane %v1513, 3
        %v1516 = vor.u32 %v1512, %v1515
        %v1517 = vsel %vm1256, %v1458, %v1516
        %v1519 = vshrl.u32 %v1070, 16
        %v1521 = vrot.slane %v1519, 2
        %v1522 = vshll.u32 %v1070, 16
        %v1524 = vrot.slane %v1522, 3
        %v1525 = vor.u32 %v1521, %v1524
        %v1526 = vsel %vm1256, %v1467, %v1525
        %v1528 = vshrl.u32 %v1119, 16
        %v1530 = vrot.slane %v1528, 2
        %v1531 = vshll.u32 %v1119, 16
        %v1533 = vrot.slane %v1531, 3
        %v1534 = vor.u32 %v1530, %v1533
        %v1535 = vsel %vm1256, %v1476, %v1534
        %v1537 = vshrl.u32 %v1141, 16
        %v1539 = vrot.slane %v1537, 2
        %v1540 = vshll.u32 %v1141, 16
        %v1542 = vrot.slane %v1540, 3
        %v1543 = vor.u32 %v1539, %v1542
        %v1544 = vsel %vm1256, %v1485, %v1543
        %v1545 = vrot.slane %v966, 2
        %v1546 = vrot.slane %v962, 3
        %v1547 = vor.u32 %v1545, %v1546
        %v1548 = vsel %vm1256, %v1489, %v1547
        %v1550 = vshrl.u32 %v968, 16
        %v1552 = vrot.slane %v1550, 2
        %v1553 = vshll.u32 %v968, 16
        %v1555 = vrot.slane %v1553, 3
        %v1556 = vor.u32 %v1552, %v1555
        %v1557 = vsel %vm1256, %v1498, %v1556
        %v1559 = vshrl.u32 %v982, 16
        %v1561 = vrot.slane %v1559, 2
        %v1562 = vshll.u32 %v982, 16
        %v1564 = vrot.slane %v1562, 3
        %v1565 = vor.u32 %v1561, %v1564
        %v1566 = vsel %vm1256, %v1507, %v1565
        %v1568 = vshrl.u32 %v1032, 16
        %v1570 = vrot.slane %v1568, 2
        %v1571 = vshll.u32 %v1032, 16
        %v1573 = vrot.slane %v1571, 3
        %v1574 = vor.u32 %v1570, %v1573
        %v1575 = vsel %vm1256, %v1516, %v1574
        %v1577 = vshrl.u32 %v1072, 16
        %v1579 = vrot.slane %v1577, 2
        %v1580 = vshll.u32 %v1072, 16
        %v1582 = vrot.slane %v1580, 3
        %v1583 = vor.u32 %v1579, %v1582
        %v1584 = vsel %vm1256, %v1525, %v1583
        %v1586 = vshrl.u32 %v1128, 16
        %v1588 = vrot.slane %v1586, 2
        %v1589 = vshll.u32 %v1128, 16
        %v1591 = vrot.slane %v1589, 3
        %v1592 = vor.u32 %v1588, %v1591
        %v1593 = vsel %vm1256, %v1534, %v1592
        %v1595 = vshrl.u32 %v1143, 16
        %v1597 = vrot.slane %v1595, 2
        %v1598 = vshll.u32 %v1143, 16
        %v1600 = vrot.slane %v1598, 3
        %v1601 = vor.u32 %v1597, %v1600
        %v1602 = vsel %vm1256, %v1543, %v1601
        %v1750 = vunpack.c.l.b16 %v1144
        %v1751 = vunpack.c.l.b16 %v1145
        %v1752 = vunpack.c.l.b16 %v1146
        %v1753 = vunpack.c.l.b16 %v1147
        %v1754 = vunpack.c.l.b16 %v1148
        %v1755 = vunpack.c.l.b16 %v1149
        %v1756 = vunpack.c.l.b16 %v1150
        %v1757 = vunpack.c.l.b16 %v1151
        %v1758 = vunpack.c.l.b16 %v1152
        %v1759 = vunpack.c.l.b16 %v1153
        %v1760 = vunpack.c.l.b16 %v1154
        %v1761 = vunpack.c.l.b16 %v1155
        %v1762 = vunpack.c.l.b16 %v1156
        %v1763 = vunpack.c.l.b16 %v1157
        %v1764 = vunpack.c.l.b16 %v1158
        %v1765 = vunpack.c.l.b16 %v1159
        %v1766 = vunpack.c.l.b16 %v1160
        %v1767 = vunpack.c.l.b16 %v1161
        %v1768 = vunpack.c.l.b16 %v1162
        %v1769 = vunpack.c.l.b16 %v1163
        %v1770 = vunpack.c.l.b16 %v1164
        %v1771 = vunpack.c.l.b16 %v1165
        %v1772 = vunpack.c.l.b16 %v1166
        %v1773 = vunpack.c.l.b16 %v1167
        %v1774 = vunpack.c.l.b16 %v1168
        %v1775 = vunpack.c.l.b16 %v1169
        %v1776 = vunpack.c.l.b16 %v1170
        %v1777 = vunpack.c.l.b16 %v1171
        %v1778 = vunpack.c.l.b16 %v1172
        %v1779 = vunpack.c.l.b16 %v1173
        %v1780 = vunpack.c.l.b16 %v1174
        %v1781 = vunpack.c.l.b16 %v1175
        %v1782 = vunpack.c.l.b16 %v1176
        %v1783 = vunpack.c.l.b16 %v1177
        %v1784 = vunpack.c.l.b16 %v1178
        %v1785 = vunpack.c.l.b16 %v1179
        %v1786 = vunpack.c.l.b16 %v1180
        %v1787 = vunpack.c.l.b16 %v1181
        %v1788 = vunpack.c.l.b16 %v1182
        %v1789 = vunpack.c.l.b16 %v1183
        %v1790 = vunpack.c.l.b16 %v1184
        %v1791 = vunpack.c.l.b16 %v1185
        %v1792 = vunpack.c.l.b16 %v1186
        %v1793 = vunpack.c.l.b16 %v1187
        %v1794 = vunpack.c.l.b16 %v1188
        %v1795 = vunpack.c.l.b16 %v1189
        %v1796 = vunpack.c.l.b16 %v1190
        %v1797 = vunpack.c.l.b16 %v1191
        %v1798 = vunpack.c.l.b16 %v1192
        %v1799 = vunpack.c.l.b16 %v1193
        %v1800 = vunpack.c.l.b16 %v1194
        %v1801 = vunpack.c.l.b16 %v1195
        %v1802 = vunpack.c.l.b16 %v1196
        %v1803 = vunpack.c.l.b16 %v1197
        %v1804 = vunpack.c.l.b16 %v1198
        %v1805 = vunpack.c.l.b16 %v1199
        %v1806 = vunpack.c.l.b16 %v1200
        %v1807 = vunpack.c.l.b16 %v1201
        %v1808 = vunpack.c.l.b16 %v1202
        %v1809 = vunpack.c.l.b16 %v1203
        %v1810 = vunpack.c.l.b16 %v1204
        %v1811 = vunpack.c.l.b16 %v1205
        %v1812 = vunpack.c.l.b16 %v1206
        %v1813 = vunpack.c.l.b16 %v1207
        %v1814 = vunpack.c.l.b16 %v1208
        %v1815 = vunpack.c.l.b16 %v1209
        %v1816 = vunpack.c.l.b16 %v1210
        %v1817 = vunpack.c.l.b16 %v1211
        %v1818 = vunpack.c.l.b16 %v1212
        %v1819 = vunpack.c.l.b16 %v1213
        %v1820 = vunpack.c.l.b16 %v1214
        %v1821 = vunpack.c.l.b16 %v1215
        %v1822 = vunpack.c.l.b16 %v1216
        %v1823 = vunpack.c.l.b16 %v1217
        %v1824 = vunpack.c.l.b16 %v1218
        %v1825 = vunpack.c.l.b16 %v1219
        %v1826 = vunpack.c.l.b16 %v1220
        %v1827 = vunpack.c.l.b16 %v1221
        %v1828 = vunpack.c.l.b16 %v1222
        %v1829 = vunpack.c.l.b16 %v1223
        %v1830 = vunpack.c.l.b16 %v1224
        %v1831 = vunpack.c.l.b16 %v1225
        %v1832 = vunpack.c.l.b16 %v1226
        %v1833 = vunpack.c.l.b16 %v1227
        %v1834 = vunpack.c.l.b16 %v1228
        %v1835 = vunpack.c.l.b16 %v1229
        %v1836 = vunpack.c.l.b16 %v1230
        %v1837 = vunpack.c.l.b16 %v1231
        %v1838 = vunpack.c.l.b16 %v1232
        %v1839 = vunpack.c.l.b16 %v1233
        %v1840 = vunpack.c.l.b16 %v1234
        %v1841 = vunpack.c.l.b16 %v1235
        %v1842 = vunpack.c.l.b16 %v1236
        %v1843 = vunpack.c.l.b16 %v1237
        %v1844 = vunpack.c.l.b16 %v1238
        %v1845 = vunpack.c.l.b16 %v1239
        %v1846 = vunpack.c.l.b16 %v1240
        %v1847 = vunpack.c.l.b16 %v1241
        %v1848 = vunpack.c.l.b16 %v1242
        %v1849 = vunpack.c.l.b16 %v1243
        %v1850 = vunpack.c.l.b16 %v1244
        %v1851 = vunpack.c.l.b16 %v1245
        %v1852 = vunpack.c.l.b16 %v1246
        %v1853 = vunpack.c.l.b16 %v1247
        %v1854 = vunpack.c.l.b16 %v1248
        %v1855 = vunpack.c.l.b16 %v1249
        %v1856 = vunpack.c.l.b16 %v1250
        %v1857 = vunpack.c.l.b16 %v1251
        %v1858 = vunpack.c.l.b16 %v1252
        %v1859 = vunpack.c.l.b16 %v1253
        %v1860 = vunpack.c.l.b16 %v1254
        %v1861 = vunpack.c.l.b16 %v1255
        %v1862 = vpack.c.b16 %v1751, %v1750
        %v1863 = vpack.c.b16 %v1753, %v1752
        %v1864 = vpack.c.b16 %v1755, %v1754
        %v1865 = vpack.c.b16 %v1757, %v1756
        %v1866 = vpack.c.b16 %v1759, %v1758
        %v1867 = vpack.c.b16 %v1761, %v1760
        %v1868 = vpack.c.b16 %v1763, %v1762
        %v1869 = vpack.c.b16 %v1765, %v1764
        %v1870 = vpack.c.b16 %v1767, %v1766
        %v1871 = vpack.c.b16 %v1769, %v1768
        %v1872 = vpack.c.b16 %v1771, %v1770
        %v1873 = vpack.c.b16 %v1773, %v1772
        %v1874 = vpack.c.b16 %v1775, %v1774
        %v1875 = vpack.c.b16 %v1777, %v1776
        %v1876 = vpack.c.b16 %v1779, %v1778
        %v1877 = vpack.c.b16 %v1781, %v1780
        %v1878 = vpack.c.b16 %v1783, %v1782
        %v1879 = vpack.c.b16 %v1785, %v1784
        %v1880 = vpack.c.b16 %v1787, %v1786
        %v1881 = vpack.c.b16 %v1789, %v1788
        %v1882 = vpack.c.b16 %v1791, %v1790
        %v1883 = vpack.c.b16 %v1793, %v1792
        %v1884 = vpack.c.b16 %v1795, %v1794
        %v1885 = vpack.c.b16 %v1797, %v1796
        %v1886 = vpack.c.b16 %v1799, %v1798
        %v1887 = vpack.c.b16 %v1801, %v1800
        %v1888 = vpack.c.b16 %v1803, %v1802
        %v1889 = vpack.c.b16 %v1805, %v1804
        %v1890 = vpack.c.b16 %v1807, %v1806
        %v1891 = vpack.c.b16 %v1809, %v1808
        %v1892 = vpack.c.b16 %v1811, %v1810
        %v1893 = vpack.c.b16 %v1813, %v1812
        %v1894 = vpack.c.b16 %v1815, %v1814
        %v1895 = vpack.c.b16 %v1817, %v1816
        %v1896 = vpack.c.b16 %v1819, %v1818
        %v1897 = vpack.c.b16 %v1821, %v1820
        %v1898 = vpack.c.b16 %v1823, %v1822
        %v1899 = vpack.c.b16 %v1825, %v1824
        %v1900 = vpack.c.b16 %v1827, %v1826
        %v1901 = vpack.c.b16 %v1829, %v1828
        %v1902 = vpack.c.b16 %v1831, %v1830
        %v1903 = vpack.c.b16 %v1833, %v1832
        %v1904 = vpack.c.b16 %v1835, %v1834
        %v1905 = vpack.c.b16 %v1837, %v1836
        %v1906 = vpack.c.b16 %v1839, %v1838
        %v1907 = vpack.c.b16 %v1841, %v1840
        %v1908 = vpack.c.b16 %v1843, %v1842
        %v1909 = vpack.c.b16 %v1845, %v1844
        %v1910 = vpack.c.b16 %v1847, %v1846
        %v1911 = vpack.c.b16 %v1849, %v1848
        %v1912 = vpack.c.b16 %v1851, %v1850
        %v1913 = vpack.c.b16 %v1853, %v1852
        %v1914 = vpack.c.b16 %v1855, %v1854
        %v1915 = vpack.c.b16 %v1857, %v1856
        %v1916 = vpack.c.b16 %v1859, %v1858
        %v1917 = vpack.c.b16 %v1861, %v1860
        %1974 = vmatpush.bf16.msra.mxu0 %v1869
        %1975 = vmatpush.bf16.msra.mxu0 %v1868
        %1976 = vmatpush.bf16.msra.mxu0 %v1867
        %1977 = vmatpush.bf16.msra.mxu0 %v1866
        %1978 = vmatpush.bf16.msra.mxu0 %v1865
        %1979 = vmatpush.bf16.msra.mxu0 %v1864
        %1980 = vmatpush.bf16.msra.mxu0 %v1863
        %1981 = vmatpush.bf16.msra.mxu0 %v1862
        %1982 = vmatmul.bf16.gmra.mxu0 %v1268
        %v1983 = vpop.f32.mrf.mxu0
        %v1984 = vadd.f32 0.0, %v1983
        %v1985 = vpop.f32.mrf.mxu0
        %v1986 = vadd.f32 0.0, %v1985
        %1987 = vmatmul.bf16.gmra.mxu0 %v1374
        %v1988 = vpop.f32.mrf.mxu0
        %v1989 = vadd.f32 0.0, %v1988
        %v1990 = vpop.f32.mrf.mxu0
        %v1991 = vadd.f32 0.0, %v1990
        %1992 = vmatmul.bf16.gmra.mxu0 %v1432
        %v1993 = vpop.f32.mrf.mxu0
        %v1994 = vadd.f32 0.0, %v1993
        %v1995 = vpop.f32.mrf.mxu0
        %v1996 = vadd.f32 0.0, %v1995
        %1997 = vmatmul.bf16.gmra.mxu0 %v1490
        %v1998 = vpop.f32.mrf.mxu0
        %v1999 = vadd.f32 0.0, %v1998
        %v2000 = vpop.f32.mrf.mxu0
        %v2001 = vadd.f32 0.0, %v2000
        %2002 = vmatmul.bf16.gmra.mxu0 %v1548
        %v2003 = vpop.f32.mrf.mxu0
        %v2004 = vadd.f32 0.0, %v2003
        %v2005 = vpop.f32.mrf.mxu0
        %v2006 = vadd.f32 0.0, %v2005
        %2007 = vdwg.mxu0
        %2008 = vmatpush.bf16.msra.mxu0 %v1877
        %2009 = vmatpush.bf16.msra.mxu0 %v1876
        %2010 = vmatpush.bf16.msra.mxu0 %v1875
        %2011 = vmatpush.bf16.msra.mxu0 %v1874
        %2012 = vmatpush.bf16.msra.mxu0 %v1873
        %2013 = vmatpush.bf16.msra.mxu0 %v1872
        %2014 = vmatpush.bf16.msra.mxu0 %v1871
        %2015 = vmatpush.bf16.msra.mxu0 %v1870
        %2016 = vmatmul.bf16.gmra.mxu0 %v1285
        %v2017 = vpop.f32.mrf.mxu0
        %v2018 = vadd.f32 %v1984, %v2017
        %v2019 = vpop.f32.mrf.mxu0
        %v2020 = vadd.f32 %v1986, %v2019
        %2021 = vmatmul.bf16.gmra.mxu0 %v1383
        %v2022 = vpop.f32.mrf.mxu0
        %v2023 = vadd.f32 %v1989, %v2022
        %v2024 = vpop.f32.mrf.mxu0
        %v2025 = vadd.f32 %v1991, %v2024
        %2026 = vmatmul.bf16.gmra.mxu0 %v1441
        %v2027 = vpop.f32.mrf.mxu0
        %v2028 = vadd.f32 %v1994, %v2027
        %v2029 = vpop.f32.mrf.mxu0
        %v2030 = vadd.f32 %v1996, %v2029
        %2031 = vmatmul.bf16.gmra.mxu0 %v1499
        %v2032 = vpop.f32.mrf.mxu0
        %v2033 = vadd.f32 %v1999, %v2032
        %v2034 = vpop.f32.mrf.mxu0
        %v2035 = vadd.f32 %v2001, %v2034
        %2036 = vmatmul.bf16.gmra.mxu0 %v1557
        %v2037 = vpop.f32.mrf.mxu0
        %v2038 = vadd.f32 %v2004, %v2037
        %v2039 = vpop.f32.mrf.mxu0
        %v2040 = vadd.f32 %v2006, %v2039
        %2041 = vdwg.mxu0
        %2042 = vmatpush.bf16.msra.mxu0 %v1885
        %2043 = vmatpush.bf16.msra.mxu0 %v1884
        %2044 = vmatpush.bf16.msra.mxu0 %v1883
        %2045 = vmatpush.bf16.msra.mxu0 %v1882
        %2046 = vmatpush.bf16.msra.mxu0 %v1881
        %2047 = vmatpush.bf16.msra.mxu0 %v1880
        %2048 = vmatpush.bf16.msra.mxu0 %v1879
        %2049 = vmatpush.bf16.msra.mxu0 %v1878
        %2050 = vmatmul.bf16.gmra.mxu0 %v1302
        %v2051 = vpop.f32.mrf.mxu0
        %v2052 = vadd.f32 %v2018, %v2051
        %v2053 = vpop.f32.mrf.mxu0
        %v2054 = vadd.f32 %v2020, %v2053
        %2055 = vmatmul.bf16.gmra.mxu0 %v1392
        %v2056 = vpop.f32.mrf.mxu0
        %v2057 = vadd.f32 %v2023, %v2056
        %v2058 = vpop.f32.mrf.mxu0
        %v2059 = vadd.f32 %v2025, %v2058
        %2060 = vmatmul.bf16.gmra.mxu0 %v1450
        %v2061 = vpop.f32.mrf.mxu0
        %v2062 = vadd.f32 %v2028, %v2061
        %v2063 = vpop.f32.mrf.mxu0
        %v2064 = vadd.f32 %v2030, %v2063
        %2065 = vmatmul.bf16.gmra.mxu0 %v1508
        %v2066 = vpop.f32.mrf.mxu0
        %v2067 = vadd.f32 %v2033, %v2066
        %v2068 = vpop.f32.mrf.mxu0
        %v2069 = vadd.f32 %v2035, %v2068
        %2070 = vmatmul.bf16.gmra.mxu0 %v1566
        %v2071 = vpop.f32.mrf.mxu0
        %v2072 = vadd.f32 %v2038, %v2071
        %v2073 = vpop.f32.mrf.mxu0
        %v2074 = vadd.f32 %v2040, %v2073
        %2075 = vdwg.mxu0
        %2076 = vmatpush.bf16.msra.mxu0 %v1893
        %2077 = vmatpush.bf16.msra.mxu0 %v1892
        %2078 = vmatpush.bf16.msra.mxu0 %v1891
        %2079 = vmatpush.bf16.msra.mxu0 %v1890
        %2080 = vmatpush.bf16.msra.mxu0 %v1889
        %2081 = vmatpush.bf16.msra.mxu0 %v1888
        %2082 = vmatpush.bf16.msra.mxu0 %v1887
        %2083 = vmatpush.bf16.msra.mxu0 %v1886
        %2084 = vmatmul.bf16.gmra.mxu0 %v1319
        %v2085 = vpop.f32.mrf.mxu0
        %v2086 = vadd.f32 %v2052, %v2085
        %v2087 = vpop.f32.mrf.mxu0
        %v2088 = vadd.f32 %v2054, %v2087
        %2089 = vmatmul.bf16.gmra.mxu0 %v1401
        %v2090 = vpop.f32.mrf.mxu0
        %v2091 = vadd.f32 %v2057, %v2090
        %v2092 = vpop.f32.mrf.mxu0
        %v2093 = vadd.f32 %v2059, %v2092
        %2094 = vmatmul.bf16.gmra.mxu0 %v1459
        %v2095 = vpop.f32.mrf.mxu0
        %v2096 = vadd.f32 %v2062, %v2095
        %v2097 = vpop.f32.mrf.mxu0
        %v2098 = vadd.f32 %v2064, %v2097
        %2099 = vmatmul.bf16.gmra.mxu0 %v1517
        %v2100 = vpop.f32.mrf.mxu0
        %v2101 = vadd.f32 %v2067, %v2100
        %v2102 = vpop.f32.mrf.mxu0
        %v2103 = vadd.f32 %v2069, %v2102
        %2104 = vmatmul.bf16.gmra.mxu0 %v1575
        %v2105 = vpop.f32.mrf.mxu0
        %v2106 = vadd.f32 %v2072, %v2105
        %v2107 = vpop.f32.mrf.mxu0
        %v2108 = vadd.f32 %v2074, %v2107
        %2109 = vdwg.mxu0
        %2110 = vmatpush.bf16.msra.mxu0 %v1901
        %2111 = vmatpush.bf16.msra.mxu0 %v1900
        %2112 = vmatpush.bf16.msra.mxu0 %v1899
        %2113 = vmatpush.bf16.msra.mxu0 %v1898
        %2114 = vmatpush.bf16.msra.mxu0 %v1897
        %2115 = vmatpush.bf16.msra.mxu0 %v1896
        %2116 = vmatpush.bf16.msra.mxu0 %v1895
        %2117 = vmatpush.bf16.msra.mxu0 %v1894
        %2118 = vmatmul.bf16.gmra.mxu0 %v1336
        %v2119 = vpop.f32.mrf.mxu0
        %v2120 = vadd.f32 %v2086, %v2119
        %v2121 = vpop.f32.mrf.mxu0
        %v2122 = vadd.f32 %v2088, %v2121
        %2123 = vmatmul.bf16.gmra.mxu0 %v1410
        %v2124 = vpop.f32.mrf.mxu0
        %v2125 = vadd.f32 %v2091, %v2124
        %v2126 = vpop.f32.mrf.mxu0
        %v2127 = vadd.f32 %v2093, %v2126
        %2128 = vmatmul.bf16.gmra.mxu0 %v1468
        %v2129 = vpop.f32.mrf.mxu0
        %v2130 = vadd.f32 %v2096, %v2129
        %v2131 = vpop.f32.mrf.mxu0
        %v2132 = vadd.f32 %v2098, %v2131
        %2133 = vmatmul.bf16.gmra.mxu0 %v1526
        %v2134 = vpop.f32.mrf.mxu0
        %v2135 = vadd.f32 %v2101, %v2134
        %v2136 = vpop.f32.mrf.mxu0
        %v2137 = vadd.f32 %v2103, %v2136
        %2138 = vmatmul.bf16.gmra.mxu0 %v1584
        %v2139 = vpop.f32.mrf.mxu0
        %v2140 = vadd.f32 %v2106, %v2139
        %v2141 = vpop.f32.mrf.mxu0
        %v2142 = vadd.f32 %v2108, %v2141
        %2143 = vdwg.mxu0
        %2144 = vmatpush.bf16.msra.mxu0 %v1909
        %2145 = vmatpush.bf16.msra.mxu0 %v1908
        %2146 = vmatpush.bf16.msra.mxu0 %v1907
        %2147 = vmatpush.bf16.msra.mxu0 %v1906
        %2148 = vmatpush.bf16.msra.mxu0 %v1905
        %2149 = vmatpush.bf16.msra.mxu0 %v1904
        %2150 = vmatpush.bf16.msra.mxu0 %v1903
        %2151 = vmatpush.bf16.msra.mxu0 %v1902
        %2152 = vmatmul.bf16.gmra.mxu0 %v1353
        %v2153 = vpop.f32.mrf.mxu0
        %v2154 = vadd.f32 %v2120, %v2153
        %v2155 = vpop.f32.mrf.mxu0
        %v2156 = vadd.f32 %v2122, %v2155
        %2157 = vmatmul.bf16.gmra.mxu0 %v1419
        %v2158 = vpop.f32.mrf.mxu0
        %v2159 = vadd.f32 %v2125, %v2158
        %v2160 = vpop.f32.mrf.mxu0
        %v2161 = vadd.f32 %v2127, %v2160
        %2162 = vmatmul.bf16.gmra.mxu0 %v1477
        %v2163 = vpop.f32.mrf.mxu0
        %v2164 = vadd.f32 %v2130, %v2163
        %v2165 = vpop.f32.mrf.mxu0
        %v2166 = vadd.f32 %v2132, %v2165
        %2167 = vmatmul.bf16.gmra.mxu0 %v1535
        %v2168 = vpop.f32.mrf.mxu0
        %v2169 = vadd.f32 %v2135, %v2168
        %v2170 = vpop.f32.mrf.mxu0
        %v2171 = vadd.f32 %v2137, %v2170
        %2172 = vmatmul.bf16.gmra.mxu0 %v1593
        %v2173 = vpop.f32.mrf.mxu0
        %v2174 = vadd.f32 %v2140, %v2173
        %v2175 = vpop.f32.mrf.mxu0
        %v2176 = vadd.f32 %v2142, %v2175
        %2177 = vdwg.mxu0
        %2178 = vmatpush.bf16.msra.mxu0 %v1917
        %2179 = vmatpush.bf16.msra.mxu0 %v1916
        %2180 = vmatpush.bf16.msra.mxu0 %v1915
        %2181 = vmatpush.bf16.msra.mxu0 %v1914
        %2182 = vmatpush.bf16.msra.mxu0 %v1913
        %2183 = vmatpush.bf16.msra.mxu0 %v1912
        %2184 = vmatpush.bf16.msra.mxu0 %v1911
        %2185 = vmatpush.bf16.msra.mxu0 %v1910
        %2186 = vmatmul.bf16.gmra.mxu0 %v1370
        %v2187 = vpop.f32.mrf.mxu0
        %v2188 = vadd.f32 %v2154, %v2187
        %v2189 = vpop.f32.mrf.mxu0
        %v2190 = vadd.f32 %v2156, %v2189
        %2191 = vmatmul.bf16.gmra.mxu0 %v1428
        %v2192 = vpop.f32.mrf.mxu0
        %v2193 = vadd.f32 %v2159, %v2192
        %v2194 = vpop.f32.mrf.mxu0
        %v2195 = vadd.f32 %v2161, %v2194
        %2196 = vmatmul.bf16.gmra.mxu0 %v1486
        %v2197 = vpop.f32.mrf.mxu0
        %v2198 = vadd.f32 %v2164, %v2197
        %v2199 = vpop.f32.mrf.mxu0
        %v2200 = vadd.f32 %v2166, %v2199
        %2201 = vmatmul.bf16.gmra.mxu0 %v1544
        %v2202 = vpop.f32.mrf.mxu0
        %v2203 = vadd.f32 %v2169, %v2202
        %v2204 = vpop.f32.mrf.mxu0
        %v2205 = vadd.f32 %v2171, %v2204
        %2206 = vmatmul.bf16.gmra.mxu0 %v1602
        %v2207 = vpop.f32.mrf.mxu0
        %v2208 = vadd.f32 %v2174, %v2207
        %v2209 = vpop.f32.mrf.mxu0
        %v2210 = vadd.f32 %v2176, %v2209
        %2211 = vdwg.mxu0
        %s2212 = scalar_lea.vmem %s557, 2 [#allocation3]
        %v2213 = vld [vmem:[%s2212] sm:$0x3]
        %v2214 = vperm.slane %v2213, 0
        %v2215 = vmul.f32 %v2188, %v2214
        %v2216 = vmul.f32 %v2190, %v2214
        %v2217 = vmul.f32 %v2193, %v2214
        %v2218 = vmul.f32 %v2195, %v2214
        %v2219 = vmul.f32 %v2198, %v2214
        %v2220 = vmul.f32 %v2200, %v2214
        %v2221 = vmul.f32 %v2203, %v2214
        %v2222 = vmul.f32 %v2205, %v2214
        %v2223 = vmul.f32 %v2208, %v2214
        %v2224 = vmul.f32 %v2210, %v2214
        %v2225 = vperm.slane %v2213, 1
        %v2226 = vadd.f32 %v2215, %v2225
        %v2227 = vadd.f32 %v2216, %v2225
        %v2228 = vadd.f32 %v2217, %v2225
        %v2229 = vadd.f32 %v2218, %v2225
        %v2230 = vadd.f32 %v2219, %v2225
        %v2231 = vadd.f32 %v2220, %v2225
        %v2232 = vadd.f32 %v2221, %v2225
        %v2233 = vadd.f32 %v2222, %v2225
        %v2234 = vadd.f32 %v2223, %v2225
        %v2235 = vadd.f32 %v2224, %v2225
        %v2236 = vmax.f32 %v2226, 0.0
        %v2237 = vmax.f32 %v2227, 0.0
        %v2238 = vmax.f32 %v2228, 0.0
        %v2239 = vmax.f32 %v2229, 0.0
        %v2240 = vmax.f32 %v2230, 0.0
        %v2241 = vmax.f32 %v2231, 0.0
        %v2242 = vmax.f32 %v2232, 0.0
        %v2243 = vmax.f32 %v2233, 0.0
        %v2244 = vmax.f32 %v2234, 0.0
        %v2245 = vmax.f32 %v2235, 0.0
        %v2246 = vmul.f32 %v2236, %v744
        %v2247 = vmul.f32 %v2237, %v749
        %v2248 = vmul.f32 %v2238, %v754
        %v2249 = vmul.f32 %v2239, %v759
        %v2250 = vmul.f32 %v2240, %v764
        %v2251 = vmul.f32 %v2241, %v769
        %v2252 = vmul.f32 %v2242, %v774
        %v2253 = vmul.f32 %v2243, %v779
        %v2254 = vmul.f32 %v2244, %v784
        %v2255 = vmul.f32 %v2245, %v789
        %v2256 = vpack.c.bf16 %v2246, %v2246
        %v2257 = vpack.c.bf16 %v2247, %v2247
        %v2258 = vpack.c.bf16 %v2248, %v2248
        %v2259 = vpack.c.bf16 %v2249, %v2249
        %v2260 = vpack.c.bf16 %v2250, %v2250
        %v2261 = vpack.c.bf16 %v2251, %v2251
        %v2262 = vpack.c.bf16 %v2252, %v2252
        %v2263 = vpack.c.bf16 %v2253, %v2253
        %v2264 = vpack.c.bf16 %v2254, %v2254
        %v2265 = vpack.c.bf16 %v2255, %v2255
        %2266 = vst [vmem:[#allocation2 + $0x4] sm:$0xf] %v2256
        %2267 = vst [vmem:[#allocation2 + $0x8] sm:$0xf] %v2257
        %2268 = vst [vmem:[#allocation2 + $0xc] sm:$0xf] %v2258
        %2269 = vst [vmem:[#allocation2 + $0x10] sm:$0xf] %v2259
        %2270 = vst [vmem:[#allocation2 + $0x14] sm:$0xf] %v2260
        %2271 = vst [vmem:[#allocation2 + $0x18] sm:$0xf] %v2261
        %2272 = vst [vmem:[#allocation2 + $0x1c] sm:$0xf] %v2262
        %2273 = vst [vmem:[#allocation2 + $0x20] sm:$0xf] %v2263
        %2274 = vst [vmem:[#allocation2 + $0x24] sm:$0xf] %v2264
        %2275 = vst [vmem:[#allocation2 + $0x28] sm:$0xf] %v2265
        %v2276 = vld [vmem:[#allocation2] sm:$0xc]
        %v2277 = vld [vmem:[#allocation2 + $0x4] sm:$0xf]
        %v2278 = vld [vmem:[#allocation2 + $0x8] sm:$0xf]
        %v2279 = vld [vmem:[#allocation2 + $0xc] sm:$0xf]
        %v2280 = vld [vmem:[#allocation2 + $0x10] sm:$0xf]
        %v2281 = vld [vmem:[#allocation2 + $0x14] sm:$0xf]
        %v2282 = vld [vmem:[#allocation2 + $0x18] sm:$0xf]
        %v2283 = vld [vmem:[#allocation2 + $0x1c] sm:$0xf]
        %v2284 = vld [vmem:[#allocation2 + $0x20] sm:$0xf]
        %v2285 = vld [vmem:[#allocation2 + $0x24] sm:$0xf]
        %v2286 = vld [vmem:[#allocation2 + $0x28] sm:$0x7]
        %v2287 = vld [vmem:[#allocation2] sm:$0x8]
        %v2288 = vld [vmem:[#allocation2 + $0x28] sm:$0xf]
        %v2289 = vld [vmem:[#allocation2 + $0x4] sm:$0xf]
        %v2290 = vld [vmem:[#allocation2 + $0x8] sm:$0xf]
        %v2291 = vld [vmem:[#allocation2 + $0xc] sm:$0xf]
        %v2292 = vld [vmem:[#allocation2 + $0x10] sm:$0xf]
        %v2293 = vld [vmem:[#allocation2 + $0x14] sm:$0xf]
        %v2294 = vld [vmem:[#allocation2 + $0x18] sm:$0xf]
        %v2295 = vld [vmem:[#allocation2 + $0x1c] sm:$0xf]
        %v2296 = vld [vmem:[#allocation2 + $0x20] sm:$0xf]
        %v2297 = vld [vmem:[#allocation2 + $0x24] sm:$0xf]
        %v2298 = vld [vmem:[#allocation2 + $0x28] sm:$0xf]
        %v2299 = vld [vmem:[#allocation2 + $0x2c] sm:$0x1]
        %v2300 = vld [vmem:[#allocation2 + $0x4] sm:$0xe]
        %v2301 = vld [vmem:[#allocation2 + $0x2c] sm:$0x3]
        %v2313 = vunpack.c.l.b16 %v2276
        %v2314 = vunpack.c.l.b16 %v2277
        %v2315 = vunpack.c.l.b16 %v2278
        %v2316 = vunpack.c.l.b16 %v2279
        %v2317 = vunpack.c.l.b16 %v2280
        %v2318 = vunpack.c.l.b16 %v2281
        %v2319 = vunpack.c.l.b16 %v2282
        %v2320 = vunpack.c.l.b16 %v2283
        %v2321 = vunpack.c.l.b16 %v2284
        %v2322 = vunpack.c.l.b16 %v2285
        %v2323 = vunpack.c.l.b16 %v2286
        %v2324 = vpack.c.b16 %v2314, %v2313
        %v2325 = vpack.c.b16 %v2316, %v2315
        %v2326 = vpack.c.b16 %v2318, %v2317
        %v2327 = vpack.c.b16 %v2320, %v2319
        %v2328 = vpack.c.b16 %v2322, %v2321
        %v2329 = vpack.c.b16 %v2323, %v2323
        %v2331 = vunpack.c.l.b16 %v2287
        %v2332 = vpack.c.b16 %v2314, %v2331
        %v2334 = vshrl.u32 %v2332, 16
        %v2336 = vshll.u32 %v2332, 16
        %v2338 = vrot.slane %v2336, 1
        %v2339 = vor.u32 %v2334, %v2338
        %v2341 = vshll.u32 %v2325, 16
        %v2343 = vrot.slane %v2341, 1
        %v2344 = vsel %vm921, %v2339, %v2343
        %v2345 = vshrl.u32 %v2325, 16
        %v2347 = vor.u32 %v2345, %v2343
        %v2349 = vshll.u32 %v2326, 16
        %v2351 = vrot.slane %v2349, 1
        %v2352 = vsel %vm921, %v2347, %v2351
        %v2353 = vshrl.u32 %v2326, 16
        %v2355 = vor.u32 %v2353, %v2351
        %v2357 = vshll.u32 %v2327, 16
        %v2359 = vrot.slane %v2357, 1
        %v2360 = vsel %vm921, %v2355, %v2359
        %v2361 = vshrl.u32 %v2327, 16
        %v2363 = vor.u32 %v2361, %v2359
        %v2365 = vshll.u32 %v2328, 16
        %v2367 = vrot.slane %v2365, 1
        %v2368 = vsel %vm921, %v2363, %v2367
        %v2369 = vshrl.u32 %v2328, 16
        %v2371 = vor.u32 %v2369, %v2367
        %v2373 = vshll.u32 %v2329, 16
        %v2375 = vrot.slane %v2373, 1
        %v2376 = vsel %vm921, %v2371, %v2375
        %v2377 = vshrl.u32 %v2329, 16
        %v2379 = vor.u32 %v2377, %v2375
        %v2381 = vunpack.c.l.b16 %v2288
        %v2382 = vpack.c.b16 %v2381, %v2381
        %v2383 = vrot.slane %v2332, 1
        %v2384 = vrot.slane %v2325, 1
        %v2385 = vsel %vm972, %v2383, %v2384
        %v2386 = vrot.slane %v2326, 1
        %v2387 = vsel %vm972, %v2384, %v2386
        %v2388 = vrot.slane %v2327, 1
        %v2389 = vsel %vm972, %v2386, %v2388
        %v2390 = vrot.slane %v2328, 1
        %v2391 = vsel %vm972, %v2388, %v2390
        %v2392 = vrot.slane %v2382, 1
        %v2393 = vsel %vm972, %v2390, %v2392
        %v2394 = vpack.c.b16 %v2315, %v2314
        %v2395 = vpack.c.b16 %v2317, %v2316
        %v2396 = vpack.c.b16 %v2319, %v2318
        %v2397 = vpack.c.b16 %v2321, %v2320
        %v2398 = vpack.c.b16 %v2381, %v2322
        %v2400 = vshrl.u32 %v2394, 16
        %v2402 = vrot.slane %v2400, 5
        %v2403 = vshll.u32 %v2394, 16
        %v2405 = vrot.slane %v2403, 6
        %v2406 = vor.u32 %v2402, %v2405
        %v2408 = vshrl.u32 %v2395, 16
        %v2410 = vrot.slane %v2408, 5
        %v2411 = vshll.u32 %v2395, 16
        %v2413 = vrot.slane %v2411, 6
        %v2414 = vor.u32 %v2410, %v2413
        %v2415 = vsel %vm989, %v2406, %v2414
        %v2417 = vshrl.u32 %v2396, 16
        %v2419 = vrot.slane %v2417, 5
        %v2420 = vshll.u32 %v2396, 16
        %v2422 = vrot.slane %v2420, 6
        %v2423 = vor.u32 %v2419, %v2422
        %v2424 = vsel %vm989, %v2414, %v2423
        %v2426 = vshrl.u32 %v2397, 16
        %v2428 = vrot.slane %v2426, 5
        %v2429 = vshll.u32 %v2397, 16
        %v2431 = vrot.slane %v2429, 6
        %v2432 = vor.u32 %v2428, %v2431
        %v2433 = vsel %vm989, %v2423, %v2432
        %v2435 = vshrl.u32 %v2398, 16
        %v2437 = vrot.slane %v2435, 5
        %v2438 = vshll.u32 %v2398, 16
        %v2440 = vrot.slane %v2438, 6
        %v2441 = vor.u32 %v2437, %v2440
        %v2442 = vsel %vm989, %v2432, %v2441
        %v2454 = vunpack.c.l.b16 %v2289
        %v2455 = vunpack.c.l.b16 %v2290
        %v2456 = vunpack.c.l.b16 %v2291
        %v2457 = vunpack.c.l.b16 %v2292
        %v2458 = vunpack.c.l.b16 %v2293
        %v2459 = vunpack.c.l.b16 %v2294
        %v2460 = vunpack.c.l.b16 %v2295
        %v2461 = vunpack.c.l.b16 %v2296
        %v2462 = vunpack.c.l.b16 %v2297
        %v2463 = vunpack.c.l.b16 %v2298
        %v2464 = vunpack.c.l.b16 %v2299
        %v2465 = vpack.c.b16 %v2455, %v2454
        %v2466 = vpack.c.b16 %v2457, %v2456
        %v2467 = vpack.c.b16 %v2459, %v2458
        %v2468 = vpack.c.b16 %v2461, %v2460
        %v2469 = vpack.c.b16 %v2463, %v2462
        %v2470 = vpack.c.b16 %v2464, %v2464
        %v2471 = vrot.slane %v2465, 6
        %v2472 = vrot.slane %v2466, 6
        %v2473 = vsel %vm725, %v2471, %v2472
        %v2474 = vrot.slane %v2467, 6
        %v2475 = vsel %vm725, %v2472, %v2474
        %v2476 = vrot.slane %v2468, 6
        %v2477 = vsel %vm725, %v2474, %v2476
        %v2478 = vrot.slane %v2469, 6
        %v2479 = vsel %vm725, %v2476, %v2478
        %v2480 = vrot.slane %v2470, 6
        %v2481 = vsel %vm725, %v2478, %v2480
        %v2483 = vunpack.c.l.b16 %v2300
        %v2484 = vpack.c.b16 %v2455, %v2483
        %v2486 = vshrl.u32 %v2484, 16
        %v2488 = vrot.slane %v2486, 6
        %v2489 = vshll.u32 %v2484, 16
        %v2491 = vrot.slane %v2489, 7
        %v2492 = vor.u32 %v2488, %v2491
        %v2494 = vshrl.u32 %v2466, 16
        %v2496 = vrot.slane %v2494, 6
        %v2497 = vshll.u32 %v2466, 16
        %v2499 = vrot.slane %v2497, 7
        %v2500 = vor.u32 %v2496, %v2499
        %v2501 = vsel %vm726, %v2492, %v2500
        %v2503 = vshrl.u32 %v2467, 16
        %v2505 = vrot.slane %v2503, 6
        %v2506 = vshll.u32 %v2467, 16
        %v2508 = vrot.slane %v2506, 7
        %v2509 = vor.u32 %v2505, %v2508
        %v2510 = vsel %vm726, %v2500, %v2509
        %v2512 = vshrl.u32 %v2468, 16
        %v2514 = vrot.slane %v2512, 6
        %v2515 = vshll.u32 %v2468, 16
        %v2517 = vrot.slane %v2515, 7
        %v2518 = vor.u32 %v2514, %v2517
        %v2519 = vsel %vm726, %v2509, %v2518
        %v2521 = vshrl.u32 %v2469, 16
        %v2523 = vrot.slane %v2521, 6
        %v2524 = vshll.u32 %v2469, 16
        %v2526 = vrot.slane %v2524, 7
        %v2527 = vor.u32 %v2523, %v2526
        %v2528 = vsel %vm726, %v2518, %v2527
        %v2530 = vshrl.u32 %v2470, 16
        %v2532 = vrot.slane %v2530, 6
        %v2533 = vshll.u32 %v2470, 16
        %v2535 = vrot.slane %v2533, 7
        %v2536 = vor.u32 %v2532, %v2535
        %v2537 = vsel %vm726, %v2527, %v2536
        %v2539 = vunpack.c.l.b16 %v2301
        %v2540 = vpack.c.b16 %v2539, %v2539
        %v2541 = vrot.slane %v2484, 7
        %v2542 = vrot.slane %v2466, 7
        %v2543 = vsel %vm1132, %v2541, %v2542
        %v2544 = vrot.slane %v2467, 7
        %v2545 = vsel %vm1132, %v2542, %v2544
        %v2546 = vrot.slane %v2468, 7
        %v2547 = vsel %vm1132, %v2544, %v2546
        %v2548 = vrot.slane %v2469, 7
        %v2549 = vsel %vm1132, %v2546, %v2548
        %v2550 = vrot.slane %v2540, 7
        %v2551 = vsel %vm1132, %v2548, %v2550
        %s2552 = scalar_lea.vmem %s567, 448 [#allocation5]
        %v2553 = vld [vmem:[%s2552] sm:$0xf]
        %v2554 = vld [vmem:[%s2552 + $0x4] sm:$0xf]
        %v2555 = vld [vmem:[%s2552 + $0x8] sm:$0xf]
        %v2556 = vld [vmem:[%s2552 + $0xc] sm:$0xf]
        %v2557 = vld [vmem:[%s2552 + $0x10] sm:$0xf]
        %v2558 = vld [vmem:[%s2552 + $0x14] sm:$0xf]
        %v2559 = vld [vmem:[%s2552 + $0x18] sm:$0xf]
        %v2560 = vld [vmem:[%s2552 + $0x1c] sm:$0xf]
        %v2561 = vld [vmem:[%s2552 + $0x20] sm:$0xf]
        %v2562 = vld [vmem:[%s2552 + $0x24] sm:$0xf]
        %v2563 = vld [vmem:[%s2552 + $0x28] sm:$0xf]
        %v2564 = vld [vmem:[%s2552 + $0x2c] sm:$0xf]
        %v2565 = vld [vmem:[%s2552 + $0x30] sm:$0xf]
        %v2566 = vld [vmem:[%s2552 + $0x34] sm:$0xf]
        %v2567 = vld [vmem:[%s2552 + $0x38] sm:$0xf]
        %v2568 = vld [vmem:[%s2552 + $0x3c] sm:$0xf]
        %v2569 = vld [vmem:[%s2552 + $0x40] sm:$0xf]
        %v2570 = vld [vmem:[%s2552 + $0x44] sm:$0xf]
        %v2571 = vld [vmem:[%s2552 + $0x48] sm:$0xf]
        %v2572 = vld [vmem:[%s2552 + $0x4c] sm:$0xf]
        %v2573 = vld [vmem:[%s2552 + $0x50] sm:$0xf]
        %v2574 = vld [vmem:[%s2552 + $0x54] sm:$0xf]
        %v2575 = vld [vmem:[%s2552 + $0x58] sm:$0xf]
        %v2576 = vld [vmem:[%s2552 + $0x5c] sm:$0xf]
        %v2577 = vld [vmem:[%s2552 + $0x60] sm:$0xf]
        %v2578 = vld [vmem:[%s2552 + $0x64] sm:$0xf]
        %v2579 = vld [vmem:[%s2552 + $0x68] sm:$0xf]
        %v2580 = vld [vmem:[%s2552 + $0x6c] sm:$0xf]
        %v2581 = vld [vmem:[%s2552 + $0x70] sm:$0xf]
        %v2582 = vld [vmem:[%s2552 + $0x74] sm:$0xf]
        %v2583 = vld [vmem:[%s2552 + $0x78] sm:$0xf]
        %v2584 = vld [vmem:[%s2552 + $0x7c] sm:$0xf]
        %v2585 = vld [vmem:[%s2552 + $0x80] sm:$0xf]
        %v2586 = vld [vmem:[%s2552 + $0x84] sm:$0xf]
        %v2587 = vld [vmem:[%s2552 + $0x88] sm:$0xf]
        %v2588 = vld [vmem:[%s2552 + $0x8c] sm:$0xf]
        %v2589 = vld [vmem:[%s2552 + $0x90] sm:$0xf]
        %v2590 = vld [vmem:[%s2552 + $0x94] sm:$0xf]
        %v2591 = vld [vmem:[%s2552 + $0x98] sm:$0xf]
        %v2592 = vld [vmem:[%s2552 + $0x9c] sm:$0xf]
        %v2593 = vld [vmem:[%s2552 + $0xa0] sm:$0xf]
        %v2594 = vld [vmem:[%s2552 + $0xa4] sm:$0xf]
        %v2595 = vld [vmem:[%s2552 + $0xa8] sm:$0xf]
        %v2596 = vld [vmem:[%s2552 + $0xac] sm:$0xf]
        %v2597 = vld [vmem:[%s2552 + $0xb0] sm:$0xf]
        %v2598 = vld [vmem:[%s2552 + $0xb4] sm:$0xf]
        %v2599 = vld [vmem:[%s2552 + $0xb8] sm:$0xf]
        %v2600 = vld [vmem:[%s2552 + $0xbc] sm:$0xf]
        %v2601 = vld [vmem:[%s2552 + $0xc0] sm:$0xf]
        %v2602 = vld [vmem:[%s2552 + $0xc4] sm:$0xf]
        %v2603 = vld [vmem:[%s2552 + $0xc8] sm:$0xf]
        %v2604 = vld [vmem:[%s2552 + $0xcc] sm:$0xf]
        %v2605 = vld [vmem:[%s2552 + $0xd0] sm:$0xf]
        %v2606 = vld [vmem:[%s2552 + $0xd4] sm:$0xf]
        %v2607 = vld [vmem:[%s2552 + $0xd8] sm:$0xf]
        %v2608 = vld [vmem:[%s2552 + $0xdc] sm:$0xf]
        %v2609 = vld [vmem:[%s2552 + $0xe0] sm:$0xf]
        %v2610 = vld [vmem:[%s2552 + $0xe4] sm:$0xf]
        %v2611 = vld [vmem:[%s2552 + $0xe8] sm:$0xf]
        %v2612 = vld [vmem:[%s2552 + $0xec] sm:$0xf]
        %v2613 = vld [vmem:[%s2552 + $0xf0] sm:$0xf]
        %v2614 = vld [vmem:[%s2552 + $0xf4] sm:$0xf]
        %v2615 = vld [vmem:[%s2552 + $0xf8] sm:$0xf]
        %v2616 = vld [vmem:[%s2552 + $0xfc] sm:$0xf]
        %v2617 = vld [vmem:[%s2552 + $0x100] sm:$0xf]
        %v2618 = vld [vmem:[%s2552 + $0x104] sm:$0xf]
        %v2619 = vld [vmem:[%s2552 + $0x108] sm:$0xf]
        %v2620 = vld [vmem:[%s2552 + $0x10c] sm:$0xf]
        %v2621 = vld [vmem:[%s2552 + $0x110] sm:$0xf]
        %v2622 = vld [vmem:[%s2552 + $0x114] sm:$0xf]
        %v2623 = vld [vmem:[%s2552 + $0x118] sm:$0xf]
        %v2624 = vld [vmem:[%s2552 + $0x11c] sm:$0xf]
        %v2625 = vld [vmem:[%s2552 + $0x120] sm:$0xf]
        %v2626 = vld [vmem:[%s2552 + $0x124] sm:$0xf]
        %v2627 = vld [vmem:[%s2552 + $0x128] sm:$0xf]
        %v2628 = vld [vmem:[%s2552 + $0x12c] sm:$0xf]
        %v2629 = vld [vmem:[%s2552 + $0x130] sm:$0xf]
        %v2630 = vld [vmem:[%s2552 + $0x134] sm:$0xf]
        %v2631 = vld [vmem:[%s2552 + $0x138] sm:$0xf]
        %v2632 = vld [vmem:[%s2552 + $0x13c] sm:$0xf]
        %v2633 = vld [vmem:[%s2552 + $0x140] sm:$0xf]
        %v2634 = vld [vmem:[%s2552 + $0x144] sm:$0xf]
        %v2635 = vld [vmem:[%s2552 + $0x148] sm:$0xf]
        %v2636 = vld [vmem:[%s2552 + $0x14c] sm:$0xf]
        %v2637 = vld [vmem:[%s2552 + $0x150] sm:$0xf]
        %v2638 = vld [vmem:[%s2552 + $0x154] sm:$0xf]
        %v2639 = vld [vmem:[%s2552 + $0x158] sm:$0xf]
        %v2640 = vld [vmem:[%s2552 + $0x15c] sm:$0xf]
        %v2641 = vld [vmem:[%s2552 + $0x160] sm:$0xf]
        %v2642 = vld [vmem:[%s2552 + $0x164] sm:$0xf]
        %v2643 = vld [vmem:[%s2552 + $0x168] sm:$0xf]
        %v2644 = vld [vmem:[%s2552 + $0x16c] sm:$0xf]
        %v2645 = vld [vmem:[%s2552 + $0x170] sm:$0xf]
        %v2646 = vld [vmem:[%s2552 + $0x174] sm:$0xf]
        %v2647 = vld [vmem:[%s2552 + $0x178] sm:$0xf]
        %v2648 = vld [vmem:[%s2552 + $0x17c] sm:$0xf]
        %v2649 = vld [vmem:[%s2552 + $0x180] sm:$0xf]
        %v2650 = vld [vmem:[%s2552 + $0x184] sm:$0xf]
        %v2651 = vld [vmem:[%s2552 + $0x188] sm:$0xf]
        %v2652 = vld [vmem:[%s2552 + $0x18c] sm:$0xf]
        %v2653 = vld [vmem:[%s2552 + $0x190] sm:$0xf]
        %v2654 = vld [vmem:[%s2552 + $0x194] sm:$0xf]
        %v2655 = vld [vmem:[%s2552 + $0x198] sm:$0xf]
        %v2656 = vld [vmem:[%s2552 + $0x19c] sm:$0xf]
        %v2657 = vld [vmem:[%s2552 + $0x1a0] sm:$0xf]
        %v2658 = vld [vmem:[%s2552 + $0x1a4] sm:$0xf]
        %v2659 = vld [vmem:[%s2552 + $0x1a8] sm:$0xf]
        %v2660 = vld [vmem:[%s2552 + $0x1ac] sm:$0xf]
        %v2661 = vld [vmem:[%s2552 + $0x1b0] sm:$0xf]
        %v2662 = vld [vmem:[%s2552 + $0x1b4] sm:$0xf]
        %v2663 = vld [vmem:[%s2552 + $0x1b8] sm:$0xf]
        %v2664 = vld [vmem:[%s2552 + $0x1bc] sm:$0xf]
        %v2666 = vshrl.u32 %v2324, 16
        %v2668 = vrot.slane %v2666, 2
        %v2669 = vshll.u32 %v2324, 16
        %v2671 = vrot.slane %v2669, 3
        %v2672 = vor.u32 %v2668, %v2671
        %v2673 = vrot.slane %v2345, 2
        %v2674 = vrot.slane %v2341, 3
        %v2675 = vor.u32 %v2673, %v2674
        %v2676 = vsel %vm1256, %v2672, %v2675
        %v2678 = vshrl.u32 %v2344, 16
        %v2680 = vrot.slane %v2678, 2
        %v2681 = vshll.u32 %v2344, 16
        %v2683 = vrot.slane %v2681, 3
        %v2684 = vor.u32 %v2680, %v2683
        %v2686 = vshrl.u32 %v2352, 16
        %v2688 = vrot.slane %v2686, 2
        %v2689 = vshll.u32 %v2352, 16
        %v2691 = vrot.slane %v2689, 3
        %v2692 = vor.u32 %v2688, %v2691
        %v2693 = vsel %vm1256, %v2684, %v2692
        %v2695 = vshrl.u32 %v2385, 16
        %v2697 = vrot.slane %v2695, 2
        %v2698 = vshll.u32 %v2385, 16
        %v2700 = vrot.slane %v2698, 3
        %v2701 = vor.u32 %v2697, %v2700
        %v2703 = vshrl.u32 %v2387, 16
        %v2705 = vrot.slane %v2703, 2
        %v2706 = vshll.u32 %v2387, 16
        %v2708 = vrot.slane %v2706, 3
        %v2709 = vor.u32 %v2705, %v2708
        %v2710 = vsel %vm1256, %v2701, %v2709
        %v2712 = vshrl.u32 %v2406, 16
        %v2714 = vrot.slane %v2712, 2
        %v2715 = vshll.u32 %v2406, 16
        %v2717 = vrot.slane %v2715, 3
        %v2718 = vor.u32 %v2714, %v2717
        %v2720 = vshrl.u32 %v2415, 16
        %v2722 = vrot.slane %v2720, 2
        %v2723 = vshll.u32 %v2415, 16
        %v2725 = vrot.slane %v2723, 3
        %v2726 = vor.u32 %v2722, %v2725
        %v2727 = vsel %vm1256, %v2718, %v2726
        %v2729 = vshrl.u32 %v2471, 16
        %v2731 = vrot.slane %v2729, 2
        %v2732 = vshll.u32 %v2471, 16
        %v2734 = vrot.slane %v2732, 3
        %v2735 = vor.u32 %v2731, %v2734
        %v2737 = vshrl.u32 %v2473, 16
        %v2739 = vrot.slane %v2737, 2
        %v2740 = vshll.u32 %v2473, 16
        %v2742 = vrot.slane %v2740, 3
        %v2743 = vor.u32 %v2739, %v2742
        %v2744 = vsel %vm1256, %v2735, %v2743
        %v2746 = vshrl.u32 %v2492, 16
        %v2748 = vrot.slane %v2746, 2
        %v2749 = vshll.u32 %v2492, 16
        %v2751 = vrot.slane %v2749, 3
        %v2752 = vor.u32 %v2748, %v2751
        %v2754 = vshrl.u32 %v2501, 16
        %v2756 = vrot.slane %v2754, 2
        %v2757 = vshll.u32 %v2501, 16
        %v2759 = vrot.slane %v2757, 3
        %v2760 = vor.u32 %v2756, %v2759
        %v2761 = vsel %vm1256, %v2752, %v2760
        %v2763 = vshrl.u32 %v2541, 16
        %v2765 = vrot.slane %v2763, 2
        %v2766 = vshll.u32 %v2541, 16
        %v2768 = vrot.slane %v2766, 3
        %v2769 = vor.u32 %v2765, %v2768
        %v2771 = vshrl.u32 %v2543, 16
        %v2773 = vrot.slane %v2771, 2
        %v2774 = vshll.u32 %v2543, 16
        %v2776 = vrot.slane %v2774, 3
        %v2777 = vor.u32 %v2773, %v2776
        %v2778 = vsel %vm1256, %v2769, %v2777
        %v2779 = vrot.slane %v2353, 2
        %v2780 = vrot.slane %v2349, 3
        %v2781 = vor.u32 %v2779, %v2780
        %v2782 = vsel %vm1256, %v2675, %v2781
        %v2784 = vshrl.u32 %v2360, 16
        %v2786 = vrot.slane %v2784, 2
        %v2787 = vshll.u32 %v2360, 16
        %v2789 = vrot.slane %v2787, 3
        %v2790 = vor.u32 %v2786, %v2789
        %v2791 = vsel %vm1256, %v2692, %v2790
        %v2793 = vshrl.u32 %v2389, 16
        %v2795 = vrot.slane %v2793, 2
        %v2796 = vshll.u32 %v2389, 16
        %v2798 = vrot.slane %v2796, 3
        %v2799 = vor.u32 %v2795, %v2798
        %v2800 = vsel %vm1256, %v2709, %v2799
        %v2802 = vshrl.u32 %v2424, 16
        %v2804 = vrot.slane %v2802, 2
        %v2805 = vshll.u32 %v2424, 16
        %v2807 = vrot.slane %v2805, 3
        %v2808 = vor.u32 %v2804, %v2807
        %v2809 = vsel %vm1256, %v2726, %v2808
        %v2811 = vshrl.u32 %v2475, 16
        %v2813 = vrot.slane %v2811, 2
        %v2814 = vshll.u32 %v2475, 16
        %v2816 = vrot.slane %v2814, 3
        %v2817 = vor.u32 %v2813, %v2816
        %v2818 = vsel %vm1256, %v2743, %v2817
        %v2820 = vshrl.u32 %v2510, 16
        %v2822 = vrot.slane %v2820, 2
        %v2823 = vshll.u32 %v2510, 16
        %v2825 = vrot.slane %v2823, 3
        %v2826 = vor.u32 %v2822, %v2825
        %v2827 = vsel %vm1256, %v2760, %v2826
        %v2829 = vshrl.u32 %v2545, 16
        %v2831 = vrot.slane %v2829, 2
        %v2832 = vshll.u32 %v2545, 16
        %v2834 = vrot.slane %v2832, 3
        %v2835 = vor.u32 %v2831, %v2834
        %v2836 = vsel %vm1256, %v2777, %v2835
        %v2837 = vrot.slane %v2361, 2
        %v2838 = vrot.slane %v2357, 3
        %v2839 = vor.u32 %v2837, %v2838
        %v2840 = vsel %vm1256, %v2781, %v2839
        %v2842 = vshrl.u32 %v2368, 16
        %v2844 = vrot.slane %v2842, 2
        %v2845 = vshll.u32 %v2368, 16
        %v2847 = vrot.slane %v2845, 3
        %v2848 = vor.u32 %v2844, %v2847
        %v2849 = vsel %vm1256, %v2790, %v2848
        %v2851 = vshrl.u32 %v2391, 16
        %v2853 = vrot.slane %v2851, 2
        %v2854 = vshll.u32 %v2391, 16
        %v2856 = vrot.slane %v2854, 3
        %v2857 = vor.u32 %v2853, %v2856
        %v2858 = vsel %vm1256, %v2799, %v2857
        %v2860 = vshrl.u32 %v2433, 16
        %v2862 = vrot.slane %v2860, 2
        %v2863 = vshll.u32 %v2433, 16
        %v2865 = vrot.slane %v2863, 3
        %v2866 = vor.u32 %v2862, %v2865
        %v2867 = vsel %vm1256, %v2808, %v2866
        %v2869 = vshrl.u32 %v2477, 16
        %v2871 = vrot.slane %v2869, 2
        %v2872 = vshll.u32 %v2477, 16
        %v2874 = vrot.slane %v2872, 3
        %v2875 = vor.u32 %v2871, %v2874
        %v2876 = vsel %vm1256, %v2817, %v2875
        %v2878 = vshrl.u32 %v2519, 16
        %v2880 = vrot.slane %v2878, 2
        %v2881 = vshll.u32 %v2519, 16
        %v2883 = vrot.slane %v2881, 3
        %v2884 = vor.u32 %v2880, %v2883
        %v2885 = vsel %vm1256, %v2826, %v2884
        %v2887 = vshrl.u32 %v2547, 16
        %v2889 = vrot.slane %v2887, 2
        %v2890 = vshll.u32 %v2547, 16
        %v2892 = vrot.slane %v2890, 3
        %v2893 = vor.u32 %v2889, %v2892
        %v2894 = vsel %vm1256, %v2835, %v2893
        %v2895 = vrot.slane %v2369, 2
        %v2896 = vrot.slane %v2365, 3
        %v2897 = vor.u32 %v2895, %v2896
        %v2898 = vsel %vm1256, %v2839, %v2897
        %v2900 = vshrl.u32 %v2376, 16
        %v2902 = vrot.slane %v2900, 2
        %v2903 = vshll.u32 %v2376, 16
        %v2905 = vrot.slane %v2903, 3
        %v2906 = vor.u32 %v2902, %v2905
        %v2907 = vsel %vm1256, %v2848, %v2906
        %v2909 = vshrl.u32 %v2393, 16
        %v2911 = vrot.slane %v2909, 2
        %v2912 = vshll.u32 %v2393, 16
        %v2914 = vrot.slane %v2912, 3
        %v2915 = vor.u32 %v2911, %v2914
        %v2916 = vsel %vm1256, %v2857, %v2915
        %v2918 = vshrl.u32 %v2442, 16
        %v2920 = vrot.slane %v2918, 2
        %v2921 = vshll.u32 %v2442, 16
        %v2923 = vrot.slane %v2921, 3
        %v2924 = vor.u32 %v2920, %v2923
        %v2925 = vsel %vm1256, %v2866, %v2924
        %v2927 = vshrl.u32 %v2479, 16
        %v2929 = vrot.slane %v2927, 2
        %v2930 = vshll.u32 %v2479, 16
        %v2932 = vrot.slane %v2930, 3
        %v2933 = vor.u32 %v2929, %v2932
        %v2934 = vsel %vm1256, %v2875, %v2933
        %v2936 = vshrl.u32 %v2528, 16
        %v2938 = vrot.slane %v2936, 2
        %v2939 = vshll.u32 %v2528, 16
        %v2941 = vrot.slane %v2939, 3
        %v2942 = vor.u32 %v2938, %v2941
        %v2943 = vsel %vm1256, %v2884, %v2942
        %v2945 = vshrl.u32 %v2549, 16
        %v2947 = vrot.slane %v2945, 2
        %v2948 = vshll.u32 %v2549, 16
        %v2950 = vrot.slane %v2948, 3
        %v2951 = vor.u32 %v2947, %v2950
        %v2952 = vsel %vm1256, %v2893, %v2951
        %v2953 = vrot.slane %v2377, 2
        %v2954 = vrot.slane %v2373, 3
        %v2955 = vor.u32 %v2953, %v2954
        %v2956 = vsel %vm1256, %v2897, %v2955
        %v2958 = vshrl.u32 %v2379, 16
        %v2960 = vrot.slane %v2958, 2
        %v2961 = vshll.u32 %v2379, 16
        %v2963 = vrot.slane %v2961, 3
        %v2964 = vor.u32 %v2960, %v2963
        %v2965 = vsel %vm1256, %v2906, %v2964
        %v2967 = vshrl.u32 %v2392, 16
        %v2969 = vrot.slane %v2967, 2
        %v2970 = vshll.u32 %v2392, 16
        %v2972 = vrot.slane %v2970, 3
        %v2973 = vor.u32 %v2969, %v2972
        %v2974 = vsel %vm1256, %v2915, %v2973
        %v2976 = vshrl.u32 %v2441, 16
        %v2978 = vrot.slane %v2976, 2
        %v2979 = vshll.u32 %v2441, 16
        %v2981 = vrot.slane %v2979, 3
        %v2982 = vor.u32 %v2978, %v2981
        %v2983 = vsel %vm1256, %v2924, %v2982
        %v2985 = vshrl.u32 %v2481, 16
        %v2987 = vrot.slane %v2985, 2
        %v2988 = vshll.u32 %v2481, 16
        %v2990 = vrot.slane %v2988, 3
        %v2991 = vor.u32 %v2987, %v2990
        %v2992 = vsel %vm1256, %v2933, %v2991
        %v2994 = vshrl.u32 %v2537, 16
        %v2996 = vrot.slane %v2994, 2
        %v2997 = vshll.u32 %v2537, 16
        %v2999 = vrot.slane %v2997, 3
        %v3000 = vor.u32 %v2996, %v2999
        %v3001 = vsel %vm1256, %v2942, %v3000
        %v3003 = vshrl.u32 %v2551, 16
        %v3005 = vrot.slane %v3003, 2
        %v3006 = vshll.u32 %v2551, 16
        %v3008 = vrot.slane %v3006, 3
        %v3009 = vor.u32 %v3005, %v3008
        %v3010 = vsel %vm1256, %v2951, %v3009
        %v3158 = vunpack.c.l.b16 %v2553
        %v3159 = vunpack.c.l.b16 %v2554
        %v3160 = vunpack.c.l.b16 %v2555
        %v3161 = vunpack.c.l.b16 %v2556
        %v3162 = vunpack.c.l.b16 %v2557
        %v3163 = vunpack.c.l.b16 %v2558
        %v3164 = vunpack.c.l.b16 %v2559
        %v3165 = vunpack.c.l.b16 %v2560
        %v3166 = vunpack.c.l.b16 %v2561
        %v3167 = vunpack.c.l.b16 %v2562
        %v3168 = vunpack.c.l.b16 %v2563
        %v3169 = vunpack.c.l.b16 %v2564
        %v3170 = vunpack.c.l.b16 %v2565
        %v3171 = vunpack.c.l.b16 %v2566
        %v3172 = vunpack.c.l.b16 %v2567
        %v3173 = vunpack.c.l.b16 %v2568
        %v3174 = vunpack.c.l.b16 %v2569
        %v3175 = vunpack.c.l.b16 %v2570
        %v3176 = vunpack.c.l.b16 %v2571
        %v3177 = vunpack.c.l.b16 %v2572
        %v3178 = vunpack.c.l.b16 %v2573
        %v3179 = vunpack.c.l.b16 %v2574
        %v3180 = vunpack.c.l.b16 %v2575
        %v3181 = vunpack.c.l.b16 %v2576
        %v3182 = vunpack.c.l.b16 %v2577
        %v3183 = vunpack.c.l.b16 %v2578
        %v3184 = vunpack.c.l.b16 %v2579
        %v3185 = vunpack.c.l.b16 %v2580
        %v3186 = vunpack.c.l.b16 %v2581
        %v3187 = vunpack.c.l.b16 %v2582
        %v3188 = vunpack.c.l.b16 %v2583
        %v3189 = vunpack.c.l.b16 %v2584
        %v3190 = vunpack.c.l.b16 %v2585
        %v3191 = vunpack.c.l.b16 %v2586
        %v3192 = vunpack.c.l.b16 %v2587
        %v3193 = vunpack.c.l.b16 %v2588
        %v3194 = vunpack.c.l.b16 %v2589
        %v3195 = vunpack.c.l.b16 %v2590
        %v3196 = vunpack.c.l.b16 %v2591
        %v3197 = vunpack.c.l.b16 %v2592
        %v3198 = vunpack.c.l.b16 %v2593
        %v3199 = vunpack.c.l.b16 %v2594
        %v3200 = vunpack.c.l.b16 %v2595
        %v3201 = vunpack.c.l.b16 %v2596
        %v3202 = vunpack.c.l.b16 %v2597
        %v3203 = vunpack.c.l.b16 %v2598
        %v3204 = vunpack.c.l.b16 %v2599
        %v3205 = vunpack.c.l.b16 %v2600
        %v3206 = vunpack.c.l.b16 %v2601
        %v3207 = vunpack.c.l.b16 %v2602
        %v3208 = vunpack.c.l.b16 %v2603
        %v3209 = vunpack.c.l.b16 %v2604
        %v3210 = vunpack.c.l.b16 %v2605
        %v3211 = vunpack.c.l.b16 %v2606
        %v3212 = vunpack.c.l.b16 %v2607
        %v3213 = vunpack.c.l.b16 %v2608
        %v3214 = vunpack.c.l.b16 %v2609
        %v3215 = vunpack.c.l.b16 %v2610
        %v3216 = vunpack.c.l.b16 %v2611
        %v3217 = vunpack.c.l.b16 %v2612
        %v3218 = vunpack.c.l.b16 %v2613
        %v3219 = vunpack.c.l.b16 %v2614
        %v3220 = vunpack.c.l.b16 %v2615
        %v3221 = vunpack.c.l.b16 %v2616
        %v3222 = vunpack.c.l.b16 %v2617
        %v3223 = vunpack.c.l.b16 %v2618
        %v3224 = vunpack.c.l.b16 %v2619
        %v3225 = vunpack.c.l.b16 %v2620
        %v3226 = vunpack.c.l.b16 %v2621
        %v3227 = vunpack.c.l.b16 %v2622
        %v3228 = vunpack.c.l.b16 %v2623
        %v3229 = vunpack.c.l.b16 %v2624
        %v3230 = vunpack.c.l.b16 %v2625
        %v3231 = vunpack.c.l.b16 %v2626
        %v3232 = vunpack.c.l.b16 %v2627
        %v3233 = vunpack.c.l.b16 %v2628
        %v3234 = vunpack.c.l.b16 %v2629
        %v3235 = vunpack.c.l.b16 %v2630
        %v3236 = vunpack.c.l.b16 %v2631
        %v3237 = vunpack.c.l.b16 %v2632
        %v3238 = vunpack.c.l.b16 %v2633
        %v3239 = vunpack.c.l.b16 %v2634
        %v3240 = vunpack.c.l.b16 %v2635
        %v3241 = vunpack.c.l.b16 %v2636
        %v3242 = vunpack.c.l.b16 %v2637
        %v3243 = vunpack.c.l.b16 %v2638
        %v3244 = vunpack.c.l.b16 %v2639
        %v3245 = vunpack.c.l.b16 %v2640
        %v3246 = vunpack.c.l.b16 %v2641
        %v3247 = vunpack.c.l.b16 %v2642
        %v3248 = vunpack.c.l.b16 %v2643
        %v3249 = vunpack.c.l.b16 %v2644
        %v3250 = vunpack.c.l.b16 %v2645
        %v3251 = vunpack.c.l.b16 %v2646
        %v3252 = vunpack.c.l.b16 %v2647
        %v3253 = vunpack.c.l.b16 %v2648
        %v3254 = vunpack.c.l.b16 %v2649
        %v3255 = vunpack.c.l.b16 %v2650
        %v3256 = vunpack.c.l.b16 %v2651
        %v3257 = vunpack.c.l.b16 %v2652
        %v3258 = vunpack.c.l.b16 %v2653
        %v3259 = vunpack.c.l.b16 %v2654
        %v3260 = vunpack.c.l.b16 %v2655
        %v3261 = vunpack.c.l.b16 %v2656
        %v3262 = vunpack.c.l.b16 %v2657
        %v3263 = vunpack.c.l.b16 %v2658
        %v3264 = vunpack.c.l.b16 %v2659
        %v3265 = vunpack.c.l.b16 %v2660
        %v3266 = vunpack.c.l.b16 %v2661
        %v3267 = vunpack.c.l.b16 %v2662
        %v3268 = vunpack.c.l.b16 %v2663
        %v3269 = vunpack.c.l.b16 %v2664
        %v3270 = vpack.c.b16 %v3159, %v3158
        %v3271 = vpack.c.b16 %v3161, %v3160
        %v3272 = vpack.c.b16 %v3163, %v3162
        %v3273 = vpack.c.b16 %v3165, %v3164
        %v3274 = vpack.c.b16 %v3167, %v3166
        %v3275 = vpack.c.b16 %v3169, %v3168
        %v3276 = vpack.c.b16 %v3171, %v3170
        %v3277 = vpack.c.b16 %v3173, %v3172
        %v3278 = vpack.c.b16 %v3175, %v3174
        %v3279 = vpack.c.b16 %v3177, %v3176
        %v3280 = vpack.c.b16 %v3179, %v3178
        %v3281 = vpack.c.b16 %v3181, %v3180
        %v3282 = vpack.c.b16 %v3183, %v3182
        %v3283 = vpack.c.b16 %v3185, %v3184
        %v3284 = vpack.c.b16 %v3187, %v3186
        %v3285 = vpack.c.b16 %v3189, %v3188
        %v3286 = vpack.c.b16 %v3191, %v3190
        %v3287 = vpack.c.b16 %v3193, %v3192
        %v3288 = vpack.c.b16 %v3195, %v3194
        %v3289 = vpack.c.b16 %v3197, %v3196
        %v3290 = vpack.c.b16 %v3199, %v3198
        %v3291 = vpack.c.b16 %v3201, %v3200
        %v3292 = vpack.c.b16 %v3203, %v3202
        %v3293 = vpack.c.b16 %v3205, %v3204
        %v3294 = vpack.c.b16 %v3207, %v3206
        %v3295 = vpack.c.b16 %v3209, %v3208
        %v3296 = vpack.c.b16 %v3211, %v3210
        %v3297 = vpack.c.b16 %v3213, %v3212
        %v3298 = vpack.c.b16 %v3215, %v3214
        %v3299 = vpack.c.b16 %v3217, %v3216
        %v3300 = vpack.c.b16 %v3219, %v3218
        %v3301 = vpack.c.b16 %v3221, %v3220
        %v3302 = vpack.c.b16 %v3223, %v3222
        %v3303 = vpack.c.b16 %v3225, %v3224
        %v3304 = vpack.c.b16 %v3227, %v3226
        %v3305 = vpack.c.b16 %v3229, %v3228
        %v3306 = vpack.c.b16 %v3231, %v3230
        %v3307 = vpack.c.b16 %v3233, %v3232
        %v3308 = vpack.c.b16 %v3235, %v3234
        %v3309 = vpack.c.b16 %v3237, %v3236
        %v3310 = vpack.c.b16 %v3239, %v3238
        %v3311 = vpack.c.b16 %v3241, %v3240
        %v3312 = vpack.c.b16 %v3243, %v3242
        %v3313 = vpack.c.b16 %v3245, %v3244
        %v3314 = vpack.c.b16 %v3247, %v3246
        %v3315 = vpack.c.b16 %v3249, %v3248
        %v3316 = vpack.c.b16 %v3251, %v3250
        %v3317 = vpack.c.b16 %v3253, %v3252
        %v3318 = vpack.c.b16 %v3255, %v3254
        %v3319 = vpack.c.b16 %v3257, %v3256
        %v3320 = vpack.c.b16 %v3259, %v3258
        %v3321 = vpack.c.b16 %v3261, %v3260
        %v3322 = vpack.c.b16 %v3263, %v3262
        %v3323 = vpack.c.b16 %v3265, %v3264
        %v3324 = vpack.c.b16 %v3267, %v3266
        %v3325 = vpack.c.b16 %v3269, %v3268
        %3382 = vmatpush.bf16.msra.mxu0 %v3277
        %3383 = vmatpush.bf16.msra.mxu0 %v3276
        %3384 = vmatpush.bf16.msra.mxu0 %v3275
        %3385 = vmatpush.bf16.msra.mxu0 %v3274
        %3386 = vmatpush.bf16.msra.mxu0 %v3273
        %3387 = vmatpush.bf16.msra.mxu0 %v3272
        %3388 = vmatpush.bf16.msra.mxu0 %v3271
        %3389 = vmatpush.bf16.msra.mxu0 %v3270
        %3390 = vmatmul.bf16.gmra.mxu0 %v2676
        %v3391 = vpop.f32.mrf.mxu0
        %v3392 = vadd.f32 0.0, %v3391
        %v3393 = vpop.f32.mrf.mxu0
        %v3394 = vadd.f32 0.0, %v3393
        %3395 = vmatmul.bf16.gmra.mxu0 %v2782
        %v3396 = vpop.f32.mrf.mxu0
        %v3397 = vadd.f32 0.0, %v3396
        %v3398 = vpop.f32.mrf.mxu0
        %v3399 = vadd.f32 0.0, %v3398
        %3400 = vmatmul.bf16.gmra.mxu0 %v2840
        %v3401 = vpop.f32.mrf.mxu0
        %v3402 = vadd.f32 0.0, %v3401
        %v3403 = vpop.f32.mrf.mxu0
        %v3404 = vadd.f32 0.0, %v3403
        %3405 = vmatmul.bf16.gmra.mxu0 %v2898
        %v3406 = vpop.f32.mrf.mxu0
        %v3407 = vadd.f32 0.0, %v3406
        %v3408 = vpop.f32.mrf.mxu0
        %v3409 = vadd.f32 0.0, %v3408
        %3410 = vmatmul.bf16.gmra.mxu0 %v2956
        %v3411 = vpop.f32.mrf.mxu0
        %v3412 = vadd.f32 0.0, %v3411
        %v3413 = vpop.f32.mrf.mxu0
        %v3414 = vadd.f32 0.0, %v3413
        %3415 = vdwg.mxu0
        %3416 = vmatpush.bf16.msra.mxu0 %v3285
        %3417 = vmatpush.bf16.msra.mxu0 %v3284
        %3418 = vmatpush.bf16.msra.mxu0 %v3283
        %3419 = vmatpush.bf16.msra.mxu0 %v3282
        %3420 = vmatpush.bf16.msra.mxu0 %v3281
        %3421 = vmatpush.bf16.msra.mxu0 %v3280
        %3422 = vmatpush.bf16.msra.mxu0 %v3279
        %3423 = vmatpush.bf16.msra.mxu0 %v3278
        %3424 = vmatmul.bf16.gmra.mxu0 %v2693
        %v3425 = vpop.f32.mrf.mxu0
        %v3426 = vadd.f32 %v3392, %v3425
        %v3427 = vpop.f32.mrf.mxu0
        %v3428 = vadd.f32 %v3394, %v3427
        %3429 = vmatmul.bf16.gmra.mxu0 %v2791
        %v3430 = vpop.f32.mrf.mxu0
        %v3431 = vadd.f32 %v3397, %v3430
        %v3432 = vpop.f32.mrf.mxu0
        %v3433 = vadd.f32 %v3399, %v3432
        %3434 = vmatmul.bf16.gmra.mxu0 %v2849
        %v3435 = vpop.f32.mrf.mxu0
        %v3436 = vadd.f32 %v3402, %v3435
        %v3437 = vpop.f32.mrf.mxu0
        %v3438 = vadd.f32 %v3404, %v3437
        %3439 = vmatmul.bf16.gmra.mxu0 %v2907
        %v3440 = vpop.f32.mrf.mxu0
        %v3441 = vadd.f32 %v3407, %v3440
        %v3442 = vpop.f32.mrf.mxu0
        %v3443 = vadd.f32 %v3409, %v3442
        %3444 = vmatmul.bf16.gmra.mxu0 %v2965
        %v3445 = vpop.f32.mrf.mxu0
        %v3446 = vadd.f32 %v3412, %v3445
        %v3447 = vpop.f32.mrf.mxu0
        %v3448 = vadd.f32 %v3414, %v3447
        %3449 = vdwg.mxu0
        %3450 = vmatpush.bf16.msra.mxu0 %v3293
        %3451 = vmatpush.bf16.msra.mxu0 %v3292
        %3452 = vmatpush.bf16.msra.mxu0 %v3291
        %3453 = vmatpush.bf16.msra.mxu0 %v3290
        %3454 = vmatpush.bf16.msra.mxu0 %v3289
        %3455 = vmatpush.bf16.msra.mxu0 %v3288
        %3456 = vmatpush.bf16.msra.mxu0 %v3287
        %3457 = vmatpush.bf16.msra.mxu0 %v3286
        %3458 = vmatmul.bf16.gmra.mxu0 %v2710
        %v3459 = vpop.f32.mrf.mxu0
        %v3460 = vadd.f32 %v3426, %v3459
        %v3461 = vpop.f32.mrf.mxu0
        %v3462 = vadd.f32 %v3428, %v3461
        %3463 = vmatmul.bf16.gmra.mxu0 %v2800
        %v3464 = vpop.f32.mrf.mxu0
        %v3465 = vadd.f32 %v3431, %v3464
        %v3466 = vpop.f32.mrf.mxu0
        %v3467 = vadd.f32 %v3433, %v3466
        %3468 = vmatmul.bf16.gmra.mxu0 %v2858
        %v3469 = vpop.f32.mrf.mxu0
        %v3470 = vadd.f32 %v3436, %v3469
        %v3471 = vpop.f32.mrf.mxu0
        %v3472 = vadd.f32 %v3438, %v3471
        %3473 = vmatmul.bf16.gmra.mxu0 %v2916
        %v3474 = vpop.f32.mrf.mxu0
        %v3475 = vadd.f32 %v3441, %v3474
        %v3476 = vpop.f32.mrf.mxu0
        %v3477 = vadd.f32 %v3443, %v3476
        %3478 = vmatmul.bf16.gmra.mxu0 %v2974
        %v3479 = vpop.f32.mrf.mxu0
        %v3480 = vadd.f32 %v3446, %v3479
        %v3481 = vpop.f32.mrf.mxu0
        %v3482 = vadd.f32 %v3448, %v3481
        %3483 = vdwg.mxu0
        %3484 = vmatpush.bf16.msra.mxu0 %v3301
        %3485 = vmatpush.bf16.msra.mxu0 %v3300
        %3486 = vmatpush.bf16.msra.mxu0 %v3299
        %3487 = vmatpush.bf16.msra.mxu0 %v3298
        %3488 = vmatpush.bf16.msra.mxu0 %v3297
        %3489 = vmatpush.bf16.msra.mxu0 %v3296
        %3490 = vmatpush.bf16.msra.mxu0 %v3295
        %3491 = vmatpush.bf16.msra.mxu0 %v3294
        %3492 = vmatmul.bf16.gmra.mxu0 %v2727
        %v3493 = vpop.f32.mrf.mxu0
        %v3494 = vadd.f32 %v3460, %v3493
        %v3495 = vpop.f32.mrf.mxu0
        %v3496 = vadd.f32 %v3462, %v3495
        %3497 = vmatmul.bf16.gmra.mxu0 %v2809
        %v3498 = vpop.f32.mrf.mxu0
        %v3499 = vadd.f32 %v3465, %v3498
        %v3500 = vpop.f32.mrf.mxu0
        %v3501 = vadd.f32 %v3467, %v3500
        %3502 = vmatmul.bf16.gmra.mxu0 %v2867
        %v3503 = vpop.f32.mrf.mxu0
        %v3504 = vadd.f32 %v3470, %v3503
        %v3505 = vpop.f32.mrf.mxu0
        %v3506 = vadd.f32 %v3472, %v3505
        %3507 = vmatmul.bf16.gmra.mxu0 %v2925
        %v3508 = vpop.f32.mrf.mxu0
        %v3509 = vadd.f32 %v3475, %v3508
        %v3510 = vpop.f32.mrf.mxu0
        %v3511 = vadd.f32 %v3477, %v3510
        %3512 = vmatmul.bf16.gmra.mxu0 %v2983
        %v3513 = vpop.f32.mrf.mxu0
        %v3514 = vadd.f32 %v3480, %v3513
        %v3515 = vpop.f32.mrf.mxu0
        %v3516 = vadd.f32 %v3482, %v3515
        %3517 = vdwg.mxu0
        %3518 = vmatpush.bf16.msra.mxu0 %v3309
        %3519 = vmatpush.bf16.msra.mxu0 %v3308
        %3520 = vmatpush.bf16.msra.mxu0 %v3307
        %3521 = vmatpush.bf16.msra.mxu0 %v3306
        %3522 = vmatpush.bf16.msra.mxu0 %v3305
        %3523 = vmatpush.bf16.msra.mxu0 %v3304
        %3524 = vmatpush.bf16.msra.mxu0 %v3303
        %3525 = vmatpush.bf16.msra.mxu0 %v3302
        %3526 = vmatmul.bf16.gmra.mxu0 %v2744
        %v3527 = vpop.f32.mrf.mxu0
        %v3528 = vadd.f32 %v3494, %v3527
        %v3529 = vpop.f32.mrf.mxu0
        %v3530 = vadd.f32 %v3496, %v3529
        %3531 = vmatmul.bf16.gmra.mxu0 %v2818
        %v3532 = vpop.f32.mrf.mxu0
        %v3533 = vadd.f32 %v3499, %v3532
        %v3534 = vpop.f32.mrf.mxu0
        %v3535 = vadd.f32 %v3501, %v3534
        %3536 = vmatmul.bf16.gmra.mxu0 %v2876
        %v3537 = vpop.f32.mrf.mxu0
        %v3538 = vadd.f32 %v3504, %v3537
        %v3539 = vpop.f32.mrf.mxu0
        %v3540 = vadd.f32 %v3506, %v3539
        %3541 = vmatmul.bf16.gmra.mxu0 %v2934
        %v3542 = vpop.f32.mrf.mxu0
        %v3543 = vadd.f32 %v3509, %v3542
        %v3544 = vpop.f32.mrf.mxu0
        %v3545 = vadd.f32 %v3511, %v3544
        %3546 = vmatmul.bf16.gmra.mxu0 %v2992
        %v3547 = vpop.f32.mrf.mxu0
        %v3548 = vadd.f32 %v3514, %v3547
        %v3549 = vpop.f32.mrf.mxu0
        %v3550 = vadd.f32 %v3516, %v3549
        %3551 = vdwg.mxu0
        %3552 = vmatpush.bf16.msra.mxu0 %v3317
        %3553 = vmatpush.bf16.msra.mxu0 %v3316
        %3554 = vmatpush.bf16.msra.mxu0 %v3315
        %3555 = vmatpush.bf16.msra.mxu0 %v3314
        %3556 = vmatpush.bf16.msra.mxu0 %v3313
        %3557 = vmatpush.bf16.msra.mxu0 %v3312
        %3558 = vmatpush.bf16.msra.mxu0 %v3311
        %3559 = vmatpush.bf16.msra.mxu0 %v3310
        %3560 = vmatmul.bf16.gmra.mxu0 %v2761
        %v3561 = vpop.f32.mrf.mxu0
        %v3562 = vadd.f32 %v3528, %v3561
        %v3563 = vpop.f32.mrf.mxu0
        %v3564 = vadd.f32 %v3530, %v3563
        %3565 = vmatmul.bf16.gmra.mxu0 %v2827
        %v3566 = vpop.f32.mrf.mxu0
        %v3567 = vadd.f32 %v3533, %v3566
        %v3568 = vpop.f32.mrf.mxu0
        %v3569 = vadd.f32 %v3535, %v3568
        %3570 = vmatmul.bf16.gmra.mxu0 %v2885
        %v3571 = vpop.f32.mrf.mxu0
        %v3572 = vadd.f32 %v3538, %v3571
        %v3573 = vpop.f32.mrf.mxu0
        %v3574 = vadd.f32 %v3540, %v3573
        %3575 = vmatmul.bf16.gmra.mxu0 %v2943
        %v3576 = vpop.f32.mrf.mxu0
        %v3577 = vadd.f32 %v3543, %v3576
        %v3578 = vpop.f32.mrf.mxu0
        %v3579 = vadd.f32 %v3545, %v3578
        %3580 = vmatmul.bf16.gmra.mxu0 %v3001
        %v3581 = vpop.f32.mrf.mxu0
        %v3582 = vadd.f32 %v3548, %v3581
        %v3583 = vpop.f32.mrf.mxu0
        %v3584 = vadd.f32 %v3550, %v3583
        %3585 = vdwg.mxu0
        %3586 = vmatpush.bf16.msra.mxu0 %v3325
        %3587 = vmatpush.bf16.msra.mxu0 %v3324
        %3588 = vmatpush.bf16.msra.mxu0 %v3323
        %3589 = vmatpush.bf16.msra.mxu0 %v3322
        %3590 = vmatpush.bf16.msra.mxu0 %v3321
        %3591 = vmatpush.bf16.msra.mxu0 %v3320
        %3592 = vmatpush.bf16.msra.mxu0 %v3319
        %3593 = vmatpush.bf16.msra.mxu0 %v3318
        %3594 = vmatmul.bf16.gmra.mxu0 %v2778
        %v3595 = vpop.f32.mrf.mxu0
        %v3596 = vadd.f32 %v3562, %v3595
        %v3597 = vpop.f32.mrf.mxu0
        %v3598 = vadd.f32 %v3564, %v3597
        %3599 = vmatmul.bf16.gmra.mxu0 %v2836
        %v3600 = vpop.f32.mrf.mxu0
        %v3601 = vadd.f32 %v3567, %v3600
        %v3602 = vpop.f32.mrf.mxu0
        %v3603 = vadd.f32 %v3569, %v3602
        %3604 = vmatmul.bf16.gmra.mxu0 %v2894
        %v3605 = vpop.f32.mrf.mxu0
        %v3606 = vadd.f32 %v3572, %v3605
        %v3607 = vpop.f32.mrf.mxu0
        %v3608 = vadd.f32 %v3574, %v3607
        %3609 = vmatmul.bf16.gmra.mxu0 %v2952
        %v3610 = vpop.f32.mrf.mxu0
        %v3611 = vadd.f32 %v3577, %v3610
        %v3612 = vpop.f32.mrf.mxu0
        %v3613 = vadd.f32 %v3579, %v3612
        %3614 = vmatmul.bf16.gmra.mxu0 %v3010
        %v3615 = vpop.f32.mrf.mxu0
        %v3616 = vadd.f32 %v3582, %v3615
        %v3617 = vpop.f32.mrf.mxu0
        %v3618 = vadd.f32 %v3584, %v3617
        %3619 = vdwg.mxu0
        %v3620 = vmul.f32 %v3596, %v744
        %v3621 = vmul.f32 %v3598, %v749
        %v3622 = vmul.f32 %v3601, %v754
        %v3623 = vmul.f32 %v3603, %v759
        %v3624 = vmul.f32 %v3606, %v764
        %v3625 = vmul.f32 %v3608, %v769
        %v3626 = vmul.f32 %v3611, %v774
        %v3627 = vmul.f32 %v3613, %v779
        %v3628 = vmul.f32 %v3616, %v784
        %v3629 = vmul.f32 %v3618, %v789
        %v3630 = vadd.f32 %v3620, %v3621
        %v3631 = vadd.f32 %v3630, %v3622
        %v3632 = vadd.f32 %v3631, %v3623
        %v3633 = vadd.f32 %v3632, %v3624
        %v3634 = vrot.slane %v3633, 4
        %v3635 = vadd.f32 %v3633, %v3634
        %v3636 = vrot.slane %v3635, 2
        %v3637 = vadd.f32 %v3635, %v3636
        %v3638 = vrot.slane %v3637, 1
        %v3639 = vadd.f32 %v3637, %v3638
        %v3640 = vadd.f32 %v3625, %v3626
        %v3641 = vadd.f32 %v3640, %v3627
        %v3642 = vadd.f32 %v3641, %v3628
        %v3643 = vadd.f32 %v3642, %v3629
        %v3644 = vrot.slane %v3643, 4
        %v3645 = vadd.f32 %v3643, %v3644
        %v3646 = vrot.slane %v3645, 2
        %v3647 = vadd.f32 %v3645, %v3646
        %v3648 = vrot.slane %v3647, 1
        %v3649 = vadd.f32 %v3647, %v3648
        %v3650 = vmul.f32 %v3639, 0.03125
        %v3651 = vmul.f32 %v3649, 0.03125
        %v3652 = vld [vmem:[%s576] sm:$0x1]
        %v3654 = vperm.slane %v3652, 0
        %v3656 = vadd.f32 %v3650, %v3654
        %v3657 = vadd.f32 %v3651, %v3654
        %v3658 = vpack.c.bf16 %v3656, %v3656
        %v3659 = vpack.c.bf16 %v3657, %v3657
        %v3660 = vld [vmem:[%s586] sm:$0xf]
        %v3661 = vld [vmem:[%s586 + $0x4] sm:$0xf]
        %v3662 = vld [vmem:[%s586 + $0x8] sm:$0xf]
        %v3663 = vld [vmem:[%s586 + $0xc] sm:$0xf]
        %v3664 = vld [vmem:[%s586 + $0x10] sm:$0xf]
        %v3665 = vld [vmem:[%s586 + $0x14] sm:$0xf]
        %v3666 = vld [vmem:[%s586 + $0x18] sm:$0xf]
        %v3667 = vld [vmem:[%s586 + $0x1c] sm:$0xf]
        %v3668 = vld [vmem:[%s586 + $0x20] sm:$0xf]
        %v3669 = vld [vmem:[%s586 + $0x24] sm:$0xf]
        %v3670 = vld [vmem:[%s586 + $0x28] sm:$0xf]
        %v3671 = vld [vmem:[%s586 + $0x2c] sm:$0xf]
        %v3672 = vld [vmem:[%s586 + $0x30] sm:$0xf]
        %v3673 = vld [vmem:[%s586 + $0x34] sm:$0xf]
        %v3674 = vld [vmem:[%s586 + $0x38] sm:$0xf]
        %v3675 = vld [vmem:[%s586 + $0x3c] sm:$0xf]
        %v3678 = vunpack.c.l.b16 %v3658
        %v3679 = vunpack.c.l.b16 %v3659
        %v3680 = vrot.slane %v3679, 7
        %vm3681 = vcmask 1041409
        %v3682 = vsel %vm3681, %v3680, %v3678
        %v3683 = vpack.c.b16 %v3682, %v3682
        %v3701 = vunpack.c.l.b16 %v3660
        %v3702 = vunpack.c.l.b16 %v3661
        %v3703 = vunpack.c.l.b16 %v3662
        %v3704 = vunpack.c.l.b16 %v3663
        %v3705 = vunpack.c.l.b16 %v3664
        %v3706 = vunpack.c.l.b16 %v3665
        %v3707 = vunpack.c.l.b16 %v3666
        %v3708 = vunpack.c.l.b16 %v3667
        %v3709 = vunpack.c.l.b16 %v3668
        %v3710 = vunpack.c.l.b16 %v3669
        %v3711 = vunpack.c.l.b16 %v3670
        %v3712 = vunpack.c.l.b16 %v3671
        %v3713 = vunpack.c.l.b16 %v3672
        %v3714 = vunpack.c.l.b16 %v3673
        %v3715 = vunpack.c.l.b16 %v3674
        %v3716 = vunpack.c.l.b16 %v3675
        %v3717 = vpack.c.b16 %v3702, %v3701
        %v3718 = vpack.c.b16 %v3704, %v3703
        %v3719 = vpack.c.b16 %v3706, %v3705
        %v3720 = vpack.c.b16 %v3708, %v3707
        %v3721 = vpack.c.b16 %v3710, %v3709
        %v3722 = vpack.c.b16 %v3712, %v3711
        %v3723 = vpack.c.b16 %v3714, %v3713
        %v3724 = vpack.c.b16 %v3716, %v3715
        %3733 = vmatpush.bf16.msra.mxu0 %v3724
        %3734 = vmatpush.bf16.msra.mxu0 %v3723
        %3735 = vmatpush.bf16.msra.mxu0 %v3722
        %3736 = vmatpush.bf16.msra.mxu0 %v3721
        %3737 = vmatpush.bf16.msra.mxu0 %v3720
        %3738 = vmatpush.bf16.msra.mxu0 %v3719
        %3739 = vmatpush.bf16.msra.mxu0 %v3718
        %3740 = vmatpush.bf16.msra.mxu0 %v3717
        %3741 = vmatmul.bf16.gmra.mxu0 %v3683
        %v3742 = vpop.f32.mrf.mxu0
        %v3743 = vadd.f32 0.0, %v3742
        %v3744 = vpop.f32.mrf.mxu0
        %3745 = vdwg.mxu0
        %v3746 = vld [vmem:[%s596] sm:$0x3]
        %v3747 = vperm.slane %v3746, 0
        %v3748 = vmul.f32 %v3743, %v3747
        %v3749 = vperm.slane %v3746, 1
        %v3750 = vadd.f32 %v3748, %v3749
        %v3751 = vmax.f32 %v3750, 0.0
        %v3752 = vpack.c.bf16 %v3751, %v3751
        %v3753 = vld [vmem:[%s606] sm:$0xf]
        %v3754 = vld [vmem:[%s606 + $0x4] sm:$0xf]
        %v3755 = vld [vmem:[%s606 + $0x8] sm:$0xf]
        %v3756 = vld [vmem:[%s606 + $0xc] sm:$0xf]
        %v3757 = vld [vmem:[%s606 + $0x10] sm:$0xf]
        %v3758 = vld [vmem:[%s606 + $0x14] sm:$0xf]
        %v3759 = vld [vmem:[%s606 + $0x18] sm:$0xf]
        %v3760 = vld [vmem:[%s606 + $0x1c] sm:$0xf]
        %v3761 = vld [vmem:[%s606 + $0x20] sm:$0xf]
        %v3762 = vld [vmem:[%s606 + $0x24] sm:$0xf]
        %v3763 = vld [vmem:[%s606 + $0x28] sm:$0xf]
        %v3764 = vld [vmem:[%s606 + $0x2c] sm:$0xf]
        %v3765 = vld [vmem:[%s606 + $0x30] sm:$0xf]
        %v3766 = vld [vmem:[%s606 + $0x34] sm:$0xf]
        %v3767 = vld [vmem:[%s606 + $0x38] sm:$0xf]
        %v3768 = vld [vmem:[%s606 + $0x3c] sm:$0xf]
        %v3785 = vunpack.c.l.b16 %v3753
        %v3786 = vunpack.c.l.b16 %v3754
        %v3787 = vunpack.c.l.b16 %v3755
        %v3788 = vunpack.c.l.b16 %v3756
        %v3789 = vunpack.c.l.b16 %v3757
        %v3790 = vunpack.c.l.b16 %v3758
        %v3791 = vunpack.c.l.b16 %v3759
        %v3792 = vunpack.c.l.b16 %v3760
        %v3793 = vunpack.c.l.b16 %v3761
        %v3794 = vunpack.c.l.b16 %v3762
        %v3795 = vunpack.c.l.b16 %v3763
        %v3796 = vunpack.c.l.b16 %v3764
        %v3797 = vunpack.c.l.b16 %v3765
        %v3798 = vunpack.c.l.b16 %v3766
        %v3799 = vunpack.c.l.b16 %v3767
        %v3800 = vunpack.c.l.b16 %v3768
        %v3801 = vpack.c.b16 %v3786, %v3785
        %v3802 = vpack.c.b16 %v3788, %v3787
        %v3803 = vpack.c.b16 %v3790, %v3789
        %v3804 = vpack.c.b16 %v3792, %v3791
        %v3805 = vpack.c.b16 %v3794, %v3793
        %v3806 = vpack.c.b16 %v3796, %v3795
        %v3807 = vpack.c.b16 %v3798, %v3797
        %v3808 = vpack.c.b16 %v3800, %v3799
        %3817 = vmatpush.bf16.msra.mxu0 %v3808
        %3818 = vmatpush.bf16.msra.mxu0 %v3807
        %3819 = vmatpush.bf16.msra.mxu0 %v3806
        %3820 = vmatpush.bf16.msra.mxu0 %v3805
        %3821 = vmatpush.bf16.msra.mxu0 %v3804
        %3822 = vmatpush.bf16.msra.mxu0 %v3803
        %3823 = vmatpush.bf16.msra.mxu0 %v3802
        %3824 = vmatpush.bf16.msra.mxu0 %v3801
        %3825 = vmatmul.bf16.gmra.mxu0 %v3752
        %v3826 = vpop.f32.mrf.mxu0
        %v3827 = vadd.f32 0.0, %v3826
        %v3828 = vpop.f32.mrf.mxu0
        %3829 = vdwg.mxu0
        %v3830 = vld [vmem:[%s616] sm:$0x3]
        %v3831 = vperm.slane %v3830, 0
        %v3832 = vmul.f32 %v3827, %v3831
        %v3833 = vperm.slane %v3830, 1
        %v3834 = vadd.f32 %v3832, %v3833
        %v3835 = vpack.c.bf16 %v3834, %v3834
        %v3836 = vld [vmem:[%s626] sm:$0xf]
        %v3837 = vld [vmem:[%s626 + $0x4] sm:$0xf]
        %v3838 = vld [vmem:[%s626 + $0x8] sm:$0xf]
        %v3839 = vld [vmem:[%s626 + $0xc] sm:$0xf]
        %v3840 = vld [vmem:[%s626 + $0x10] sm:$0xf]
        %v3841 = vld [vmem:[%s626 + $0x14] sm:$0xf]
        %v3842 = vld [vmem:[%s626 + $0x18] sm:$0xf]
        %v3843 = vld [vmem:[%s626 + $0x1c] sm:$0xf]
        %v3844 = vld [vmem:[%s626 + $0x20] sm:$0xf]
        %v3845 = vld [vmem:[%s626 + $0x24] sm:$0xf]
        %v3846 = vld [vmem:[%s626 + $0x28] sm:$0xf]
        %v3847 = vld [vmem:[%s626 + $0x2c] sm:$0xf]
        %v3848 = vld [vmem:[%s626 + $0x30] sm:$0xf]
        %v3849 = vld [vmem:[%s626 + $0x34] sm:$0xf]
        %v3850 = vld [vmem:[%s626 + $0x38] sm:$0xf]
        %v3851 = vld [vmem:[%s626 + $0x3c] sm:$0xf]
        %v3868 = vunpack.c.l.b16 %v3836
        %v3869 = vunpack.c.l.b16 %v3837
        %v3870 = vunpack.c.l.b16 %v3838
        %v3871 = vunpack.c.l.b16 %v3839
        %v3872 = vunpack.c.l.b16 %v3840
        %v3873 = vunpack.c.l.b16 %v3841
        %v3874 = vunpack.c.l.b16 %v3842
        %v3875 = vunpack.c.l.b16 %v3843
        %v3876 = vunpack.c.l.b16 %v3844
        %v3877 = vunpack.c.l.b16 %v3845
        %v3878 = vunpack.c.l.b16 %v3846
        %v3879 = vunpack.c.l.b16 %v3847
        %v3880 = vunpack.c.l.b16 %v3848
        %v3881 = vunpack.c.l.b16 %v3849
        %v3882 = vunpack.c.l.b16 %v3850
        %v3883 = vunpack.c.l.b16 %v3851
        %v3884 = vpack.c.b16 %v3869, %v3868
        %v3885 = vpack.c.b16 %v3871, %v3870
        %v3886 = vpack.c.b16 %v3873, %v3872
        %v3887 = vpack.c.b16 %v3875, %v3874
        %v3888 = vpack.c.b16 %v3877, %v3876
        %v3889 = vpack.c.b16 %v3879, %v3878
        %v3890 = vpack.c.b16 %v3881, %v3880
        %v3891 = vpack.c.b16 %v3883, %v3882
        %3900 = vmatpush.bf16.msra.mxu0 %v3891
        %3901 = vmatpush.bf16.msra.mxu0 %v3890
        %3902 = vmatpush.bf16.msra.mxu0 %v3889
        %3903 = vmatpush.bf16.msra.mxu0 %v3888
        %3904 = vmatpush.bf16.msra.mxu0 %v3887
        %3905 = vmatpush.bf16.msra.mxu0 %v3886
        %3906 = vmatpush.bf16.msra.mxu0 %v3885
        %3907 = vmatpush.bf16.msra.mxu0 %v3884
        %3908 = vmatmul.bf16.gmra.mxu0 %v3835
        %v3909 = vpop.f32.mrf.mxu0
        %v3910 = vadd.f32 0.0, %v3909
        %v3911 = vpop.f32.mrf.mxu0
        %3912 = vdwg.mxu0
        %v3913 = vmax.f32 %v3910, 0.0
        %v3914 = vpack.c.bf16 %v3913, %v3913
        %v3915 = vld [vmem:[%s636] sm:$0xf]
        %v3916 = vld [vmem:[%s636 + $0x4] sm:$0xf]
        %v3917 = vld [vmem:[%s636 + $0x8] sm:$0xf]
        %v3918 = vld [vmem:[%s636 + $0xc] sm:$0xf]
        %v3919 = vld [vmem:[%s636 + $0x10] sm:$0xf]
        %v3920 = vld [vmem:[%s636 + $0x14] sm:$0xf]
        %v3921 = vld [vmem:[%s636 + $0x18] sm:$0xf]
        %v3922 = vld [vmem:[%s636 + $0x1c] sm:$0xf]
        %v3923 = vld [vmem:[%s636 + $0x20] sm:$0xf]
        %v3924 = vld [vmem:[%s636 + $0x24] sm:$0xf]
        %v3925 = vld [vmem:[%s636 + $0x28] sm:$0xf]
        %v3926 = vld [vmem:[%s636 + $0x2c] sm:$0xf]
        %v3927 = vld [vmem:[%s636 + $0x30] sm:$0xf]
        %v3928 = vld [vmem:[%s636 + $0x34] sm:$0xf]
        %v3929 = vld [vmem:[%s636 + $0x38] sm:$0xf]
        %v3930 = vld [vmem:[%s636 + $0x3c] sm:$0xf]
        %v3947 = vunpack.c.l.b16 %v3915
        %v3948 = vunpack.c.l.b16 %v3916
        %v3949 = vunpack.c.l.b16 %v3917
        %v3950 = vunpack.c.l.b16 %v3918
        %v3951 = vunpack.c.l.b16 %v3919
        %v3952 = vunpack.c.l.b16 %v3920
        %v3953 = vunpack.c.l.b16 %v3921
        %v3954 = vunpack.c.l.b16 %v3922
        %v3955 = vunpack.c.l.b16 %v3923
        %v3956 = vunpack.c.l.b16 %v3924
        %v3957 = vunpack.c.l.b16 %v3925
        %v3958 = vunpack.c.l.b16 %v3926
        %v3959 = vunpack.c.l.b16 %v3927
        %v3960 = vunpack.c.l.b16 %v3928
        %v3961 = vunpack.c.l.b16 %v3929
        %v3962 = vunpack.c.l.b16 %v3930
        %v3963 = vpack.c.b16 %v3948, %v3947
        %v3964 = vpack.c.b16 %v3950, %v3949
        %v3965 = vpack.c.b16 %v3952, %v3951
        %v3966 = vpack.c.b16 %v3954, %v3953
        %v3967 = vpack.c.b16 %v3956, %v3955
        %v3968 = vpack.c.b16 %v3958, %v3957
        %v3969 = vpack.c.b16 %v3960, %v3959
        %v3970 = vpack.c.b16 %v3962, %v3961
        %3979 = vmatpush.bf16.msra.mxu0 %v3970
        %3980 = vmatpush.bf16.msra.mxu0 %v3969
        %3981 = vmatpush.bf16.msra.mxu0 %v3968
        %3982 = vmatpush.bf16.msra.mxu0 %v3967
        %3983 = vmatpush.bf16.msra.mxu0 %v3966
        %3984 = vmatpush.bf16.msra.mxu0 %v3965
        %3985 = vmatpush.bf16.msra.mxu0 %v3964
        %3986 = vmatpush.bf16.msra.mxu0 %v3963
        %3987 = vmatmul.bf16.gmra.mxu0 %v3914
        %v3988 = vpop.f32.mrf.mxu0
        %v3989 = vadd.f32 0.0, %v3988
        %v3990 = vpop.f32.mrf.mxu0
        %3991 = vdwg.mxu0
        %v3992 = vxor.u32 %v3989, 2147483648
        %v3993 = vmul.f32 %v3992, 1.442695
        %v3994 = vpow.pop %v3993
        %v3995 = vadd.f32 %v3994, 1.0
        %v3996 = vrcp.pop %v3995
        %v3997 = vmul.f32 %v3995, %v3996
        %v3998 = vsub.f32 1.0, %v3997
        %v3999 = vmul.f32 %v3996, %v3998
        %v4000 = vadd.f32 %v3996, %v3999
        %vm4001 = vweird.f32 %v3995
        %vm4002 = vweird.f32 %v3996
        %vm4003 = vmor %vm4001, %vm4002
        %v4004 = vsel %vm4003, %v3996, %v4000
        %v4005 = vand.u32 2147483647, %v3995
        %vm4006 = vcmp.eq.f32.partialorder %v4005, 8.507059e+37
        %v4007 = vand.u32 %v3995, 2147483648
        %v4008 = vor.u32 1.1754944e-38, %v4007
        %v4009 = vsel %vm4006, %v4008, %v4004
        %v4010 = vmul.f32 1.0, %v4009
        %v4011 = vmul.f32 %v3834, %v4010
        %v4014 = vrot.slane %v3657, 7
        %v4015 = vsel %vm3681, %v4014, %v3656
        %v4017 = vadd.f32 %v4011, %v4015
        %v4018 = vmax.f32 %v4017, 0.0
        %4019 = vst [vmem:[%s717] sm:$0x3] %v4018
        %p4020 = scmp.lt.s32.totalorder %s37, 2
        %s4021 = scalar_select %p4020, %s37, 2
        %s4022 = smul.addr %s4021, 2
        %s4023 = scalar_lea.vmem %s11, %s4022
        // Predicated region
        $region101: #{layer4_forward.1} parent=63 // pred_check
          %p4024 = pneg %p331
        $region102: #{layer4_forward.1} parent=63 // pred_check_branch
          %4026 = sbr.rel (%p4024) target = $region104
        $region103: #{layer4_forward.1} parent=63 // pred_region
          _
        $region104: #{layer4_forward.1} parent=63 // pred_fallthru
          _
      $region64: #{layer4_forward.1} parent=5 // pred_fallthru
        _
      %p4027 = scmp.le.s32.totalorder 2, %s32
      // Predicated region
      $region105: #{layer4_forward.1} parent=5 // pred_check
        %p4028 = pneg %p4027
      $region106: #{layer4_forward.1} parent=5 // pred_check_branch
        %4030 = sbr.rel (%p4028) target = $region108
      $region107: #{layer4_forward.1} parent=5 // pred_region
        %s4031 = ssub.s32 %s32, 2
        // Predicated region
        $region109: #{layer4_forward.1} parent=107 // pred_check
          %p4032 = pneg %p337
        $region110: #{layer4_forward.1} parent=107 // pred_check_branch
          %4034 = sbr.rel (%p4032) target = $region112
        $region111: #{layer4_forward.1} parent=107 // pred_region
          %p4035 = scmp.lt.s32.totalorder %s38, 2
          %s4036 = scalar_select %p4035, %s38, 2
          %s4037 = smul.addr %s4036, 2
          %s4038 = scalar_lea.vmem %s11, %s4037
        $region112: #{layer4_forward.1} parent=107 // pred_fallthru
          _
      $region108: #{layer4_forward.1} parent=5 // pred_fallthru
        _
    $region6: #{layer4_forward.1} parent=1 // loop_footer
      %s36 = sadd.s32 1, %s32
    $region7: #{layer4_forward.1} parent=1 // loop_footer_branch
      %31 = sbr.rel target = $region3
    $region8: #{layer4_forward.1} parent=1 // loop_exit
      _
    %4039 = vsyncpa [#allocation4], 1
    %s4040 = scalar_lea.sflag [#allocation4], 1
    %4041 = vsyncpa %s4040, 1
    %4042 = vsyncpa [#allocation6], 1
    %s4043 = scalar_lea.sflag [#allocation6], 1
    %4044 = vsyncpa %s4043, 1
    %4045 = vsyncpa [#allocation9], 1
    %s4046 = scalar_lea.sflag [#allocation9], 1
    %4047 = vsyncpa %s4046, 1
    %4048 = vsyncpa [#allocation12], 1
    %s4049 = scalar_lea.sflag [#allocation12], 1
    %4050 = vsyncpa %s4049, 1
    %4051 = vsyncpa [#allocation15], 1
    %s4052 = scalar_lea.sflag [#allocation15], 1
    %4053 = vsyncpa %s4052, 1

</llo_original>
